<compile_context>
chip_gen: v7x
topology: tpu7x:2x2x1
jax: 0.10.0
libtpu: 0.0.40
codegen_flags: <defaults>
</compile_context>

<pallas_src>
import functools

import jax
import jax.numpy as jnp
import numpy as np
from jax.experimental import pallas as pl
from jax.experimental.pallas import tpu as pltpu


LANE = 128                        # pad C_out to this for unmasked full-lane stores
VMEM_BUDGET = 12 * 1024 * 1024    # conservative vs. 16 MiB v5e scoped default


# ---------------------------------------------------------------------------
# Pallas kernel: Conv(4,2,1) as matmul + BatchNorm(train) + LeakyReLU(0.2)
# ---------------------------------------------------------------------------
def _fused_conv_bn_lrelu_kernel(a_ref, w_ref, b_ref, o_ref, *, inv_m, eps, slope):
    """One hidden Discriminator block in a single kernel.

    a_ref: (tm, K) im2col patch tile, w_ref: (K, Cpad), b_ref: (1, Cpad).
    o_ref: (M, Cpad) resident output block (same block index every grid step).
    Grid iterates over M tiles; the conv result for each tile is written into
    the resident output block, and BN + LeakyReLU are applied in place on the
    last grid step using a two-pass (numerically stable) mean/variance.
    Padded channels (zero weights / zero bias) stay exactly zero.
    """
    i = pl.program_id(0)
    tm = a_ref.shape[0]

    acc = jnp.dot(a_ref[...], w_ref[...], preferred_element_type=jnp.float32)
    acc = acc + b_ref[...]                                  # (tm, Cpad) + (1, Cpad)
    row0 = pl.multiple_of(i * tm, tm)
    o_ref[pl.ds(row0, tm), :] = acc

    @pl.when(i == pl.num_programs(0) - 1)
    def _():
        x = o_ref[...]                                      # (M, Cpad), VMEM-resident
        mean = jnp.sum(x, axis=0, keepdims=True) * inv_m    # (1, Cpad)
        d = x - mean
        var = jnp.sum(d * d, axis=0, keepdims=True) * inv_m  # biased (training) var
        y = d * jax.lax.rsqrt(var + eps)
        o_ref[...] = jnp.where(y >= 0, y, slope * y)


# ---------------------------------------------------------------------------
# Pallas wrapper
# ---------------------------------------------------------------------------
def _pick_tm(m, k, cpad):
    """Largest M-tile whose footprint fits the VMEM budget (usually tm == m)."""
    resident = 2 * m * cpad + 2 * k * cpad + 2 * cpad      # out block + weight + bias

    def fits(tm):
        return 4 * (resident + 2 * tm * k) <= VMEM_BUDGET  # f32 bytes, double-buffered patches

    if fits(m):
        return m
    for tm in (2048, 1024, 512, 256, 128, 64, 32, 16, 8):
        if tm < m and m % tm == 0 and tm % 8 == 0 and fits(tm):
            return tm
    return m


def fused_conv_bn_lrelu(patches, w_pad, b_pad, *, eps=1e-5, slope=0.2):
    """patches: (M, K), w_pad: (K, Cpad), b_pad: (1, Cpad) -> (M, Cpad) activated."""
    m, k = patches.shape
    cpad = w_pad.shape[1]
    tm = _pick_tm(m, k, cpad)
    kernel = functools.partial(_fused_conv_bn_lrelu_kernel,
                               inv_m=1.0 / m, eps=eps, slope=slope)
    return pl.pallas_call(
        kernel,
        out_shape=jax.ShapeDtypeStruct((m, cpad), jnp.float32),
        grid_spec=pltpu.PrefetchScalarGridSpec(
            num_scalar_prefetch=0,
            grid=(m // tm,),
            in_specs=[pl.BlockSpec((tm, k), lambda i: (i, 0)),
                      pl.BlockSpec((k, cpad), lambda i: (0, 0)),
                      pl.BlockSpec((1, cpad), lambda i: (0, 0))],
            # Same block index for every grid step -> output stays resident in
            # VMEM across the whole layer (acts as the conv accumulator).
            out_specs=pl.BlockSpec((m, cpad), lambda i: (0, 0)),
        ),
        compiler_params=pltpu.CompilerParams(
            dimension_semantics=("arbitrary",)),   # resident output across the axis
    )(patches, w_pad, b_pad)


# ---------------------------------------------------------------------------
# Glue: im2col, parameter init, full forward
# ---------------------------------------------------------------------------
def im2col(x_nhwc, ksize, stride, pad):
    n, h, w, c = x_nhwc.shape
    xp = jnp.pad(x_nhwc, ((0, 0), (pad, pad), (pad, pad), (0, 0)))
    ho = (h + 2 * pad - ksize) // stride + 1
    wo = (w + 2 * pad - ksize) // stride + 1
    cols = []
    for kh in range(ksize):
        for kw in range(ksize):
            cols.append(xp[:, kh:kh + stride * ho:stride,
                           kw:kw + stride * wo:stride, :])
    p = jnp.stack(cols, axis=-1)                      # (N, Ho, Wo, C, ks*ks)
    p = p.reshape(n * ho * wo, c * ksize * ksize)     # k = ci*16 + kh*4 + kw
    return p, (n, ho, wo)


def init_params(key, in_channels, features):
    """Deterministic synthetic weights matching PyTorch Conv2d shapes (OIHW)."""
    params = []
    cin = in_channels
    for f in features + [1]:
        key, k1, k2 = jax.random.split(key, 3)
        w = jax.random.normal(k1, (f, cin, 4, 4), jnp.float32) * 0.05
        b = jax.random.normal(k2, (f,), jnp.float32) * 0.05
        params.append((w, b))
        cin = f
    return params


def discriminator_forward(x_nchw, params, features, *, eps=1e-5, slope=0.2):
    x = jnp.transpose(x_nchw, (0, 2, 3, 1))           # NCHW -> NHWC
    # hidden blocks: Conv(k4,s2,p1) -> BatchNorm -> LeakyReLU(0.2), one kernel each
    for li in range(len(features)):
        w, b = params[li]
        c_out = w.shape[0]
        cpad = ((c_out + LANE - 1) // LANE) * LANE
        wm = w.reshape(c_out, -1).T                   # (K, C_out), K index = ci*16+kh*4+kw
        wm = jnp.pad(wm, ((0, 0), (0, cpad - c_out))) # zero-pad -> lane-dense output
        bp = jnp.pad(b.reshape(1, -1), ((0, 0), (0, cpad - c_out)))
        patches, (n, ho, wo) = im2col(x, 4, 2, 1)
        act = fused_conv_bn_lrelu(patches, wm, bp, eps=eps, slope=slope)
        x = act[:, :c_out].reshape(n, ho, wo, c_out)  # drop padded (all-zero) channels
    # final Conv(k4, s1, p0), no norm / activation. Output is 1x1 per sample
    # (M = batch), so a pallas_call is pure launch overhead -> plain XLA dot.
    w, b = params[-1]
    c_out = w.shape[0]
    wm = w.reshape(c_out, -1).T
    patches, (n, ho, wo) = im2col(x, 4, 1, 0)
    out = jnp.dot(patches, wm, preferred_element_type=jnp.float32) + b.reshape(1, -1)
    out = out.reshape(n, ho, wo, c_out)
    return jnp.transpose(out, (0, 3, 1, 2))           # back to NCHW


def reference_forward(x_nchw, params, eps=1e-5, slope=0.2):
    """Pure-JAX reference of the PyTorch forward (training-mode BN)."""
    x = x_nchw
    for li, (w, b) in enumerate(params):
        last = li == len(params) - 1
        stride, pad = (1, 0) if last else (2, 1)
        y = jax.lax.conv_general_dilated(
            x, w, window_strides=(stride, stride),
            padding=[(pad, pad), (pad, pad)],
            dimension_numbers=("NCHW", "OIHW", "NCHW"),
            precision=jax.lax.Precision.HIGHEST)
        y = y + b.reshape(1, -1, 1, 1)
        if not last:
            mean = jnp.mean(y, axis=(0, 2, 3), keepdims=True)
            var = jnp.mean((y - mean) ** 2, axis=(0, 2, 3), keepdims=True)
            y = (y - mean) * jax.lax.rsqrt(var + eps)
            y = jnp.where(y >= 0, y, slope * y)
        x = y
    return x


if __name__ == "__main__":
    key = jax.random.PRNGKey(0)
    in_channels = 3
    features = [16, 32, 64, 128]   # small, structure-preserving feature widths
    n, h, w = 2, 64, 64            # 64 -> 32 -> 16 -> 8 -> 4 -> final 1x1

    kx, kp = jax.random.split(key)
    x = jax.random.normal(kx, (n, in_channels, h, w), jnp.float32)
    params = init_params(kp, in_channels, features)

    out = discriminator_forward(x, params, features)
    out = jax.block_until_ready(out)

    ref = reference_forward(x, params)
    assert out.shape == ref.shape == (n, 1, 1, 1), (out.shape, ref.shape)
    np.testing.assert_allclose(np.asarray(out), np.asarray(ref),
                               rtol=1e-2, atol=1e-2)
    print("KERNEL_OK")
</pallas_src>

<mosaic_0001>
module attributes {stable_mosaic.version = 11 : i64} {
  func.func @_fused_conv_bn_lrelu_kernel(%arg0: i32, %arg1: memref<2048x48xf32, #tpu.memory_space<vmem>>, %arg2: memref<48x128xf32, #tpu.memory_space<vmem>>, %arg3: memref<1x128xf32, #tpu.memory_space<vmem>>, %arg4: memref<2048x128xf32, #tpu.memory_space<vmem>>) attributes {dimension_semantics = [#tpu.dimension_semantics<arbitrary>], iteration_bounds = array<i64: 1>, scalar_prefetch = 0 : i64, scratch_operands = 0 : i64, tpu.core_type = #tpu.core_type<tc>, window_params = [{transform_indices = @transform_0, window_bounds = array<i64: 2048, 48>}, {pipeline_mode = #tpu.pipeline_mode<synchronous>, transform_indices = @transform_1, window_bounds = array<i64: 48, 128>}, {pipeline_mode = #tpu.pipeline_mode<synchronous>, transform_indices = @transform_2, window_bounds = array<i64: 1, 128>}, {pipeline_mode = #tpu.pipeline_mode<synchronous>, transform_indices = @transform_3, window_bounds = array<i64: 2048, 128>}]} {
    %c0 = arith.constant 0 : index
    %c0_0 = arith.constant 0 : index
    %0 = vector.load %arg1[%c0, %c0_0] : memref<2048x48xf32, #tpu.memory_space<vmem>>, vector<2048x48xf32>
    %c0_1 = arith.constant 0 : index
    %c0_2 = arith.constant 0 : index
    %1 = vector.load %arg2[%c0_1, %c0_2] : memref<48x128xf32, #tpu.memory_space<vmem>>, vector<48x128xf32>
    %cst = arith.constant dense<0.000000e+00> : vector<2048x128xf32>
    %2 = tpu.matmul %0, %1, %cst {dimension_numbers = #tpu.dot_dimension_numbers<[1], [0], [0], [1], [0, 0, 1, 1], [], []>} : vector<2048x48xf32>, vector<48x128xf32>, vector<2048x128xf32> -> vector<2048x128xf32>
    %c0_3 = arith.constant 0 : index
    %c0_4 = arith.constant 0 : index
    %3 = vector.load %arg3[%c0_3, %c0_4] : memref<1x128xf32, #tpu.memory_space<vmem>>, vector<1x128xf32>
    %4 = vector.broadcast %3 : vector<1x128xf32> to vector<2048x128xf32>
    %5 = arith.addf %2, %4 : vector<2048x128xf32>
    %c2048_i32 = arith.constant 2048 : i32
    %6 = arith.muli %arg0, %c2048_i32 : i32
    %7 = tpu.assume_multiple %6, 2048 : i32
    %8 = arith.index_cast %7 : i32 to index
    %c0_5 = arith.constant 0 : index
    %9 = vector.load %arg4[%8, %c0_5] : memref<2048x128xf32, #tpu.memory_space<vmem>>, vector<2048x128xf32>
    tpu.vector_store %arg4[%8, %c0_5], %5 {strides = array<i32>} : memref<2048x128xf32, #tpu.memory_space<vmem>>, vector<2048x128xf32>,
    %c0_i32 = arith.constant 0 : i32
    %10 = arith.cmpi eq, %arg0, %c0_i32 : i32
    %11 = arith.extui %10 : i1 to i32
    %c0_i32_6 = arith.constant 0 : i32
    %12 = arith.cmpi ne, %11, %c0_i32_6 : i32
    scf.if %12 {
      %c0_7 = arith.constant 0 : index
      %c0_8 = arith.constant 0 : index
      %13 = vector.load %arg4[%c0_7, %c0_8] : memref<2048x128xf32, #tpu.memory_space<vmem>>, vector<2048x128xf32>
      %cst_9 = arith.constant dense<0.000000e+00> : vector<128xf32>
      %14 = vector.multi_reduction <add>, %13, %cst_9 [0] : vector<2048x128xf32> to vector<128xf32>
      %15 = vector.shape_cast %14 : vector<128xf32> to vector<1x128xf32>
      %cst_10 = arith.constant 4.8828125E-4 : f32
      %16 = vector.broadcast %cst_10 : f32 to vector<1x128xf32>
      %17 = arith.mulf %15, %16 : vector<1x128xf32>
      %18 = vector.broadcast %17 : vector<1x128xf32> to vector<2048x128xf32>
      %19 = arith.subf %13, %18 : vector<2048x128xf32>
      %20 = arith.mulf %19, %19 : vector<2048x128xf32>
      %cst_11 = arith.constant dense<0.000000e+00> : vector<128xf32>
      %21 = vector.multi_reduction <add>, %20, %cst_11 [0] : vector<2048x128xf32> to vector<128xf32>
      %22 = vector.shape_cast %21 : vector<128xf32> to vector<1x128xf32>
      %cst_12 = arith.constant 4.8828125E-4 : f32
      %23 = vector.broadcast %cst_12 : f32 to vector<1x128xf32>
      %24 = arith.mulf %22, %23 : vector<1x128xf32>
      %cst_13 = arith.constant 9.99999974E-6 : f32
      %25 = vector.broadcast %cst_13 : f32 to vector<1x128xf32>
      %26 = arith.addf %24, %25 : vector<1x128xf32>
      %27 = math.rsqrt %26 : vector<1x128xf32>
      %28 = vector.broadcast %27 : vector<1x128xf32> to vector<2048x128xf32>
      %29 = arith.mulf %19, %28 : vector<2048x128xf32>
      %cst_14 = arith.constant 0.000000e+00 : f32
      %30 = vector.broadcast %cst_14 : f32 to vector<2048x128xf32>
      %31 = arith.cmpf oge, %29, %30 : vector<2048x128xf32>
      %cst_15 = arith.constant 2.000000e-01 : f32
      %32 = vector.broadcast %cst_15 : f32 to vector<2048x128xf32>
      %33 = arith.mulf %32, %29 : vector<2048x128xf32>
      %34 = arith.select %31, %29, %33 : vector<2048x128xi1>, vector<2048x128xf32>
      %c0_16 = arith.constant 0 : index
      %c0_17 = arith.constant 0 : index
      %35 = vector.load %arg4[%c0_16, %c0_17] : memref<2048x128xf32, #tpu.memory_space<vmem>>, vector<2048x128xf32>
      tpu.vector_store %arg4[%c0_16, %c0_17], %34 {strides = array<i32>} : memref<2048x128xf32, #tpu.memory_space<vmem>>, vector<2048x128xf32>,
    } else {
    }
    return
  }
  func.func @transform_0(%arg0: i32) -> (i32, i32) {
    %c0_i32 = arith.constant 0 : i32
    %c0_i32_0 = arith.constant 0 : i32
    return %arg0, %c0_i32 : i32, i32
  }
  func.func @transform_1(%arg0: i32) -> (i32, i32) {
    %c0_i32 = arith.constant 0 : i32
    %c0_i32_0 = arith.constant 0 : i32
    %c0_i32_1 = arith.constant 0 : i32
    return %c0_i32, %c0_i32_0 : i32, i32
  }
  func.func @transform_2(%arg0: i32) -> (i32, i32) {
    %c0_i32 = arith.constant 0 : i32
    %c0_i32_0 = arith.constant 0 : i32
    %c0_i32_1 = arith.constant 0 : i32
    return %c0_i32, %c0_i32_0 : i32, i32
  }
  func.func @transform_3(%arg0: i32) -> (i32, i32) {
    %c0_i32 = arith.constant 0 : i32
    %c0_i32_0 = arith.constant 0 : i32
    %c0_i32_1 = arith.constant 0 : i32
    return %c0_i32, %c0_i32_0 : i32, i32
  }
}

</mosaic_0001>

<llo_original>
// kernel: tpu_custom_call.1
$region0: #{tpu_custom_call.1}
  #allocation0 [shape = 'u32[]', space=smem, size = 0x4, offset = 0x4, fixed_abs, tag = 'smem constant byte address 0x4 - core index']
  #allocation1 [shape = 'u32[144,128]{1,0:T(1,128)}', space=vmem, size = 0x12000, scoped, tag = 'internal scratch']
  %s0 = inlined_call_operand.vmem [shape: f32[2048,48], index: 0, kind: input, shape index: {}]
  %s1 = inlined_call_operand.vmem [shape: f32[48,128], index: 1, kind: input, shape index: {}]
  %s2 = inlined_call_operand.vmem [shape: f32[1,128], index: 2, kind: input, shape index: {}]
  %s3 = inlined_call_operand.hbm [shape: f32[2048,128], index: 3, kind: output, shape index: {}]
  %s4 = sld [smem:[#allocation0]]
  $region26: #{tpu_custom_call.1} parent=0
    _
  %s6 = ssub.s32 1, %s4
  %s7 = scalar_select 0, %s6, %s4
  $region1: #{tpu_custom_call.1} parent=0
    #allocation2 [shape = 'u8[1048576]{0}', space=vmem, size = 0x100000, scoped, tag = 'output window, operand 0, single buffered']
    #allocation3 [shape = 's32[1]{0}', space=sflag, size = 0x4, scoped, tag = 'scoped memory for tpu_custom_call.1']
    %8 = vsyncpa [#allocation3], 0
    // Predicated region
    $region2: #{tpu_custom_call.1} parent=1 // pred_check
      _
    $region3: #{tpu_custom_call.1} parent=1 // pred_check_branch
      %10 = sbr.rel (0) target = $region5
    $region4: #{tpu_custom_call.1} parent=1 // pred_region
      _
    $region5: #{tpu_custom_call.1} parent=1 // pred_fallthru
      _
    // Predicated region
    $region6: #{tpu_custom_call.1} parent=1 // pred_check
      _
    $region7: #{tpu_custom_call.1} parent=1 // pred_check_branch
      %12 = sbr.rel (0) target = $region9
    $region8: #{tpu_custom_call.1} parent=1 // pred_region
      _
    $region9: #{tpu_custom_call.1} parent=1 // pred_fallthru
      _
    // Predicated region
    $region10: #{tpu_custom_call.1} parent=1 // pred_check
      _
    $region11: #{tpu_custom_call.1} parent=1 // pred_check_branch
      %14 = sbr.rel (0) target = $region13
    $region12: #{tpu_custom_call.1} parent=1 // pred_region
      _
    $region13: #{tpu_custom_call.1} parent=1 // pred_fallthru
      _
    %v15 = vld [vmem:[%s0] sm:$0xff]
    %v16 = vld [vmem:[%s0 + $0x8] sm:$0xff]
    %v17 = vld [vmem:[%s0 + $0x10] sm:$0xff]
    %v18 = vld [vmem:[%s0 + $0x18] sm:$0xff]
    %v19 = vld [vmem:[%s0 + $0x20] sm:$0xff]
    %v20 = vld [vmem:[%s0 + $0x28] sm:$0xff]
    %v21 = vld [vmem:[%s0 + $0x30] sm:$0xff]
    %v22 = vld [vmem:[%s0 + $0x38] sm:$0xff]
    %v23 = vld [vmem:[%s0 + $0x40] sm:$0xff]
    %v24 = vld [vmem:[%s0 + $0x48] sm:$0xff]
    %v25 = vld [vmem:[%s0 + $0x50] sm:$0xff]
    %v26 = vld [vmem:[%s0 + $0x58] sm:$0xff]
    %v27 = vld [vmem:[%s0 + $0x60] sm:$0xff]
    %v28 = vld [vmem:[%s0 + $0x68] sm:$0xff]
    %v29 = vld [vmem:[%s0 + $0x70] sm:$0xff]
    %v30 = vld [vmem:[%s0 + $0x78] sm:$0xff]
    %v31 = vld [vmem:[%s0 + $0x80] sm:$0xff]
    %v32 = vld [vmem:[%s0 + $0x88] sm:$0xff]
    %v33 = vld [vmem:[%s0 + $0x90] sm:$0xff]
    %v34 = vld [vmem:[%s0 + $0x98] sm:$0xff]
    %v35 = vld [vmem:[%s0 + $0xa0] sm:$0xff]
    %v36 = vld [vmem:[%s0 + $0xa8] sm:$0xff]
    %v37 = vld [vmem:[%s0 + $0xb0] sm:$0xff]
    %v38 = vld [vmem:[%s0 + $0xb8] sm:$0xff]
    %v39 = vld [vmem:[%s0 + $0xc0] sm:$0xff]
    %v40 = vld [vmem:[%s0 + $0xc8] sm:$0xff]
    %v41 = vld [vmem:[%s0 + $0xd0] sm:$0xff]
    %v42 = vld [vmem:[%s0 + $0xd8] sm:$0xff]
    %v43 = vld [vmem:[%s0 + $0xe0] sm:$0xff]
    %v44 = vld [vmem:[%s0 + $0xe8] sm:$0xff]
    %v45 = vld [vmem:[%s0 + $0xf0] sm:$0xff]
    %v46 = vld [vmem:[%s0 + $0xf8] sm:$0xff]
    %v47 = vld [vmem:[%s0 + $0x100] sm:$0xff]
    %v48 = vld [vmem:[%s0 + $0x108] sm:$0xff]
    %v49 = vld [vmem:[%s0 + $0x110] sm:$0xff]
    %v50 = vld [vmem:[%s0 + $0x118] sm:$0xff]
    %v51 = vld [vmem:[%s0 + $0x120] sm:$0xff]
    %v52 = vld [vmem:[%s0 + $0x128] sm:$0xff]
    %v53 = vld [vmem:[%s0 + $0x130] sm:$0xff]
    %v54 = vld [vmem:[%s0 + $0x138] sm:$0xff]
    %v55 = vld [vmem:[%s0 + $0x140] sm:$0xff]
    %v56 = vld [vmem:[%s0 + $0x148] sm:$0xff]
    %v57 = vld [vmem:[%s0 + $0x150] sm:$0xff]
    %v58 = vld [vmem:[%s0 + $0x158] sm:$0xff]
    %v59 = vld [vmem:[%s0 + $0x160] sm:$0xff]
    %v60 = vld [vmem:[%s0 + $0x168] sm:$0xff]
    %v61 = vld [vmem:[%s0 + $0x170] sm:$0xff]
    %v62 = vld [vmem:[%s0 + $0x178] sm:$0xff]
    %v63 = vld [vmem:[%s0 + $0x180] sm:$0xff]
    %v64 = vld [vmem:[%s0 + $0x188] sm:$0xff]
    %v65 = vld [vmem:[%s0 + $0x190] sm:$0xff]
    %v66 = vld [vmem:[%s0 + $0x198] sm:$0xff]
    %v67 = vld [vmem:[%s0 + $0x1a0] sm:$0xff]
    %v68 = vld [vmem:[%s0 + $0x1a8] sm:$0xff]
    %v69 = vld [vmem:[%s0 + $0x1b0] sm:$0xff]
    %v70 = vld [vmem:[%s0 + $0x1b8] sm:$0xff]
    %v71 = vld [vmem:[%s0 + $0x1c0] sm:$0xff]
    %v72 = vld [vmem:[%s0 + $0x1c8] sm:$0xff]
    %v73 = vld [vmem:[%s0 + $0x1d0] sm:$0xff]
    %v74 = vld [vmem:[%s0 + $0x1d8] sm:$0xff]
    %v75 = vld [vmem:[%s0 + $0x1e0] sm:$0xff]
    %v76 = vld [vmem:[%s0 + $0x1e8] sm:$0xff]
    %v77 = vld [vmem:[%s0 + $0x1f0] sm:$0xff]
    %v78 = vld [vmem:[%s0 + $0x1f8] sm:$0xff]
    %v79 = vld [vmem:[%s0 + $0x200] sm:$0xff]
    %v80 = vld [vmem:[%s0 + $0x208] sm:$0xff]
    %v81 = vld [vmem:[%s0 + $0x210] sm:$0xff]
    %v82 = vld [vmem:[%s0 + $0x218] sm:$0xff]
    %v83 = vld [vmem:[%s0 + $0x220] sm:$0xff]
    %v84 = vld [vmem:[%s0 + $0x228] sm:$0xff]
    %v85 = vld [vmem:[%s0 + $0x230] sm:$0xff]
    %v86 = vld [vmem:[%s0 + $0x238] sm:$0xff]
    %v87 = vld [vmem:[%s0 + $0x240] sm:$0xff]
    %v88 = vld [vmem:[%s0 + $0x248] sm:$0xff]
    %v89 = vld [vmem:[%s0 + $0x250] sm:$0xff]
    %v90 = vld [vmem:[%s0 + $0x258] sm:$0xff]
    %v91 = vld [vmem:[%s0 + $0x260] sm:$0xff]
    %v92 = vld [vmem:[%s0 + $0x268] sm:$0xff]
    %v93 = vld [vmem:[%s0 + $0x270] sm:$0xff]
    %v94 = vld [vmem:[%s0 + $0x278] sm:$0xff]
    %v95 = vld [vmem:[%s0 + $0x280] sm:$0xff]
    %v96 = vld [vmem:[%s0 + $0x288] sm:$0xff]
    %v97 = vld [vmem:[%s0 + $0x290] sm:$0xff]
    %v98 = vld [vmem:[%s0 + $0x298] sm:$0xff]
    %v99 = vld [vmem:[%s0 + $0x2a0] sm:$0xff]
    %v100 = vld [vmem:[%s0 + $0x2a8] sm:$0xff]
    %v101 = vld [vmem:[%s0 + $0x2b0] sm:$0xff]
    %v102 = vld [vmem:[%s0 + $0x2b8] sm:$0xff]
    %v103 = vld [vmem:[%s0 + $0x2c0] sm:$0xff]
    %v104 = vld [vmem:[%s0 + $0x2c8] sm:$0xff]
    %v105 = vld [vmem:[%s0 + $0x2d0] sm:$0xff]
    %v106 = vld [vmem:[%s0 + $0x2d8] sm:$0xff]
    %v107 = vld [vmem:[%s0 + $0x2e0] sm:$0xff]
    %v108 = vld [vmem:[%s0 + $0x2e8] sm:$0xff]
    %v109 = vld [vmem:[%s0 + $0x2f0] sm:$0xff]
    %v110 = vld [vmem:[%s0 + $0x2f8] sm:$0xff]
    %v111 = vld [vmem:[%s0 + $0x300] sm:$0xff]
    %v112 = vld [vmem:[%s0 + $0x308] sm:$0xff]
    %v113 = vld [vmem:[%s0 + $0x310] sm:$0xff]
    %v114 = vld [vmem:[%s0 + $0x318] sm:$0xff]
    %v115 = vld [vmem:[%s0 + $0x320] sm:$0xff]
    %v116 = vld [vmem:[%s0 + $0x328] sm:$0xff]
    %v117 = vld [vmem:[%s0 + $0x330] sm:$0xff]
    %v118 = vld [vmem:[%s0 + $0x338] sm:$0xff]
    %v119 = vld [vmem:[%s0 + $0x340] sm:$0xff]
    %v120 = vld [vmem:[%s0 + $0x348] sm:$0xff]
    %v121 = vld [vmem:[%s0 + $0x350] sm:$0xff]
    %v122 = vld [vmem:[%s0 + $0x358] sm:$0xff]
    %v123 = vld [vmem:[%s0 + $0x360] sm:$0xff]
    %v124 = vld [vmem:[%s0 + $0x368] sm:$0xff]
    %v125 = vld [vmem:[%s0 + $0x370] sm:$0xff]
    %v126 = vld [vmem:[%s0 + $0x378] sm:$0xff]
    %v127 = vld [vmem:[%s0 + $0x380] sm:$0xff]
    %v128 = vld [vmem:[%s0 + $0x388] sm:$0xff]
    %v129 = vld [vmem:[%s0 + $0x390] sm:$0xff]
    %v130 = vld [vmem:[%s0 + $0x398] sm:$0xff]
    %v131 = vld [vmem:[%s0 + $0x3a0] sm:$0xff]
    %v132 = vld [vmem:[%s0 + $0x3a8] sm:$0xff]
    %v133 = vld [vmem:[%s0 + $0x3b0] sm:$0xff]
    %v134 = vld [vmem:[%s0 + $0x3b8] sm:$0xff]
    %v135 = vld [vmem:[%s0 + $0x3c0] sm:$0xff]
    %v136 = vld [vmem:[%s0 + $0x3c8] sm:$0xff]
    %v137 = vld [vmem:[%s0 + $0x3d0] sm:$0xff]
    %v138 = vld [vmem:[%s0 + $0x3d8] sm:$0xff]
    %v139 = vld [vmem:[%s0 + $0x3e0] sm:$0xff]
    %v140 = vld [vmem:[%s0 + $0x3e8] sm:$0xff]
    %v141 = vld [vmem:[%s0 + $0x3f0] sm:$0xff]
    %v142 = vld [vmem:[%s0 + $0x3f8] sm:$0xff]
    %v143 = vld [vmem:[%s0 + $0x400] sm:$0xff]
    %v144 = vld [vmem:[%s0 + $0x408] sm:$0xff]
    %v145 = vld [vmem:[%s0 + $0x410] sm:$0xff]
    %v146 = vld [vmem:[%s0 + $0x418] sm:$0xff]
    %v147 = vld [vmem:[%s0 + $0x420] sm:$0xff]
    %v148 = vld [vmem:[%s0 + $0x428] sm:$0xff]
    %v149 = vld [vmem:[%s0 + $0x430] sm:$0xff]
    %v150 = vld [vmem:[%s0 + $0x438] sm:$0xff]
    %v151 = vld [vmem:[%s0 + $0x440] sm:$0xff]
    %v152 = vld [vmem:[%s0 + $0x448] sm:$0xff]
    %v153 = vld [vmem:[%s0 + $0x450] sm:$0xff]
    %v154 = vld [vmem:[%s0 + $0x458] sm:$0xff]
    %v155 = vld [vmem:[%s0 + $0x460] sm:$0xff]
    %v156 = vld [vmem:[%s0 + $0x468] sm:$0xff]
    %v157 = vld [vmem:[%s0 + $0x470] sm:$0xff]
    %v158 = vld [vmem:[%s0 + $0x478] sm:$0xff]
    %v159 = vld [vmem:[%s0 + $0x480] sm:$0xff]
    %v160 = vld [vmem:[%s0 + $0x488] sm:$0xff]
    %v161 = vld [vmem:[%s0 + $0x490] sm:$0xff]
    %v162 = vld [vmem:[%s0 + $0x498] sm:$0xff]
    %v163 = vld [vmem:[%s0 + $0x4a0] sm:$0xff]
    %v164 = vld [vmem:[%s0 + $0x4a8] sm:$0xff]
    %v165 = vld [vmem:[%s0 + $0x4b0] sm:$0xff]
    %v166 = vld [vmem:[%s0 + $0x4b8] sm:$0xff]
    %v167 = vld [vmem:[%s0 + $0x4c0] sm:$0xff]
    %v168 = vld [vmem:[%s0 + $0x4c8] sm:$0xff]
    %v169 = vld [vmem:[%s0 + $0x4d0] sm:$0xff]
    %v170 = vld [vmem:[%s0 + $0x4d8] sm:$0xff]
    %v171 = vld [vmem:[%s0 + $0x4e0] sm:$0xff]
    %v172 = vld [vmem:[%s0 + $0x4e8] sm:$0xff]
    %v173 = vld [vmem:[%s0 + $0x4f0] sm:$0xff]
    %v174 = vld [vmem:[%s0 + $0x4f8] sm:$0xff]
    %v175 = vld [vmem:[%s0 + $0x500] sm:$0xff]
    %v176 = vld [vmem:[%s0 + $0x508] sm:$0xff]
    %v177 = vld [vmem:[%s0 + $0x510] sm:$0xff]
    %v178 = vld [vmem:[%s0 + $0x518] sm:$0xff]
    %v179 = vld [vmem:[%s0 + $0x520] sm:$0xff]
    %v180 = vld [vmem:[%s0 + $0x528] sm:$0xff]
    %v181 = vld [vmem:[%s0 + $0x530] sm:$0xff]
    %v182 = vld [vmem:[%s0 + $0x538] sm:$0xff]
    %v183 = vld [vmem:[%s0 + $0x540] sm:$0xff]
    %v184 = vld [vmem:[%s0 + $0x548] sm:$0xff]
    %v185 = vld [vmem:[%s0 + $0x550] sm:$0xff]
    %v186 = vld [vmem:[%s0 + $0x558] sm:$0xff]
    %v187 = vld [vmem:[%s0 + $0x560] sm:$0xff]
    %v188 = vld [vmem:[%s0 + $0x568] sm:$0xff]
    %v189 = vld [vmem:[%s0 + $0x570] sm:$0xff]
    %v190 = vld [vmem:[%s0 + $0x578] sm:$0xff]
    %v191 = vld [vmem:[%s0 + $0x580] sm:$0xff]
    %v192 = vld [vmem:[%s0 + $0x588] sm:$0xff]
    %v193 = vld [vmem:[%s0 + $0x590] sm:$0xff]
    %v194 = vld [vmem:[%s0 + $0x598] sm:$0xff]
    %v195 = vld [vmem:[%s0 + $0x5a0] sm:$0xff]
    %v196 = vld [vmem:[%s0 + $0x5a8] sm:$0xff]
    %v197 = vld [vmem:[%s0 + $0x5b0] sm:$0xff]
    %v198 = vld [vmem:[%s0 + $0x5b8] sm:$0xff]
    %v199 = vld [vmem:[%s0 + $0x5c0] sm:$0xff]
    %v200 = vld [vmem:[%s0 + $0x5c8] sm:$0xff]
    %v201 = vld [vmem:[%s0 + $0x5d0] sm:$0xff]
    %v202 = vld [vmem:[%s0 + $0x5d8] sm:$0xff]
    %v203 = vld [vmem:[%s0 + $0x5e0] sm:$0xff]
    %v204 = vld [vmem:[%s0 + $0x5e8] sm:$0xff]
    %v205 = vld [vmem:[%s0 + $0x5f0] sm:$0xff]
    %v206 = vld [vmem:[%s0 + $0x5f8] sm:$0xff]
    %v207 = vld [vmem:[%s0 + $0x600] sm:$0xff]
    %v208 = vld [vmem:[%s0 + $0x608] sm:$0xff]
    %v209 = vld [vmem:[%s0 + $0x610] sm:$0xff]
    %v210 = vld [vmem:[%s0 + $0x618] sm:$0xff]
    %v211 = vld [vmem:[%s0 + $0x620] sm:$0xff]
    %v212 = vld [vmem:[%s0 + $0x628] sm:$0xff]
    %v213 = vld [vmem:[%s0 + $0x630] sm:$0xff]
    %v214 = vld [vmem:[%s0 + $0x638] sm:$0xff]
    %v215 = vld [vmem:[%s0 + $0x640] sm:$0xff]
    %v216 = vld [vmem:[%s0 + $0x648] sm:$0xff]
    %v217 = vld [vmem:[%s0 + $0x650] sm:$0xff]
    %v218 = vld [vmem:[%s0 + $0x658] sm:$0xff]
    %v219 = vld [vmem:[%s0 + $0x660] sm:$0xff]
    %v220 = vld [vmem:[%s0 + $0x668] sm:$0xff]
    %v221 = vld [vmem:[%s0 + $0x670] sm:$0xff]
    %v222 = vld [vmem:[%s0 + $0x678] sm:$0xff]
    %v223 = vld [vmem:[%s0 + $0x680] sm:$0xff]
    %v224 = vld [vmem:[%s0 + $0x688] sm:$0xff]
    %v225 = vld [vmem:[%s0 + $0x690] sm:$0xff]
    %v226 = vld [vmem:[%s0 + $0x698] sm:$0xff]
    %v227 = vld [vmem:[%s0 + $0x6a0] sm:$0xff]
    %v228 = vld [vmem:[%s0 + $0x6a8] sm:$0xff]
    %v229 = vld [vmem:[%s0 + $0x6b0] sm:$0xff]
    %v230 = vld [vmem:[%s0 + $0x6b8] sm:$0xff]
    %v231 = vld [vmem:[%s0 + $0x6c0] sm:$0xff]
    %v232 = vld [vmem:[%s0 + $0x6c8] sm:$0xff]
    %v233 = vld [vmem:[%s0 + $0x6d0] sm:$0xff]
    %v234 = vld [vmem:[%s0 + $0x6d8] sm:$0xff]
    %v235 = vld [vmem:[%s0 + $0x6e0] sm:$0xff]
    %v236 = vld [vmem:[%s0 + $0x6e8] sm:$0xff]
    %v237 = vld [vmem:[%s0 + $0x6f0] sm:$0xff]
    %v238 = vld [vmem:[%s0 + $0x6f8] sm:$0xff]
    %v239 = vld [vmem:[%s0 + $0x700] sm:$0xff]
    %v240 = vld [vmem:[%s0 + $0x708] sm:$0xff]
    %v241 = vld [vmem:[%s0 + $0x710] sm:$0xff]
    %v242 = vld [vmem:[%s0 + $0x718] sm:$0xff]
    %v243 = vld [vmem:[%s0 + $0x720] sm:$0xff]
    %v244 = vld [vmem:[%s0 + $0x728] sm:$0xff]
    %v245 = vld [vmem:[%s0 + $0x730] sm:$0xff]
    %v246 = vld [vmem:[%s0 + $0x738] sm:$0xff]
    %v247 = vld [vmem:[%s0 + $0x740] sm:$0xff]
    %v248 = vld [vmem:[%s0 + $0x748] sm:$0xff]
    %v249 = vld [vmem:[%s0 + $0x750] sm:$0xff]
    %v250 = vld [vmem:[%s0 + $0x758] sm:$0xff]
    %v251 = vld [vmem:[%s0 + $0x760] sm:$0xff]
    %v252 = vld [vmem:[%s0 + $0x768] sm:$0xff]
    %v253 = vld [vmem:[%s0 + $0x770] sm:$0xff]
    %v254 = vld [vmem:[%s0 + $0x778] sm:$0xff]
    %v255 = vld [vmem:[%s0 + $0x780] sm:$0xff]
    %v256 = vld [vmem:[%s0 + $0x788] sm:$0xff]
    %v257 = vld [vmem:[%s0 + $0x790] sm:$0xff]
    %v258 = vld [vmem:[%s0 + $0x798] sm:$0xff]
    %v259 = vld [vmem:[%s0 + $0x7a0] sm:$0xff]
    %v260 = vld [vmem:[%s0 + $0x7a8] sm:$0xff]
    %v261 = vld [vmem:[%s0 + $0x7b0] sm:$0xff]
    %v262 = vld [vmem:[%s0 + $0x7b8] sm:$0xff]
    %v263 = vld [vmem:[%s0 + $0x7c0] sm:$0xff]
    %v264 = vld [vmem:[%s0 + $0x7c8] sm:$0xff]
    %v265 = vld [vmem:[%s0 + $0x7d0] sm:$0xff]
    %v266 = vld [vmem:[%s0 + $0x7d8] sm:$0xff]
    %v267 = vld [vmem:[%s0 + $0x7e0] sm:$0xff]
    %v268 = vld [vmem:[%s0 + $0x7e8] sm:$0xff]
    %v269 = vld [vmem:[%s0 + $0x7f0] sm:$0xff]
    %v270 = vld [vmem:[%s0 + $0x7f8] sm:$0xff]
    %v271 = vld [vmem:[%s1] sm:$0xff]
    %v272 = vld [vmem:[%s1 + $0x8] sm:$0xff]
    %v273 = vld [vmem:[%s1 + $0x10] sm:$0xff]
    %v274 = vld [vmem:[%s1 + $0x18] sm:$0xff]
    %v275 = vld [vmem:[%s1 + $0x20] sm:$0xff]
    %v276 = vld [vmem:[%s1 + $0x28] sm:$0xff]
    %v277 = vld [vmem:[%s2] sm:$0x1]
    %v279 = vlaneseq
    %v280 = vshrl.u32 %v279, 7
    %v281 = vsub.s32 0, %v280
    %v282 = vrot.slane %v277, %v281
    %vm284 = vcmask 392192
    %v286 = vsel %vm284, %v15, 0
    %v289 = vsel %vm284, %v16, 0
    %v292 = vsel %vm284, %v17, 0
    %v295 = vsel %vm284, %v18, 0
    %v298 = vsel %vm284, %v19, 0
    %v301 = vsel %vm284, %v20, 0
    %v304 = vsel %vm284, %v21, 0
    %v307 = vsel %vm284, %v22, 0
    %v310 = vsel %vm284, %v23, 0
    %v313 = vsel %vm284, %v24, 0
    %v316 = vsel %vm284, %v25, 0
    %v319 = vsel %vm284, %v26, 0
    %v322 = vsel %vm284, %v27, 0
    %v325 = vsel %vm284, %v28, 0
    %v328 = vsel %vm284, %v29, 0
    %v331 = vsel %vm284, %v30, 0
    %v334 = vsel %vm284, %v31, 0
    %v337 = vsel %vm284, %v32, 0
    %v340 = vsel %vm284, %v33, 0
    %v343 = vsel %vm284, %v34, 0
    %v346 = vsel %vm284, %v35, 0
    %v349 = vsel %vm284, %v36, 0
    %v352 = vsel %vm284, %v37, 0
    %v355 = vsel %vm284, %v38, 0
    %v358 = vsel %vm284, %v39, 0
    %v361 = vsel %vm284, %v40, 0
    %v364 = vsel %vm284, %v41, 0
    %v367 = vsel %vm284, %v42, 0
    %v370 = vsel %vm284, %v43, 0
    %v373 = vsel %vm284, %v44, 0
    %v376 = vsel %vm284, %v45, 0
    %v379 = vsel %vm284, %v46, 0
    %v382 = vsel %vm284, %v47, 0
    %v385 = vsel %vm284, %v48, 0
    %v388 = vsel %vm284, %v49, 0
    %v391 = vsel %vm284, %v50, 0
    %v394 = vsel %vm284, %v51, 0
    %v397 = vsel %vm284, %v52, 0
    %v400 = vsel %vm284, %v53, 0
    %v403 = vsel %vm284, %v54, 0
    %v406 = vsel %vm284, %v55, 0
    %v409 = vsel %vm284, %v56, 0
    %v412 = vsel %vm284, %v57, 0
    %v415 = vsel %vm284, %v58, 0
    %v418 = vsel %vm284, %v59, 0
    %v421 = vsel %vm284, %v60, 0
    %v424 = vsel %vm284, %v61, 0
    %v427 = vsel %vm284, %v62, 0
    %v430 = vsel %vm284, %v63, 0
    %v433 = vsel %vm284, %v64, 0
    %v436 = vsel %vm284, %v65, 0
    %v439 = vsel %vm284, %v66, 0
    %v442 = vsel %vm284, %v67, 0
    %v445 = vsel %vm284, %v68, 0
    %v448 = vsel %vm284, %v69, 0
    %v451 = vsel %vm284, %v70, 0
    %v454 = vsel %vm284, %v71, 0
    %v457 = vsel %vm284, %v72, 0
    %v460 = vsel %vm284, %v73, 0
    %v463 = vsel %vm284, %v74, 0
    %v466 = vsel %vm284, %v75, 0
    %v469 = vsel %vm284, %v76, 0
    %v472 = vsel %vm284, %v77, 0
    %v475 = vsel %vm284, %v78, 0
    %v478 = vsel %vm284, %v79, 0
    %v481 = vsel %vm284, %v80, 0
    %v484 = vsel %vm284, %v81, 0
    %v487 = vsel %vm284, %v82, 0
    %v490 = vsel %vm284, %v83, 0
    %v493 = vsel %vm284, %v84, 0
    %v496 = vsel %vm284, %v85, 0
    %v499 = vsel %vm284, %v86, 0
    %v502 = vsel %vm284, %v87, 0
    %v505 = vsel %vm284, %v88, 0
    %v508 = vsel %vm284, %v89, 0
    %v511 = vsel %vm284, %v90, 0
    %v514 = vsel %vm284, %v91, 0
    %v517 = vsel %vm284, %v92, 0
    %v520 = vsel %vm284, %v93, 0
    %v523 = vsel %vm284, %v94, 0
    %v526 = vsel %vm284, %v95, 0
    %v529 = vsel %vm284, %v96, 0
    %v532 = vsel %vm284, %v97, 0
    %v535 = vsel %vm284, %v98, 0
    %v538 = vsel %vm284, %v99, 0
    %v541 = vsel %vm284, %v100, 0
    %v544 = vsel %vm284, %v101, 0
    %v547 = vsel %vm284, %v102, 0
    %v550 = vsel %vm284, %v103, 0
    %v553 = vsel %vm284, %v104, 0
    %v556 = vsel %vm284, %v105, 0
    %v559 = vsel %vm284, %v106, 0
    %v562 = vsel %vm284, %v107, 0
    %v565 = vsel %vm284, %v108, 0
    %v568 = vsel %vm284, %v109, 0
    %v571 = vsel %vm284, %v110, 0
    %v574 = vsel %vm284, %v111, 0
    %v577 = vsel %vm284, %v112, 0
    %v580 = vsel %vm284, %v113, 0
    %v583 = vsel %vm284, %v114, 0
    %v586 = vsel %vm284, %v115, 0
    %v589 = vsel %vm284, %v116, 0
    %v592 = vsel %vm284, %v117, 0
    %v595 = vsel %vm284, %v118, 0
    %v598 = vsel %vm284, %v119, 0
    %v601 = vsel %vm284, %v120, 0
    %v604 = vsel %vm284, %v121, 0
    %v607 = vsel %vm284, %v122, 0
    %v610 = vsel %vm284, %v123, 0
    %v613 = vsel %vm284, %v124, 0
    %v616 = vsel %vm284, %v125, 0
    %v619 = vsel %vm284, %v126, 0
    %v622 = vsel %vm284, %v127, 0
    %v625 = vsel %vm284, %v128, 0
    %v628 = vsel %vm284, %v129, 0
    %v631 = vsel %vm284, %v130, 0
    %v634 = vsel %vm284, %v131, 0
    %v637 = vsel %vm284, %v132, 0
    %v640 = vsel %vm284, %v133, 0
    %v643 = vsel %vm284, %v134, 0
    %v646 = vsel %vm284, %v135, 0
    %v649 = vsel %vm284, %v136, 0
    %v652 = vsel %vm284, %v137, 0
    %v655 = vsel %vm284, %v138, 0
    %v658 = vsel %vm284, %v139, 0
    %v661 = vsel %vm284, %v140, 0
    %v664 = vsel %vm284, %v141, 0
    %v667 = vsel %vm284, %v142, 0
    %v670 = vsel %vm284, %v143, 0
    %v673 = vsel %vm284, %v144, 0
    %v676 = vsel %vm284, %v145, 0
    %v679 = vsel %vm284, %v146, 0
    %v682 = vsel %vm284, %v147, 0
    %v685 = vsel %vm284, %v148, 0
    %v688 = vsel %vm284, %v149, 0
    %v691 = vsel %vm284, %v150, 0
    %v694 = vsel %vm284, %v151, 0
    %v697 = vsel %vm284, %v152, 0
    %v700 = vsel %vm284, %v153, 0
    %v703 = vsel %vm284, %v154, 0
    %v706 = vsel %vm284, %v155, 0
    %v709 = vsel %vm284, %v156, 0
    %v712 = vsel %vm284, %v157, 0
    %v715 = vsel %vm284, %v158, 0
    %v718 = vsel %vm284, %v159, 0
    %v721 = vsel %vm284, %v160, 0
    %v724 = vsel %vm284, %v161, 0
    %v727 = vsel %vm284, %v162, 0
    %v730 = vsel %vm284, %v163, 0
    %v733 = vsel %vm284, %v164, 0
    %v736 = vsel %vm284, %v165, 0
    %v739 = vsel %vm284, %v166, 0
    %v742 = vsel %vm284, %v167, 0
    %v745 = vsel %vm284, %v168, 0
    %v748 = vsel %vm284, %v169, 0
    %v751 = vsel %vm284, %v170, 0
    %v754 = vsel %vm284, %v171, 0
    %v757 = vsel %vm284, %v172, 0
    %v760 = vsel %vm284, %v173, 0
    %v763 = vsel %vm284, %v174, 0
    %v766 = vsel %vm284, %v175, 0
    %v769 = vsel %vm284, %v176, 0
    %v772 = vsel %vm284, %v177, 0
    %v775 = vsel %vm284, %v178, 0
    %v778 = vsel %vm284, %v179, 0
    %v781 = vsel %vm284, %v180, 0
    %v784 = vsel %vm284, %v181, 0
    %v787 = vsel %vm284, %v182, 0
    %v790 = vsel %vm284, %v183, 0
    %v793 = vsel %vm284, %v184, 0
    %v796 = vsel %vm284, %v185, 0
    %v799 = vsel %vm284, %v186, 0
    %v802 = vsel %vm284, %v187, 0
    %v805 = vsel %vm284, %v188, 0
    %v808 = vsel %vm284, %v189, 0
    %v811 = vsel %vm284, %v190, 0
    %v814 = vsel %vm284, %v191, 0
    %v817 = vsel %vm284, %v192, 0
    %v820 = vsel %vm284, %v193, 0
    %v823 = vsel %vm284, %v194, 0
    %v826 = vsel %vm284, %v195, 0
    %v829 = vsel %vm284, %v196, 0
    %v832 = vsel %vm284, %v197, 0
    %v835 = vsel %vm284, %v198, 0
    %v838 = vsel %vm284, %v199, 0
    %v841 = vsel %vm284, %v200, 0
    %v844 = vsel %vm284, %v201, 0
    %v847 = vsel %vm284, %v202, 0
    %v850 = vsel %vm284, %v203, 0
    %v853 = vsel %vm284, %v204, 0
    %v856 = vsel %vm284, %v205, 0
    %v859 = vsel %vm284, %v206, 0
    %v862 = vsel %vm284, %v207, 0
    %v865 = vsel %vm284, %v208, 0
    %v868 = vsel %vm284, %v209, 0
    %v871 = vsel %vm284, %v210, 0
    %v874 = vsel %vm284, %v211, 0
    %v877 = vsel %vm284, %v212, 0
    %v880 = vsel %vm284, %v213, 0
    %v883 = vsel %vm284, %v214, 0
    %v886 = vsel %vm284, %v215, 0
    %v889 = vsel %vm284, %v216, 0
    %v892 = vsel %vm284, %v217, 0
    %v895 = vsel %vm284, %v218, 0
    %v898 = vsel %vm284, %v219, 0
    %v901 = vsel %vm284, %v220, 0
    %v904 = vsel %vm284, %v221, 0
    %v907 = vsel %vm284, %v222, 0
    %v910 = vsel %vm284, %v223, 0
    %v913 = vsel %vm284, %v224, 0
    %v916 = vsel %vm284, %v225, 0
    %v919 = vsel %vm284, %v226, 0
    %v922 = vsel %vm284, %v227, 0
    %v925 = vsel %vm284, %v228, 0
    %v928 = vsel %vm284, %v229, 0
    %v931 = vsel %vm284, %v230, 0
    %v934 = vsel %vm284, %v231, 0
    %v937 = vsel %vm284, %v232, 0
    %v940 = vsel %vm284, %v233, 0
    %v943 = vsel %vm284, %v234, 0
    %v946 = vsel %vm284, %v235, 0
    %v949 = vsel %vm284, %v236, 0
    %v952 = vsel %vm284, %v237, 0
    %v955 = vsel %vm284, %v238, 0
    %v958 = vsel %vm284, %v239, 0
    %v961 = vsel %vm284, %v240, 0
    %v964 = vsel %vm284, %v241, 0
    %v967 = vsel %vm284, %v242, 0
    %v970 = vsel %vm284, %v243, 0
    %v973 = vsel %vm284, %v244, 0
    %v976 = vsel %vm284, %v245, 0
    %v979 = vsel %vm284, %v246, 0
    %v982 = vsel %vm284, %v247, 0
    %v985 = vsel %vm284, %v248, 0
    %v988 = vsel %vm284, %v249, 0
    %v991 = vsel %vm284, %v250, 0
    %v994 = vsel %vm284, %v251, 0
    %v997 = vsel %vm284, %v252, 0
    %v1000 = vsel %vm284, %v253, 0
    %v1003 = vsel %vm284, %v254, 0
    %v1006 = vsel %vm284, %v255, 0
    %v1009 = vsel %vm284, %v256, 0
    %v1012 = vsel %vm284, %v257, 0
    %v1015 = vsel %vm284, %v258, 0
    %v1018 = vsel %vm284, %v259, 0
    %v1021 = vsel %vm284, %v260, 0
    %v1024 = vsel %vm284, %v261, 0
    %v1027 = vsel %vm284, %v262, 0
    %v1030 = vsel %vm284, %v263, 0
    %v1033 = vsel %vm284, %v264, 0
    %v1036 = vsel %vm284, %v265, 0
    %v1039 = vsel %vm284, %v266, 0
    %v1042 = vsel %vm284, %v267, 0
    %v1045 = vsel %vm284, %v268, 0
    %v1048 = vsel %vm284, %v269, 0
    %v1051 = vsel %vm284, %v270, 0
    %1053 = vmatprep.subr.mxu0 0.0
    %1054 = vmatpush1.msra.mxu0 %v271
    %1055 = vmatprep.subr.mxu0 0.0
    %1056 = vmatpush1.msra.mxu0 %v272
    %1057 = vmatprep.subr.mxu0 0.0
    %1058 = vmatpush1.msra.mxu0 %v273
    %1059 = vmatprep.subr.mxu0 0.0
    %1060 = vmatpush1.msra.mxu0 %v274
    %1061 = vmatprep.subr.mxu0 0.0
    %1062 = vmatpush1.msra.mxu0 %v275
    %1063 = vmatprep.subr.mxu0 0.0
    %1064 = vmatpush1.msra.mxu0 %v276
    %1065 = vmatprep.subr.mxu0 0.0
    %1066 = vmatpush1.msra.mxu0 0.0
    %1067 = vmatprep.subr.mxu0 0.0
    %1068 = vmatpush1.msra.mxu0 0.0
    %1069 = vmatprep.subr.mxu0 0.0
    %1070 = vmatpush1.msra.mxu0 0.0
    %1071 = vmatprep.subr.mxu0 0.0
    %1072 = vmatpush1.msra.mxu0 0.0
    %1073 = vmatprep.subr.mxu0 0.0
    %1074 = vmatpush1.msra.mxu0 0.0
    %1075 = vmatprep.subr.mxu0 0.0
    %1076 = vmatpush1.msra.mxu0 0.0
    %1077 = vmatprep.subr.mxu0 0.0
    %1078 = vmatpush1.msra.mxu0 0.0
    %1079 = vmatprep.subr.mxu0 0.0
    %1080 = vmatpush1.msra.mxu0 0.0
    %1081 = vmatprep.subr.mxu0 0.0
    %1082 = vmatpush1.msra.mxu0 0.0
    %1083 = vmatprep.subr.mxu0 0.0
    %1084 = vmatpush1.msra.mxu0 0.0
    %1085 = vmatprep.subr.mxu0 0.0
    %1086 = vmatpush1.msra.mxu0 0.0
    %1087 = vmatprep.subr.mxu0 0.0
    %1088 = vmatpush1.msra.mxu0 0.0
    %1089 = vmatprep.subr.mxu0 0.0
    %1090 = vmatpush1.msra.mxu0 0.0
    %1091 = vmatprep.subr.mxu0 0.0
    %1092 = vmatpush1.msra.mxu0 0.0
    %1093 = vmatprep.subr.mxu0 0.0
    %1094 = vmatpush1.msra.mxu0 0.0
    %1095 = vmatprep.subr.mxu0 0.0
    %1096 = vmatpush1.msra.mxu0 0.0
    %1097 = vmatprep.subr.mxu0 0.0
    %1098 = vmatpush1.msra.mxu0 0.0
    %1099 = vmatprep.subr.mxu0 0.0
    %1100 = vmatpush1.msra.mxu0 0.0
    %1101 = vmatprep.subr.mxu0 0.0
    %1102 = vmatpush1.msra.mxu0 0.0
    %1103 = vmatprep.subr.mxu0 0.0
    %1104 = vmatpush1.msra.mxu0 0.0
    %1105 = vmatprep.subr.mxu0 0.0
    %1106 = vmatpush1.msra.mxu0 0.0
    %1107 = vmatprep.subr.mxu0 0.0
    %1108 = vmatpush1.msra.mxu0 0.0
    %1109 = vmatprep.subr.mxu0 0.0
    %1110 = vmatpush1.msra.mxu0 0.0
    %1111 = vmatprep.subr.mxu0 0.0
    %1112 = vmatpush1.msra.mxu0 0.0
    %1113 = vmatprep.subr.mxu0 0.0
    %1114 = vmatpush1.msra.mxu0 0.0
    %1115 = vmatprep.subr.mxu0 0.0
    %1116 = vmatpush1.msra.mxu0 0.0
    %1117 = vmatprep.mubr.f32.mxu0 0.0
    %1118 = vmatmul.mubr.f32.gmra.mrb[0].mxu0 %v286
    %v1119 = vpop.f32.mrb[0].mxu0
    %v1120 = vadd.f32 %v282, %v1119
    %v1121 = vpop.f32.mrb[0].mxu0
    %1122 = vmatprep.mubr.f32.mxu0 0.0
    %1123 = vmatmul.mubr.f32.gmra.mrb[0].mxu0 %v289
    %v1124 = vpop.f32.mrb[0].mxu0
    %v1125 = vadd.f32 %v282, %v1124
    %v1126 = vpop.f32.mrb[0].mxu0
    %1127 = vmatprep.mubr.f32.mxu0 0.0
    %1128 = vmatmul.mubr.f32.gmra.mrb[0].mxu0 %v292
    %v1129 = vpop.f32.mrb[0].mxu0
    %v1130 = vadd.f32 %v282, %v1129
    %v1131 = vpop.f32.mrb[0].mxu0
    %1132 = vmatprep.mubr.f32.mxu0 0.0
    %1133 = vmatmul.mubr.f32.gmra.mrb[0].mxu0 %v295
    %v1134 = vpop.f32.mrb[0].mxu0
    %v1135 = vadd.f32 %v282, %v1134
    %v1136 = vpop.f32.mrb[0].mxu0
    %1137 = vmatprep.mubr.f32.mxu0 0.0
    %1138 = vmatmul.mubr.f32.gmra.mrb[0].mxu0 %v298
    %v1139 = vpop.f32.mrb[0].mxu0
    %v1140 = vadd.f32 %v282, %v1139
    %v1141 = vpop.f32.mrb[0].mxu0
    %1142 = vmatprep.mubr.f32.mxu0 0.0
    %1143 = vmatmul.mubr.f32.gmra.mrb[0].mxu0 %v301
    %v1144 = vpop.f32.mrb[0].mxu0
    %v1145 = vadd.f32 %v282, %v1144
    %v1146 = vpop.f32.mrb[0].mxu0
    %1147 = vmatprep.mubr.f32.mxu0 0.0
    %1148 = vmatmul.mubr.f32.gmra.mrb[0].mxu0 %v304
    %v1149 = vpop.f32.mrb[0].mxu0
    %v1150 = vadd.f32 %v282, %v1149
    %v1151 = vpop.f32.mrb[0].mxu0
    %1152 = vmatprep.mubr.f32.mxu0 0.0
    %1153 = vmatmul.mubr.f32.gmra.mrb[0].mxu0 %v307
    %v1154 = vpop.f32.mrb[0].mxu0
    %v1155 = vadd.f32 %v282, %v1154
    %v1156 = vpop.f32.mrb[0].mxu0
    %1157 = vmatprep.mubr.f32.mxu0 0.0
    %1158 = vmatmul.mubr.f32.gmra.mrb[0].mxu0 %v310
    %v1159 = vpop.f32.mrb[0].mxu0
    %v1160 = vadd.f32 %v282, %v1159
    %v1161 = vpop.f32.mrb[0].mxu0
    %1162 = vmatprep.mubr.f32.mxu0 0.0
    %1163 = vmatmul.mubr.f32.gmra.mrb[0].mxu0 %v313
    %v1164 = vpop.f32.mrb[0].mxu0
    %v1165 = vadd.f32 %v282, %v1164
    %v1166 = vpop.f32.mrb[0].mxu0
    %1167 = vmatprep.mubr.f32.mxu0 0.0
    %1168 = vmatmul.mubr.f32.gmra.mrb[0].mxu0 %v316
    %v1169 = vpop.f32.mrb[0].mxu0
    %v1170 = vadd.f32 %v282, %v1169
    %v1171 = vpop.f32.mrb[0].mxu0
    %1172 = vmatprep.mubr.f32.mxu0 0.0
    %1173 = vmatmul.mubr.f32.gmra.mrb[0].mxu0 %v319
    %v1174 = vpop.f32.mrb[0].mxu0
    %v1175 = vadd.f32 %v282, %v1174
    %v1176 = vpop.f32.mrb[0].mxu0
    %1177 = vmatprep.mubr.f32.mxu0 0.0
    %1178 = vmatmul.mubr.f32.gmra.mrb[0].mxu0 %v322
    %v1179 = vpop.f32.mrb[0].mxu0
    %v1180 = vadd.f32 %v282, %v1179
    %v1181 = vpop.f32.mrb[0].mxu0
    %1182 = vmatprep.mubr.f32.mxu0 0.0
    %1183 = vmatmul.mubr.f32.gmra.mrb[0].mxu0 %v325
    %v1184 = vpop.f32.mrb[0].mxu0
    %v1185 = vadd.f32 %v282, %v1184
    %v1186 = vpop.f32.mrb[0].mxu0
    %1187 = vmatprep.mubr.f32.mxu0 0.0
    %1188 = vmatmul.mubr.f32.gmra.mrb[0].mxu0 %v328
    %v1189 = vpop.f32.mrb[0].mxu0
    %v1190 = vadd.f32 %v282, %v1189
    %v1191 = vpop.f32.mrb[0].mxu0
    %1192 = vmatprep.mubr.f32.mxu0 0.0
    %1193 = vmatmul.mubr.f32.gmra.mrb[0].mxu0 %v331
    %v1194 = vpop.f32.mrb[0].mxu0
    %v1195 = vadd.f32 %v282, %v1194
    %v1196 = vpop.f32.mrb[0].mxu0
    %1197 = vmatprep.mubr.f32.mxu0 0.0
    %1198 = vmatmul.mubr.f32.gmra.mrb[0].mxu0 %v334
    %v1199 = vpop.f32.mrb[0].mxu0
    %v1200 = vadd.f32 %v282, %v1199
    %v1201 = vpop.f32.mrb[0].mxu0
    %1202 = vmatprep.mubr.f32.mxu0 0.0
    %1203 = vmatmul.mubr.f32.gmra.mrb[0].mxu0 %v337
    %v1204 = vpop.f32.mrb[0].mxu0
    %v1205 = vadd.f32 %v282, %v1204
    %v1206 = vpop.f32.mrb[0].mxu0
    %1207 = vmatprep.mubr.f32.mxu0 0.0
    %1208 = vmatmul.mubr.f32.gmra.mrb[0].mxu0 %v340
    %v1209 = vpop.f32.mrb[0].mxu0
    %v1210 = vadd.f32 %v282, %v1209
    %v1211 = vpop.f32.mrb[0].mxu0
    %1212 = vmatprep.mubr.f32.mxu0 0.0
    %1213 = vmatmul.mubr.f32.gmra.mrb[0].mxu0 %v343
    %v1214 = vpop.f32.mrb[0].mxu0
    %v1215 = vadd.f32 %v282, %v1214
    %v1216 = vpop.f32.mrb[0].mxu0
    %1217 = vmatprep.mubr.f32.mxu0 0.0
    %1218 = vmatmul.mubr.f32.gmra.mrb[0].mxu0 %v346
    %v1219 = vpop.f32.mrb[0].mxu0
    %v1220 = vadd.f32 %v282, %v1219
    %v1221 = vpop.f32.mrb[0].mxu0
    %1222 = vmatprep.mubr.f32.mxu0 0.0
    %1223 = vmatmul.mubr.f32.gmra.mrb[0].mxu0 %v349
    %v1224 = vpop.f32.mrb[0].mxu0
    %v1225 = vadd.f32 %v282, %v1224
    %v1226 = vpop.f32.mrb[0].mxu0
    %1227 = vmatprep.mubr.f32.mxu0 0.0
    %1228 = vmatmul.mubr.f32.gmra.mrb[0].mxu0 %v352
    %v1229 = vpop.f32.mrb[0].mxu0
    %v1230 = vadd.f32 %v282, %v1229
    %v1231 = vpop.f32.mrb[0].mxu0
    %1232 = vmatprep.mubr.f32.mxu0 0.0
    %1233 = vmatmul.mubr.f32.gmra.mrb[0].mxu0 %v355
    %v1234 = vpop.f32.mrb[0].mxu0
    %v1235 = vadd.f32 %v282, %v1234
    %v1236 = vpop.f32.mrb[0].mxu0
    %1237 = vmatprep.mubr.f32.mxu0 0.0
    %1238 = vmatmul.mubr.f32.gmra.mrb[0].mxu0 %v358
    %v1239 = vpop.f32.mrb[0].mxu0
    %v1240 = vadd.f32 %v282, %v1239
    %v1241 = vpop.f32.mrb[0].mxu0
    %1242 = vmatprep.mubr.f32.mxu0 0.0
    %1243 = vmatmul.mubr.f32.gmra.mrb[0].mxu0 %v361
    %v1244 = vpop.f32.mrb[0].mxu0
    %v1245 = vadd.f32 %v282, %v1244
    %v1246 = vpop.f32.mrb[0].mxu0
    %1247 = vmatprep.mubr.f32.mxu0 0.0
    %1248 = vmatmul.mubr.f32.gmra.mrb[0].mxu0 %v364
    %v1249 = vpop.f32.mrb[0].mxu0
    %v1250 = vadd.f32 %v282, %v1249
    %v1251 = vpop.f32.mrb[0].mxu0
    %1252 = vmatprep.mubr.f32.mxu0 0.0
    %1253 = vmatmul.mubr.f32.gmra.mrb[0].mxu0 %v367
    %v1254 = vpop.f32.mrb[0].mxu0
    %v1255 = vadd.f32 %v282, %v1254
    %v1256 = vpop.f32.mrb[0].mxu0
    %1257 = vmatprep.mubr.f32.mxu0 0.0
    %1258 = vmatmul.mubr.f32.gmra.mrb[0].mxu0 %v370
    %v1259 = vpop.f32.mrb[0].mxu0
    %v1260 = vadd.f32 %v282, %v1259
    %v1261 = vpop.f32.mrb[0].mxu0
    %1262 = vmatprep.mubr.f32.mxu0 0.0
    %1263 = vmatmul.mubr.f32.gmra.mrb[0].mxu0 %v373
    %v1264 = vpop.f32.mrb[0].mxu0
    %v1265 = vadd.f32 %v282, %v1264
    %v1266 = vpop.f32.mrb[0].mxu0
    %1267 = vmatprep.mubr.f32.mxu0 0.0
    %1268 = vmatmul.mubr.f32.gmra.mrb[0].mxu0 %v376
    %v1269 = vpop.f32.mrb[0].mxu0
    %v1270 = vadd.f32 %v282, %v1269
    %v1271 = vpop.f32.mrb[0].mxu0
    %1272 = vmatprep.mubr.f32.mxu0 0.0
    %1273 = vmatmul.mubr.f32.gmra.mrb[0].mxu0 %v379
    %v1274 = vpop.f32.mrb[0].mxu0
    %v1275 = vadd.f32 %v282, %v1274
    %v1276 = vpop.f32.mrb[0].mxu0
    %1277 = vmatprep.mubr.f32.mxu0 0.0
    %1278 = vmatmul.mubr.f32.gmra.mrb[0].mxu0 %v382
    %v1279 = vpop.f32.mrb[0].mxu0
    %v1280 = vadd.f32 %v282, %v1279
    %v1281 = vpop.f32.mrb[0].mxu0
    %1282 = vmatprep.mubr.f32.mxu0 0.0
    %1283 = vmatmul.mubr.f32.gmra.mrb[0].mxu0 %v385
    %v1284 = vpop.f32.mrb[0].mxu0
    %v1285 = vadd.f32 %v282, %v1284
    %v1286 = vpop.f32.mrb[0].mxu0
    %1287 = vmatprep.mubr.f32.mxu0 0.0
    %1288 = vmatmul.mubr.f32.gmra.mrb[0].mxu0 %v388
    %v1289 = vpop.f32.mrb[0].mxu0
    %v1290 = vadd.f32 %v282, %v1289
    %v1291 = vpop.f32.mrb[0].mxu0
    %1292 = vmatprep.mubr.f32.mxu0 0.0
    %1293 = vmatmul.mubr.f32.gmra.mrb[0].mxu0 %v391
    %v1294 = vpop.f32.mrb[0].mxu0
    %v1295 = vadd.f32 %v282, %v1294
    %v1296 = vpop.f32.mrb[0].mxu0
    %1297 = vmatprep.mubr.f32.mxu0 0.0
    %1298 = vmatmul.mubr.f32.gmra.mrb[0].mxu0 %v394
    %v1299 = vpop.f32.mrb[0].mxu0
    %v1300 = vadd.f32 %v282, %v1299
    %v1301 = vpop.f32.mrb[0].mxu0
    %1302 = vmatprep.mubr.f32.mxu0 0.0
    %1303 = vmatmul.mubr.f32.gmra.mrb[0].mxu0 %v397
    %v1304 = vpop.f32.mrb[0].mxu0
    %v1305 = vadd.f32 %v282, %v1304
    %v1306 = vpop.f32.mrb[0].mxu0
    %1307 = vmatprep.mubr.f32.mxu0 0.0
    %1308 = vmatmul.mubr.f32.gmra.mrb[0].mxu0 %v400
    %v1309 = vpop.f32.mrb[0].mxu0
    %v1310 = vadd.f32 %v282, %v1309
    %v1311 = vpop.f32.mrb[0].mxu0
    %1312 = vmatprep.mubr.f32.mxu0 0.0
    %1313 = vmatmul.mubr.f32.gmra.mrb[0].mxu0 %v403
    %v1314 = vpop.f32.mrb[0].mxu0
    %v1315 = vadd.f32 %v282, %v1314
    %v1316 = vpop.f32.mrb[0].mxu0
    %1317 = vmatprep.mubr.f32.mxu0 0.0
    %1318 = vmatmul.mubr.f32.gmra.mrb[0].mxu0 %v406
    %v1319 = vpop.f32.mrb[0].mxu0
    %v1320 = vadd.f32 %v282, %v1319
    %v1321 = vpop.f32.mrb[0].mxu0
    %1322 = vmatprep.mubr.f32.mxu0 0.0
    %1323 = vmatmul.mubr.f32.gmra.mrb[0].mxu0 %v409
    %v1324 = vpop.f32.mrb[0].mxu0
    %v1325 = vadd.f32 %v282, %v1324
    %v1326 = vpop.f32.mrb[0].mxu0
    %1327 = vmatprep.mubr.f32.mxu0 0.0
    %1328 = vmatmul.mubr.f32.gmra.mrb[0].mxu0 %v412
    %v1329 = vpop.f32.mrb[0].mxu0
    %v1330 = vadd.f32 %v282, %v1329
    %v1331 = vpop.f32.mrb[0].mxu0
    %1332 = vmatprep.mubr.f32.mxu0 0.0
    %1333 = vmatmul.mubr.f32.gmra.mrb[0].mxu0 %v415
    %v1334 = vpop.f32.mrb[0].mxu0
    %v1335 = vadd.f32 %v282, %v1334
    %v1336 = vpop.f32.mrb[0].mxu0
    %1337 = vmatprep.mubr.f32.mxu0 0.0
    %1338 = vmatmul.mubr.f32.gmra.mrb[0].mxu0 %v418
    %v1339 = vpop.f32.mrb[0].mxu0
    %v1340 = vadd.f32 %v282, %v1339
    %v1341 = vpop.f32.mrb[0].mxu0
    %1342 = vmatprep.mubr.f32.mxu0 0.0
    %1343 = vmatmul.mubr.f32.gmra.mrb[0].mxu0 %v421
    %v1344 = vpop.f32.mrb[0].mxu0
    %v1345 = vadd.f32 %v282, %v1344
    %v1346 = vpop.f32.mrb[0].mxu0
    %1347 = vmatprep.mubr.f32.mxu0 0.0
    %1348 = vmatmul.mubr.f32.gmra.mrb[0].mxu0 %v424
    %v1349 = vpop.f32.mrb[0].mxu0
    %v1350 = vadd.f32 %v282, %v1349
    %v1351 = vpop.f32.mrb[0].mxu0
    %1352 = vmatprep.mubr.f32.mxu0 0.0
    %1353 = vmatmul.mubr.f32.gmra.mrb[0].mxu0 %v427
    %v1354 = vpop.f32.mrb[0].mxu0
    %v1355 = vadd.f32 %v282, %v1354
    %v1356 = vpop.f32.mrb[0].mxu0
    %1357 = vmatprep.mubr.f32.mxu0 0.0
    %1358 = vmatmul.mubr.f32.gmra.mrb[0].mxu0 %v430
    %v1359 = vpop.f32.mrb[0].mxu0
    %v1360 = vadd.f32 %v282, %v1359
    %v1361 = vpop.f32.mrb[0].mxu0
    %1362 = vmatprep.mubr.f32.mxu0 0.0
    %1363 = vmatmul.mubr.f32.gmra.mrb[0].mxu0 %v433
    %v1364 = vpop.f32.mrb[0].mxu0
    %v1365 = vadd.f32 %v282, %v1364
    %v1366 = vpop.f32.mrb[0].mxu0
    %1367 = vmatprep.mubr.f32.mxu0 0.0
    %1368 = vmatmul.mubr.f32.gmra.mrb[0].mxu0 %v436
    %v1369 = vpop.f32.mrb[0].mxu0
    %v1370 = vadd.f32 %v282, %v1369
    %v1371 = vpop.f32.mrb[0].mxu0
    %1372 = vmatprep.mubr.f32.mxu0 0.0
    %1373 = vmatmul.mubr.f32.gmra.mrb[0].mxu0 %v439
    %v1374 = vpop.f32.mrb[0].mxu0
    %v1375 = vadd.f32 %v282, %v1374
    %v1376 = vpop.f32.mrb[0].mxu0
    %1377 = vmatprep.mubr.f32.mxu0 0.0
    %1378 = vmatmul.mubr.f32.gmra.mrb[0].mxu0 %v442
    %v1379 = vpop.f32.mrb[0].mxu0
    %v1380 = vadd.f32 %v282, %v1379
    %v1381 = vpop.f32.mrb[0].mxu0
    %1382 = vmatprep.mubr.f32.mxu0 0.0
    %1383 = vmatmul.mubr.f32.gmra.mrb[0].mxu0 %v445
    %v1384 = vpop.f32.mrb[0].mxu0
    %v1385 = vadd.f32 %v282, %v1384
    %v1386 = vpop.f32.mrb[0].mxu0
    %1387 = vmatprep.mubr.f32.mxu0 0.0
    %1388 = vmatmul.mubr.f32.gmra.mrb[0].mxu0 %v448
    %v1389 = vpop.f32.mrb[0].mxu0
    %v1390 = vadd.f32 %v282, %v1389
    %v1391 = vpop.f32.mrb[0].mxu0
    %1392 = vmatprep.mubr.f32.mxu0 0.0
    %1393 = vmatmul.mubr.f32.gmra.mrb[0].mxu0 %v451
    %v1394 = vpop.f32.mrb[0].mxu0
    %v1395 = vadd.f32 %v282, %v1394
    %v1396 = vpop.f32.mrb[0].mxu0
    %1397 = vmatprep.mubr.f32.mxu0 0.0
    %1398 = vmatmul.mubr.f32.gmra.mrb[0].mxu0 %v454
    %v1399 = vpop.f32.mrb[0].mxu0
    %v1400 = vadd.f32 %v282, %v1399
    %v1401 = vpop.f32.mrb[0].mxu0
    %1402 = vmatprep.mubr.f32.mxu0 0.0
    %1403 = vmatmul.mubr.f32.gmra.mrb[0].mxu0 %v457
    %v1404 = vpop.f32.mrb[0].mxu0
    %v1405 = vadd.f32 %v282, %v1404
    %v1406 = vpop.f32.mrb[0].mxu0
    %1407 = vmatprep.mubr.f32.mxu0 0.0
    %1408 = vmatmul.mubr.f32.gmra.mrb[0].mxu0 %v460
    %v1409 = vpop.f32.mrb[0].mxu0
    %v1410 = vadd.f32 %v282, %v1409
    %v1411 = vpop.f32.mrb[0].mxu0
    %1412 = vmatprep.mubr.f32.mxu0 0.0
    %1413 = vmatmul.mubr.f32.gmra.mrb[0].mxu0 %v463
    %v1414 = vpop.f32.mrb[0].mxu0
    %v1415 = vadd.f32 %v282, %v1414
    %v1416 = vpop.f32.mrb[0].mxu0
    %1417 = vmatprep.mubr.f32.mxu0 0.0
    %1418 = vmatmul.mubr.f32.gmra.mrb[0].mxu0 %v466
    %v1419 = vpop.f32.mrb[0].mxu0
    %v1420 = vadd.f32 %v282, %v1419
    %v1421 = vpop.f32.mrb[0].mxu0
    %1422 = vmatprep.mubr.f32.mxu0 0.0
    %1423 = vmatmul.mubr.f32.gmra.mrb[0].mxu0 %v469
    %v1424 = vpop.f32.mrb[0].mxu0
    %v1425 = vadd.f32 %v282, %v1424
    %v1426 = vpop.f32.mrb[0].mxu0
    %1427 = vmatprep.mubr.f32.mxu0 0.0
    %1428 = vmatmul.mubr.f32.gmra.mrb[0].mxu0 %v472
    %v1429 = vpop.f32.mrb[0].mxu0
    %v1430 = vadd.f32 %v282, %v1429
    %v1431 = vpop.f32.mrb[0].mxu0
    %1432 = vmatprep.mubr.f32.mxu0 0.0
    %1433 = vmatmul.mubr.f32.gmra.mrb[0].mxu0 %v475
    %v1434 = vpop.f32.mrb[0].mxu0
    %v1435 = vadd.f32 %v282, %v1434
    %v1436 = vpop.f32.mrb[0].mxu0
    %1437 = vmatprep.mubr.f32.mxu0 0.0
    %1438 = vmatmul.mubr.f32.gmra.mrb[0].mxu0 %v478
    %v1439 = vpop.f32.mrb[0].mxu0
    %v1440 = vadd.f32 %v282, %v1439
    %v1441 = vpop.f32.mrb[0].mxu0
    %1442 = vmatprep.mubr.f32.mxu0 0.0
    %1443 = vmatmul.mubr.f32.gmra.mrb[0].mxu0 %v481
    %v1444 = vpop.f32.mrb[0].mxu0
    %v1445 = vadd.f32 %v282, %v1444
    %v1446 = vpop.f32.mrb[0].mxu0
    %1447 = vmatprep.mubr.f32.mxu0 0.0
    %1448 = vmatmul.mubr.f32.gmra.mrb[0].mxu0 %v484
    %v1449 = vpop.f32.mrb[0].mxu0
    %v1450 = vadd.f32 %v282, %v1449
    %v1451 = vpop.f32.mrb[0].mxu0
    %1452 = vmatprep.mubr.f32.mxu0 0.0
    %1453 = vmatmul.mubr.f32.gmra.mrb[0].mxu0 %v487
    %v1454 = vpop.f32.mrb[0].mxu0
    %v1455 = vadd.f32 %v282, %v1454
    %v1456 = vpop.f32.mrb[0].mxu0
    %1457 = vmatprep.mubr.f32.mxu0 0.0
    %1458 = vmatmul.mubr.f32.gmra.mrb[0].mxu0 %v490
    %v1459 = vpop.f32.mrb[0].mxu0
    %v1460 = vadd.f32 %v282, %v1459
    %v1461 = vpop.f32.mrb[0].mxu0
    %1462 = vmatprep.mubr.f32.mxu0 0.0
    %1463 = vmatmul.mubr.f32.gmra.mrb[0].mxu0 %v493
    %v1464 = vpop.f32.mrb[0].mxu0
    %v1465 = vadd.f32 %v282, %v1464
    %v1466 = vpop.f32.mrb[0].mxu0
    %1467 = vmatprep.mubr.f32.mxu0 0.0
    %1468 = vmatmul.mubr.f32.gmra.mrb[0].mxu0 %v496
    %v1469 = vpop.f32.mrb[0].mxu0
    %v1470 = vadd.f32 %v282, %v1469
    %v1471 = vpop.f32.mrb[0].mxu0
    %1472 = vmatprep.mubr.f32.mxu0 0.0
    %1473 = vmatmul.mubr.f32.gmra.mrb[0].mxu0 %v499
    %v1474 = vpop.f32.mrb[0].mxu0
    %v1475 = vadd.f32 %v282, %v1474
    %v1476 = vpop.f32.mrb[0].mxu0
    %1477 = vmatprep.mubr.f32.mxu0 0.0
    %1478 = vmatmul.mubr.f32.gmra.mrb[0].mxu0 %v502
    %v1479 = vpop.f32.mrb[0].mxu0
    %v1480 = vadd.f32 %v282, %v1479
    %v1481 = vpop.f32.mrb[0].mxu0
    %1482 = vmatprep.mubr.f32.mxu0 0.0
    %1483 = vmatmul.mubr.f32.gmra.mrb[0].mxu0 %v505
    %v1484 = vpop.f32.mrb[0].mxu0
    %v1485 = vadd.f32 %v282, %v1484
    %v1486 = vpop.f32.mrb[0].mxu0
    %1487 = vmatprep.mubr.f32.mxu0 0.0
    %1488 = vmatmul.mubr.f32.gmra.mrb[0].mxu0 %v508
    %v1489 = vpop.f32.mrb[0].mxu0
    %v1490 = vadd.f32 %v282, %v1489
    %v1491 = vpop.f32.mrb[0].mxu0
    %1492 = vmatprep.mubr.f32.mxu0 0.0
    %1493 = vmatmul.mubr.f32.gmra.mrb[0].mxu0 %v511
    %v1494 = vpop.f32.mrb[0].mxu0
    %v1495 = vadd.f32 %v282, %v1494
    %v1496 = vpop.f32.mrb[0].mxu0
    %1497 = vmatprep.mubr.f32.mxu0 0.0
    %1498 = vmatmul.mubr.f32.gmra.mrb[0].mxu0 %v514
    %v1499 = vpop.f32.mrb[0].mxu0
    %v1500 = vadd.f32 %v282, %v1499
    %v1501 = vpop.f32.mrb[0].mxu0
    %1502 = vmatprep.mubr.f32.mxu0 0.0
    %1503 = vmatmul.mubr.f32.gmra.mrb[0].mxu0 %v517
    %v1504 = vpop.f32.mrb[0].mxu0
    %v1505 = vadd.f32 %v282, %v1504
    %v1506 = vpop.f32.mrb[0].mxu0
    %1507 = vmatprep.mubr.f32.mxu0 0.0
    %1508 = vmatmul.mubr.f32.gmra.mrb[0].mxu0 %v520
    %v1509 = vpop.f32.mrb[0].mxu0
    %v1510 = vadd.f32 %v282, %v1509
    %v1511 = vpop.f32.mrb[0].mxu0
    %1512 = vmatprep.mubr.f32.mxu0 0.0
    %1513 = vmatmul.mubr.f32.gmra.mrb[0].mxu0 %v523
    %v1514 = vpop.f32.mrb[0].mxu0
    %v1515 = vadd.f32 %v282, %v1514
    %v1516 = vpop.f32.mrb[0].mxu0
    %1517 = vmatprep.mubr.f32.mxu0 0.0
    %1518 = vmatmul.mubr.f32.gmra.mrb[0].mxu0 %v526
    %v1519 = vpop.f32.mrb[0].mxu0
    %v1520 = vadd.f32 %v282, %v1519
    %v1521 = vpop.f32.mrb[0].mxu0
    %1522 = vmatprep.mubr.f32.mxu0 0.0
    %1523 = vmatmul.mubr.f32.gmra.mrb[0].mxu0 %v529
    %v1524 = vpop.f32.mrb[0].mxu0
    %v1525 = vadd.f32 %v282, %v1524
    %v1526 = vpop.f32.mrb[0].mxu0
    %1527 = vmatprep.mubr.f32.mxu0 0.0
    %1528 = vmatmul.mubr.f32.gmra.mrb[0].mxu0 %v532
    %v1529 = vpop.f32.mrb[0].mxu0
    %v1530 = vadd.f32 %v282, %v1529
    %v1531 = vpop.f32.mrb[0].mxu0
    %1532 = vmatprep.mubr.f32.mxu0 0.0
    %1533 = vmatmul.mubr.f32.gmra.mrb[0].mxu0 %v535
    %v1534 = vpop.f32.mrb[0].mxu0
    %v1535 = vadd.f32 %v282, %v1534
    %v1536 = vpop.f32.mrb[0].mxu0
    %1537 = vmatprep.mubr.f32.mxu0 0.0
    %1538 = vmatmul.mubr.f32.gmra.mrb[0].mxu0 %v538
    %v1539 = vpop.f32.mrb[0].mxu0
    %v1540 = vadd.f32 %v282, %v1539
    %v1541 = vpop.f32.mrb[0].mxu0
    %1542 = vmatprep.mubr.f32.mxu0 0.0
    %1543 = vmatmul.mubr.f32.gmra.mrb[0].mxu0 %v541
    %v1544 = vpop.f32.mrb[0].mxu0
    %v1545 = vadd.f32 %v282, %v1544
    %v1546 = vpop.f32.mrb[0].mxu0
    %1547 = vmatprep.mubr.f32.mxu0 0.0
    %1548 = vmatmul.mubr.f32.gmra.mrb[0].mxu0 %v544
    %v1549 = vpop.f32.mrb[0].mxu0
    %v1550 = vadd.f32 %v282, %v1549
    %v1551 = vpop.f32.mrb[0].mxu0
    %1552 = vmatprep.mubr.f32.mxu0 0.0
    %1553 = vmatmul.mubr.f32.gmra.mrb[0].mxu0 %v547
    %v1554 = vpop.f32.mrb[0].mxu0
    %v1555 = vadd.f32 %v282, %v1554
    %v1556 = vpop.f32.mrb[0].mxu0
    %1557 = vmatprep.mubr.f32.mxu0 0.0
    %1558 = vmatmul.mubr.f32.gmra.mrb[0].mxu0 %v550
    %v1559 = vpop.f32.mrb[0].mxu0
    %v1560 = vadd.f32 %v282, %v1559
    %v1561 = vpop.f32.mrb[0].mxu0
    %1562 = vmatprep.mubr.f32.mxu0 0.0
    %1563 = vmatmul.mubr.f32.gmra.mrb[0].mxu0 %v553
    %v1564 = vpop.f32.mrb[0].mxu0
    %v1565 = vadd.f32 %v282, %v1564
    %v1566 = vpop.f32.mrb[0].mxu0
    %1567 = vmatprep.mubr.f32.mxu0 0.0
    %1568 = vmatmul.mubr.f32.gmra.mrb[0].mxu0 %v556
    %v1569 = vpop.f32.mrb[0].mxu0
    %v1570 = vadd.f32 %v282, %v1569
    %v1571 = vpop.f32.mrb[0].mxu0
    %1572 = vmatprep.mubr.f32.mxu0 0.0
    %1573 = vmatmul.mubr.f32.gmra.mrb[0].mxu0 %v559
    %v1574 = vpop.f32.mrb[0].mxu0
    %v1575 = vadd.f32 %v282, %v1574
    %v1576 = vpop.f32.mrb[0].mxu0
    %1577 = vmatprep.mubr.f32.mxu0 0.0
    %1578 = vmatmul.mubr.f32.gmra.mrb[0].mxu0 %v562
    %v1579 = vpop.f32.mrb[0].mxu0
    %v1580 = vadd.f32 %v282, %v1579
    %v1581 = vpop.f32.mrb[0].mxu0
    %1582 = vmatprep.mubr.f32.mxu0 0.0
    %1583 = vmatmul.mubr.f32.gmra.mrb[0].mxu0 %v565
    %v1584 = vpop.f32.mrb[0].mxu0
    %v1585 = vadd.f32 %v282, %v1584
    %v1586 = vpop.f32.mrb[0].mxu0
    %1587 = vmatprep.mubr.f32.mxu0 0.0
    %1588 = vmatmul.mubr.f32.gmra.mrb[0].mxu0 %v568
    %v1589 = vpop.f32.mrb[0].mxu0
    %v1590 = vadd.f32 %v282, %v1589
    %v1591 = vpop.f32.mrb[0].mxu0
    %1592 = vmatprep.mubr.f32.mxu0 0.0
    %1593 = vmatmul.mubr.f32.gmra.mrb[0].mxu0 %v571
    %v1594 = vpop.f32.mrb[0].mxu0
    %v1595 = vadd.f32 %v282, %v1594
    %v1596 = vpop.f32.mrb[0].mxu0
    %1597 = vmatprep.mubr.f32.mxu0 0.0
    %1598 = vmatmul.mubr.f32.gmra.mrb[0].mxu0 %v574
    %v1599 = vpop.f32.mrb[0].mxu0
    %v1600 = vadd.f32 %v282, %v1599
    %v1601 = vpop.f32.mrb[0].mxu0
    %1602 = vmatprep.mubr.f32.mxu0 0.0
    %1603 = vmatmul.mubr.f32.gmra.mrb[0].mxu0 %v577
    %v1604 = vpop.f32.mrb[0].mxu0
    %v1605 = vadd.f32 %v282, %v1604
    %v1606 = vpop.f32.mrb[0].mxu0
    %1607 = vmatprep.mubr.f32.mxu0 0.0
    %1608 = vmatmul.mubr.f32.gmra.mrb[0].mxu0 %v580
    %v1609 = vpop.f32.mrb[0].mxu0
    %v1610 = vadd.f32 %v282, %v1609
    %v1611 = vpop.f32.mrb[0].mxu0
    %1612 = vmatprep.mubr.f32.mxu0 0.0
    %1613 = vmatmul.mubr.f32.gmra.mrb[0].mxu0 %v583
    %v1614 = vpop.f32.mrb[0].mxu0
    %v1615 = vadd.f32 %v282, %v1614
    %v1616 = vpop.f32.mrb[0].mxu0
    %1617 = vmatprep.mubr.f32.mxu0 0.0
    %1618 = vmatmul.mubr.f32.gmra.mrb[0].mxu0 %v586
    %v1619 = vpop.f32.mrb[0].mxu0
    %v1620 = vadd.f32 %v282, %v1619
    %v1621 = vpop.f32.mrb[0].mxu0
    %1622 = vmatprep.mubr.f32.mxu0 0.0
    %1623 = vmatmul.mubr.f32.gmra.mrb[0].mxu0 %v589
    %v1624 = vpop.f32.mrb[0].mxu0
    %v1625 = vadd.f32 %v282, %v1624
    %v1626 = vpop.f32.mrb[0].mxu0
    %1627 = vmatprep.mubr.f32.mxu0 0.0
    %1628 = vmatmul.mubr.f32.gmra.mrb[0].mxu0 %v592
    %v1629 = vpop.f32.mrb[0].mxu0
    %v1630 = vadd.f32 %v282, %v1629
    %v1631 = vpop.f32.mrb[0].mxu0
    %1632 = vmatprep.mubr.f32.mxu0 0.0
    %1633 = vmatmul.mubr.f32.gmra.mrb[0].mxu0 %v595
    %v1634 = vpop.f32.mrb[0].mxu0
    %v1635 = vadd.f32 %v282, %v1634
    %v1636 = vpop.f32.mrb[0].mxu0
    %1637 = vmatprep.mubr.f32.mxu0 0.0
    %1638 = vmatmul.mubr.f32.gmra.mrb[0].mxu0 %v598
    %v1639 = vpop.f32.mrb[0].mxu0
    %v1640 = vadd.f32 %v282, %v1639
    %v1641 = vpop.f32.mrb[0].mxu0
    %1642 = vmatprep.mubr.f32.mxu0 0.0
    %1643 = vmatmul.mubr.f32.gmra.mrb[0].mxu0 %v601
    %v1644 = vpop.f32.mrb[0].mxu0
    %v1645 = vadd.f32 %v282, %v1644
    %v1646 = vpop.f32.mrb[0].mxu0
    %1647 = vmatprep.mubr.f32.mxu0 0.0
    %1648 = vmatmul.mubr.f32.gmra.mrb[0].mxu0 %v604
    %v1649 = vpop.f32.mrb[0].mxu0
    %v1650 = vadd.f32 %v282, %v1649
    %v1651 = vpop.f32.mrb[0].mxu0
    %1652 = vmatprep.mubr.f32.mxu0 0.0
    %1653 = vmatmul.mubr.f32.gmra.mrb[0].mxu0 %v607
    %v1654 = vpop.f32.mrb[0].mxu0
    %v1655 = vadd.f32 %v282, %v1654
    %v1656 = vpop.f32.mrb[0].mxu0
    %1657 = vmatprep.mubr.f32.mxu0 0.0
    %1658 = vmatmul.mubr.f32.gmra.mrb[0].mxu0 %v610
    %v1659 = vpop.f32.mrb[0].mxu0
    %v1660 = vadd.f32 %v282, %v1659
    %v1661 = vpop.f32.mrb[0].mxu0
    %1662 = vmatprep.mubr.f32.mxu0 0.0
    %1663 = vmatmul.mubr.f32.gmra.mrb[0].mxu0 %v613
    %v1664 = vpop.f32.mrb[0].mxu0
    %v1665 = vadd.f32 %v282, %v1664
    %v1666 = vpop.f32.mrb[0].mxu0
    %1667 = vmatprep.mubr.f32.mxu0 0.0
    %1668 = vmatmul.mubr.f32.gmra.mrb[0].mxu0 %v616
    %v1669 = vpop.f32.mrb[0].mxu0
    %v1670 = vadd.f32 %v282, %v1669
    %v1671 = vpop.f32.mrb[0].mxu0
    %1672 = vmatprep.mubr.f32.mxu0 0.0
    %1673 = vmatmul.mubr.f32.gmra.mrb[0].mxu0 %v619
    %v1674 = vpop.f32.mrb[0].mxu0
    %v1675 = vadd.f32 %v282, %v1674
    %v1676 = vpop.f32.mrb[0].mxu0
    %1677 = vmatprep.mubr.f32.mxu0 0.0
    %1678 = vmatmul.mubr.f32.gmra.mrb[0].mxu0 %v622
    %v1679 = vpop.f32.mrb[0].mxu0
    %v1680 = vadd.f32 %v282, %v1679
    %v1681 = vpop.f32.mrb[0].mxu0
    %1682 = vmatprep.mubr.f32.mxu0 0.0
    %1683 = vmatmul.mubr.f32.gmra.mrb[0].mxu0 %v625
    %v1684 = vpop.f32.mrb[0].mxu0
    %v1685 = vadd.f32 %v282, %v1684
    %v1686 = vpop.f32.mrb[0].mxu0
    %1687 = vmatprep.mubr.f32.mxu0 0.0
    %1688 = vmatmul.mubr.f32.gmra.mrb[0].mxu0 %v628
    %v1689 = vpop.f32.mrb[0].mxu0
    %v1690 = vadd.f32 %v282, %v1689
    %v1691 = vpop.f32.mrb[0].mxu0
    %1692 = vmatprep.mubr.f32.mxu0 0.0
    %1693 = vmatmul.mubr.f32.gmra.mrb[0].mxu0 %v631
    %v1694 = vpop.f32.mrb[0].mxu0
    %v1695 = vadd.f32 %v282, %v1694
    %v1696 = vpop.f32.mrb[0].mxu0
    %1697 = vmatprep.mubr.f32.mxu0 0.0
    %1698 = vmatmul.mubr.f32.gmra.mrb[0].mxu0 %v634
    %v1699 = vpop.f32.mrb[0].mxu0
    %v1700 = vadd.f32 %v282, %v1699
    %v1701 = vpop.f32.mrb[0].mxu0
    %1702 = vmatprep.mubr.f32.mxu0 0.0
    %1703 = vmatmul.mubr.f32.gmra.mrb[0].mxu0 %v637
    %v1704 = vpop.f32.mrb[0].mxu0
    %v1705 = vadd.f32 %v282, %v1704
    %v1706 = vpop.f32.mrb[0].mxu0
    %1707 = vmatprep.mubr.f32.mxu0 0.0
    %1708 = vmatmul.mubr.f32.gmra.mrb[0].mxu0 %v640
    %v1709 = vpop.f32.mrb[0].mxu0
    %v1710 = vadd.f32 %v282, %v1709
    %v1711 = vpop.f32.mrb[0].mxu0
    %1712 = vmatprep.mubr.f32.mxu0 0.0
    %1713 = vmatmul.mubr.f32.gmra.mrb[0].mxu0 %v643
    %v1714 = vpop.f32.mrb[0].mxu0
    %v1715 = vadd.f32 %v282, %v1714
    %v1716 = vpop.f32.mrb[0].mxu0
    %1717 = vmatprep.mubr.f32.mxu0 0.0
    %1718 = vmatmul.mubr.f32.gmra.mrb[0].mxu0 %v646
    %v1719 = vpop.f32.mrb[0].mxu0
    %v1720 = vadd.f32 %v282, %v1719
    %v1721 = vpop.f32.mrb[0].mxu0
    %1722 = vmatprep.mubr.f32.mxu0 0.0
    %1723 = vmatmul.mubr.f32.gmra.mrb[0].mxu0 %v649
    %v1724 = vpop.f32.mrb[0].mxu0
    %v1725 = vadd.f32 %v282, %v1724
    %v1726 = vpop.f32.mrb[0].mxu0
    %1727 = vmatprep.mubr.f32.mxu0 0.0
    %1728 = vmatmul.mubr.f32.gmra.mrb[0].mxu0 %v652
    %v1729 = vpop.f32.mrb[0].mxu0
    %v1730 = vadd.f32 %v282, %v1729
    %v1731 = vpop.f32.mrb[0].mxu0
    %1732 = vmatprep.mubr.f32.mxu0 0.0
    %1733 = vmatmul.mubr.f32.gmra.mrb[0].mxu0 %v655
    %v1734 = vpop.f32.mrb[0].mxu0
    %v1735 = vadd.f32 %v282, %v1734
    %v1736 = vpop.f32.mrb[0].mxu0
    %1737 = vmatprep.mubr.f32.mxu0 0.0
    %1738 = vmatmul.mubr.f32.gmra.mrb[0].mxu0 %v658
    %v1739 = vpop.f32.mrb[0].mxu0
    %v1740 = vadd.f32 %v282, %v1739
    %v1741 = vpop.f32.mrb[0].mxu0
    %1742 = vmatprep.mubr.f32.mxu0 0.0
    %1743 = vmatmul.mubr.f32.gmra.mrb[0].mxu0 %v661
    %v1744 = vpop.f32.mrb[0].mxu0
    %v1745 = vadd.f32 %v282, %v1744
    %v1746 = vpop.f32.mrb[0].mxu0
    %1747 = vmatprep.mubr.f32.mxu0 0.0
    %1748 = vmatmul.mubr.f32.gmra.mrb[0].mxu0 %v664
    %v1749 = vpop.f32.mrb[0].mxu0
    %v1750 = vadd.f32 %v282, %v1749
    %v1751 = vpop.f32.mrb[0].mxu0
    %1752 = vmatprep.mubr.f32.mxu0 0.0
    %1753 = vmatmul.mubr.f32.gmra.mrb[0].mxu0 %v667
    %v1754 = vpop.f32.mrb[0].mxu0
    %v1755 = vadd.f32 %v282, %v1754
    %v1756 = vpop.f32.mrb[0].mxu0
    %1757 = vmatprep.mubr.f32.mxu0 0.0
    %1758 = vmatmul.mubr.f32.gmra.mrb[0].mxu0 %v670
    %v1759 = vpop.f32.mrb[0].mxu0
    %v1760 = vadd.f32 %v282, %v1759
    %v1761 = vpop.f32.mrb[0].mxu0
    %1762 = vmatprep.mubr.f32.mxu0 0.0
    %1763 = vmatmul.mubr.f32.gmra.mrb[0].mxu0 %v673
    %v1764 = vpop.f32.mrb[0].mxu0
    %v1765 = vadd.f32 %v282, %v1764
    %v1766 = vpop.f32.mrb[0].mxu0
    %1767 = vmatprep.mubr.f32.mxu0 0.0
    %1768 = vmatmul.mubr.f32.gmra.mrb[0].mxu0 %v676
    %v1769 = vpop.f32.mrb[0].mxu0
    %v1770 = vadd.f32 %v282, %v1769
    %v1771 = vpop.f32.mrb[0].mxu0
    %1772 = vmatprep.mubr.f32.mxu0 0.0
    %1773 = vmatmul.mubr.f32.gmra.mrb[0].mxu0 %v679
    %v1774 = vpop.f32.mrb[0].mxu0
    %v1775 = vadd.f32 %v282, %v1774
    %v1776 = vpop.f32.mrb[0].mxu0
    %1777 = vmatprep.mubr.f32.mxu0 0.0
    %1778 = vmatmul.mubr.f32.gmra.mrb[0].mxu0 %v682
    %v1779 = vpop.f32.mrb[0].mxu0
    %v1780 = vadd.f32 %v282, %v1779
    %v1781 = vpop.f32.mrb[0].mxu0
    %1782 = vmatprep.mubr.f32.mxu0 0.0
    %1783 = vmatmul.mubr.f32.gmra.mrb[0].mxu0 %v685
    %v1784 = vpop.f32.mrb[0].mxu0
    %v1785 = vadd.f32 %v282, %v1784
    %v1786 = vpop.f32.mrb[0].mxu0
    %1787 = vmatprep.mubr.f32.mxu0 0.0
    %1788 = vmatmul.mubr.f32.gmra.mrb[0].mxu0 %v688
    %v1789 = vpop.f32.mrb[0].mxu0
    %v1790 = vadd.f32 %v282, %v1789
    %v1791 = vpop.f32.mrb[0].mxu0
    %1792 = vmatprep.mubr.f32.mxu0 0.0
    %1793 = vmatmul.mubr.f32.gmra.mrb[0].mxu0 %v691
    %v1794 = vpop.f32.mrb[0].mxu0
    %v1795 = vadd.f32 %v282, %v1794
    %v1796 = vpop.f32.mrb[0].mxu0
    %1797 = vmatprep.mubr.f32.mxu0 0.0
    %1798 = vmatmul.mubr.f32.gmra.mrb[0].mxu0 %v694
    %v1799 = vpop.f32.mrb[0].mxu0
    %v1800 = vadd.f32 %v282, %v1799
    %v1801 = vpop.f32.mrb[0].mxu0
    %1802 = vmatprep.mubr.f32.mxu0 0.0
    %1803 = vmatmul.mubr.f32.gmra.mrb[0].mxu0 %v697
    %v1804 = vpop.f32.mrb[0].mxu0
    %v1805 = vadd.f32 %v282, %v1804
    %v1806 = vpop.f32.mrb[0].mxu0
    %1807 = vmatprep.mubr.f32.mxu0 0.0
    %1808 = vmatmul.mubr.f32.gmra.mrb[0].mxu0 %v700
    %v1809 = vpop.f32.mrb[0].mxu0
    %v1810 = vadd.f32 %v282, %v1809
    %v1811 = vpop.f32.mrb[0].mxu0
    %1812 = vmatprep.mubr.f32.mxu0 0.0
    %1813 = vmatmul.mubr.f32.gmra.mrb[0].mxu0 %v703
    %v1814 = vpop.f32.mrb[0].mxu0
    %v1815 = vadd.f32 %v282, %v1814
    %v1816 = vpop.f32.mrb[0].mxu0
    %1817 = vmatprep.mubr.f32.mxu0 0.0
    %1818 = vmatmul.mubr.f32.gmra.mrb[0].mxu0 %v706
    %v1819 = vpop.f32.mrb[0].mxu0
    %v1820 = vadd.f32 %v282, %v1819
    %v1821 = vpop.f32.mrb[0].mxu0
    %1822 = vmatprep.mubr.f32.mxu0 0.0
    %1823 = vmatmul.mubr.f32.gmra.mrb[0].mxu0 %v709
    %v1824 = vpop.f32.mrb[0].mxu0
    %v1825 = vadd.f32 %v282, %v1824
    %v1826 = vpop.f32.mrb[0].mxu0
    %1827 = vmatprep.mubr.f32.mxu0 0.0
    %1828 = vmatmul.mubr.f32.gmra.mrb[0].mxu0 %v712
    %v1829 = vpop.f32.mrb[0].mxu0
    %v1830 = vadd.f32 %v282, %v1829
    %v1831 = vpop.f32.mrb[0].mxu0
    %1832 = vmatprep.mubr.f32.mxu0 0.0
    %1833 = vmatmul.mubr.f32.gmra.mrb[0].mxu0 %v715
    %v1834 = vpop.f32.mrb[0].mxu0
    %v1835 = vadd.f32 %v282, %v1834
    %v1836 = vpop.f32.mrb[0].mxu0
    %1837 = vmatprep.mubr.f32.mxu0 0.0
    %1838 = vmatmul.mubr.f32.gmra.mrb[0].mxu0 %v718
    %v1839 = vpop.f32.mrb[0].mxu0
    %v1840 = vadd.f32 %v282, %v1839
    %v1841 = vpop.f32.mrb[0].mxu0
    %1842 = vmatprep.mubr.f32.mxu0 0.0
    %1843 = vmatmul.mubr.f32.gmra.mrb[0].mxu0 %v721
    %v1844 = vpop.f32.mrb[0].mxu0
    %v1845 = vadd.f32 %v282, %v1844
    %v1846 = vpop.f32.mrb[0].mxu0
    %1847 = vmatprep.mubr.f32.mxu0 0.0
    %1848 = vmatmul.mubr.f32.gmra.mrb[0].mxu0 %v724
    %v1849 = vpop.f32.mrb[0].mxu0
    %v1850 = vadd.f32 %v282, %v1849
    %v1851 = vpop.f32.mrb[0].mxu0
    %1852 = vmatprep.mubr.f32.mxu0 0.0
    %1853 = vmatmul.mubr.f32.gmra.mrb[0].mxu0 %v727
    %v1854 = vpop.f32.mrb[0].mxu0
    %v1855 = vadd.f32 %v282, %v1854
    %v1856 = vpop.f32.mrb[0].mxu0
    %1857 = vmatprep.mubr.f32.mxu0 0.0
    %1858 = vmatmul.mubr.f32.gmra.mrb[0].mxu0 %v730
    %v1859 = vpop.f32.mrb[0].mxu0
    %v1860 = vadd.f32 %v282, %v1859
    %v1861 = vpop.f32.mrb[0].mxu0
    %1862 = vmatprep.mubr.f32.mxu0 0.0
    %1863 = vmatmul.mubr.f32.gmra.mrb[0].mxu0 %v733
    %v1864 = vpop.f32.mrb[0].mxu0
    %v1865 = vadd.f32 %v282, %v1864
    %v1866 = vpop.f32.mrb[0].mxu0
    %1867 = vmatprep.mubr.f32.mxu0 0.0
    %1868 = vmatmul.mubr.f32.gmra.mrb[0].mxu0 %v736
    %v1869 = vpop.f32.mrb[0].mxu0
    %v1870 = vadd.f32 %v282, %v1869
    %v1871 = vpop.f32.mrb[0].mxu0
    %1872 = vmatprep.mubr.f32.mxu0 0.0
    %1873 = vmatmul.mubr.f32.gmra.mrb[0].mxu0 %v739
    %v1874 = vpop.f32.mrb[0].mxu0
    %v1875 = vadd.f32 %v282, %v1874
    %v1876 = vpop.f32.mrb[0].mxu0
    %1877 = vmatprep.mubr.f32.mxu0 0.0
    %1878 = vmatmul.mubr.f32.gmra.mrb[0].mxu0 %v742
    %v1879 = vpop.f32.mrb[0].mxu0
    %v1880 = vadd.f32 %v282, %v1879
    %v1881 = vpop.f32.mrb[0].mxu0
    %1882 = vmatprep.mubr.f32.mxu0 0.0
    %1883 = vmatmul.mubr.f32.gmra.mrb[0].mxu0 %v745
    %v1884 = vpop.f32.mrb[0].mxu0
    %v1885 = vadd.f32 %v282, %v1884
    %v1886 = vpop.f32.mrb[0].mxu0
    %1887 = vmatprep.mubr.f32.mxu0 0.0
    %1888 = vmatmul.mubr.f32.gmra.mrb[0].mxu0 %v748
    %v1889 = vpop.f32.mrb[0].mxu0
    %v1890 = vadd.f32 %v282, %v1889
    %v1891 = vpop.f32.mrb[0].mxu0
    %1892 = vmatprep.mubr.f32.mxu0 0.0
    %1893 = vmatmul.mubr.f32.gmra.mrb[0].mxu0 %v751
    %v1894 = vpop.f32.mrb[0].mxu0
    %v1895 = vadd.f32 %v282, %v1894
    %v1896 = vpop.f32.mrb[0].mxu0
    %1897 = vmatprep.mubr.f32.mxu0 0.0
    %1898 = vmatmul.mubr.f32.gmra.mrb[0].mxu0 %v754
    %v1899 = vpop.f32.mrb[0].mxu0
    %v1900 = vadd.f32 %v282, %v1899
    %v1901 = vpop.f32.mrb[0].mxu0
    %1902 = vmatprep.mubr.f32.mxu0 0.0
    %1903 = vmatmul.mubr.f32.gmra.mrb[0].mxu0 %v757
    %v1904 = vpop.f32.mrb[0].mxu0
    %v1905 = vadd.f32 %v282, %v1904
    %v1906 = vpop.f32.mrb[0].mxu0
    %1907 = vmatprep.mubr.f32.mxu0 0.0
    %1908 = vmatmul.mubr.f32.gmra.mrb[0].mxu0 %v760
    %v1909 = vpop.f32.mrb[0].mxu0
    %v1910 = vadd.f32 %v282, %v1909
    %v1911 = vpop.f32.mrb[0].mxu0
    %1912 = vmatprep.mubr.f32.mxu0 0.0
    %1913 = vmatmul.mubr.f32.gmra.mrb[0].mxu0 %v763
    %v1914 = vpop.f32.mrb[0].mxu0
    %v1915 = vadd.f32 %v282, %v1914
    %v1916 = vpop.f32.mrb[0].mxu0
    %1917 = vmatprep.mubr.f32.mxu0 0.0
    %1918 = vmatmul.mubr.f32.gmra.mrb[0].mxu0 %v766
    %v1919 = vpop.f32.mrb[0].mxu0
    %v1920 = vadd.f32 %v282, %v1919
    %v1921 = vpop.f32.mrb[0].mxu0
    %1922 = vmatprep.mubr.f32.mxu0 0.0
    %1923 = vmatmul.mubr.f32.gmra.mrb[0].mxu0 %v769
    %v1924 = vpop.f32.mrb[0].mxu0
    %v1925 = vadd.f32 %v282, %v1924
    %v1926 = vpop.f32.mrb[0].mxu0
    %1927 = vmatprep.mubr.f32.mxu0 0.0
    %1928 = vmatmul.mubr.f32.gmra.mrb[0].mxu0 %v772
    %v1929 = vpop.f32.mrb[0].mxu0
    %v1930 = vadd.f32 %v282, %v1929
    %v1931 = vpop.f32.mrb[0].mxu0
    %1932 = vmatprep.mubr.f32.mxu0 0.0
    %1933 = vmatmul.mubr.f32.gmra.mrb[0].mxu0 %v775
    %v1934 = vpop.f32.mrb[0].mxu0
    %v1935 = vadd.f32 %v282, %v1934
    %v1936 = vpop.f32.mrb[0].mxu0
    %1937 = vmatprep.mubr.f32.mxu0 0.0
    %1938 = vmatmul.mubr.f32.gmra.mrb[0].mxu0 %v778
    %v1939 = vpop.f32.mrb[0].mxu0
    %v1940 = vadd.f32 %v282, %v1939
    %v1941 = vpop.f32.mrb[0].mxu0
    %1942 = vmatprep.mubr.f32.mxu0 0.0
    %1943 = vmatmul.mubr.f32.gmra.mrb[0].mxu0 %v781
    %v1944 = vpop.f32.mrb[0].mxu0
    %v1945 = vadd.f32 %v282, %v1944
    %v1946 = vpop.f32.mrb[0].mxu0
    %1947 = vmatprep.mubr.f32.mxu0 0.0
    %1948 = vmatmul.mubr.f32.gmra.mrb[0].mxu0 %v784
    %v1949 = vpop.f32.mrb[0].mxu0
    %v1950 = vadd.f32 %v282, %v1949
    %v1951 = vpop.f32.mrb[0].mxu0
    %1952 = vmatprep.mubr.f32.mxu0 0.0
    %1953 = vmatmul.mubr.f32.gmra.mrb[0].mxu0 %v787
    %v1954 = vpop.f32.mrb[0].mxu0
    %v1955 = vadd.f32 %v282, %v1954
    %v1956 = vpop.f32.mrb[0].mxu0
    %1957 = vmatprep.mubr.f32.mxu0 0.0
    %1958 = vmatmul.mubr.f32.gmra.mrb[0].mxu0 %v790
    %v1959 = vpop.f32.mrb[0].mxu0
    %v1960 = vadd.f32 %v282, %v1959
    %v1961 = vpop.f32.mrb[0].mxu0
    %1962 = vmatprep.mubr.f32.mxu0 0.0
    %1963 = vmatmul.mubr.f32.gmra.mrb[0].mxu0 %v793
    %v1964 = vpop.f32.mrb[0].mxu0
    %v1965 = vadd.f32 %v282, %v1964
    %v1966 = vpop.f32.mrb[0].mxu0
    %1967 = vmatprep.mubr.f32.mxu0 0.0
    %1968 = vmatmul.mubr.f32.gmra.mrb[0].mxu0 %v796
    %v1969 = vpop.f32.mrb[0].mxu0
    %v1970 = vadd.f32 %v282, %v1969
    %v1971 = vpop.f32.mrb[0].mxu0
    %1972 = vmatprep.mubr.f32.mxu0 0.0
    %1973 = vmatmul.mubr.f32.gmra.mrb[0].mxu0 %v799
    %v1974 = vpop.f32.mrb[0].mxu0
    %v1975 = vadd.f32 %v282, %v1974
    %v1976 = vpop.f32.mrb[0].mxu0
    %1977 = vmatprep.mubr.f32.mxu0 0.0
    %1978 = vmatmul.mubr.f32.gmra.mrb[0].mxu0 %v802
    %v1979 = vpop.f32.mrb[0].mxu0
    %v1980 = vadd.f32 %v282, %v1979
    %v1981 = vpop.f32.mrb[0].mxu0
    %1982 = vmatprep.mubr.f32.mxu0 0.0
    %1983 = vmatmul.mubr.f32.gmra.mrb[0].mxu0 %v805
    %v1984 = vpop.f32.mrb[0].mxu0
    %v1985 = vadd.f32 %v282, %v1984
    %v1986 = vpop.f32.mrb[0].mxu0
    %1987 = vmatprep.mubr.f32.mxu0 0.0
    %1988 = vmatmul.mubr.f32.gmra.mrb[0].mxu0 %v808
    %v1989 = vpop.f32.mrb[0].mxu0
    %v1990 = vadd.f32 %v282, %v1989
    %v1991 = vpop.f32.mrb[0].mxu0
    %1992 = vmatprep.mubr.f32.mxu0 0.0
    %1993 = vmatmul.mubr.f32.gmra.mrb[0].mxu0 %v811
    %v1994 = vpop.f32.mrb[0].mxu0
    %v1995 = vadd.f32 %v282, %v1994
    %v1996 = vpop.f32.mrb[0].mxu0
    %1997 = vmatprep.mubr.f32.mxu0 0.0
    %1998 = vmatmul.mubr.f32.gmra.mrb[0].mxu0 %v814
    %v1999 = vpop.f32.mrb[0].mxu0
    %v2000 = vadd.f32 %v282, %v1999
    %v2001 = vpop.f32.mrb[0].mxu0
    %2002 = vmatprep.mubr.f32.mxu0 0.0
    %2003 = vmatmul.mubr.f32.gmra.mrb[0].mxu0 %v817
    %v2004 = vpop.f32.mrb[0].mxu0
    %v2005 = vadd.f32 %v282, %v2004
    %v2006 = vpop.f32.mrb[0].mxu0
    %2007 = vmatprep.mubr.f32.mxu0 0.0
    %2008 = vmatmul.mubr.f32.gmra.mrb[0].mxu0 %v820
    %v2009 = vpop.f32.mrb[0].mxu0
    %v2010 = vadd.f32 %v282, %v2009
    %v2011 = vpop.f32.mrb[0].mxu0
    %2012 = vmatprep.mubr.f32.mxu0 0.0
    %2013 = vmatmul.mubr.f32.gmra.mrb[0].mxu0 %v823
    %v2014 = vpop.f32.mrb[0].mxu0
    %v2015 = vadd.f32 %v282, %v2014
    %v2016 = vpop.f32.mrb[0].mxu0
    %2017 = vmatprep.mubr.f32.mxu0 0.0
    %2018 = vmatmul.mubr.f32.gmra.mrb[0].mxu0 %v826
    %v2019 = vpop.f32.mrb[0].mxu0
    %v2020 = vadd.f32 %v282, %v2019
    %v2021 = vpop.f32.mrb[0].mxu0
    %2022 = vmatprep.mubr.f32.mxu0 0.0
    %2023 = vmatmul.mubr.f32.gmra.mrb[0].mxu0 %v829
    %v2024 = vpop.f32.mrb[0].mxu0
    %v2025 = vadd.f32 %v282, %v2024
    %v2026 = vpop.f32.mrb[0].mxu0
    %2027 = vmatprep.mubr.f32.mxu0 0.0
    %2028 = vmatmul.mubr.f32.gmra.mrb[0].mxu0 %v832
    %v2029 = vpop.f32.mrb[0].mxu0
    %v2030 = vadd.f32 %v282, %v2029
    %v2031 = vpop.f32.mrb[0].mxu0
    %2032 = vmatprep.mubr.f32.mxu0 0.0
    %2033 = vmatmul.mubr.f32.gmra.mrb[0].mxu0 %v835
    %v2034 = vpop.f32.mrb[0].mxu0
    %v2035 = vadd.f32 %v282, %v2034
    %v2036 = vpop.f32.mrb[0].mxu0
    %2037 = vmatprep.mubr.f32.mxu0 0.0
    %2038 = vmatmul.mubr.f32.gmra.mrb[0].mxu0 %v838
    %v2039 = vpop.f32.mrb[0].mxu0
    %v2040 = vadd.f32 %v282, %v2039
    %v2041 = vpop.f32.mrb[0].mxu0
    %2042 = vmatprep.mubr.f32.mxu0 0.0
    %2043 = vmatmul.mubr.f32.gmra.mrb[0].mxu0 %v841
    %v2044 = vpop.f32.mrb[0].mxu0
    %v2045 = vadd.f32 %v282, %v2044
    %v2046 = vpop.f32.mrb[0].mxu0
    %2047 = vmatprep.mubr.f32.mxu0 0.0
    %2048 = vmatmul.mubr.f32.gmra.mrb[0].mxu0 %v844
    %v2049 = vpop.f32.mrb[0].mxu0
    %v2050 = vadd.f32 %v282, %v2049
    %v2051 = vpop.f32.mrb[0].mxu0
    %2052 = vmatprep.mubr.f32.mxu0 0.0
    %2053 = vmatmul.mubr.f32.gmra.mrb[0].mxu0 %v847
    %v2054 = vpop.f32.mrb[0].mxu0
    %v2055 = vadd.f32 %v282, %v2054
    %v2056 = vpop.f32.mrb[0].mxu0
    %2057 = vmatprep.mubr.f32.mxu0 0.0
    %2058 = vmatmul.mubr.f32.gmra.mrb[0].mxu0 %v850
    %v2059 = vpop.f32.mrb[0].mxu0
    %v2060 = vadd.f32 %v282, %v2059
    %v2061 = vpop.f32.mrb[0].mxu0
    %2062 = vmatprep.mubr.f32.mxu0 0.0
    %2063 = vmatmul.mubr.f32.gmra.mrb[0].mxu0 %v853
    %v2064 = vpop.f32.mrb[0].mxu0
    %v2065 = vadd.f32 %v282, %v2064
    %v2066 = vpop.f32.mrb[0].mxu0
    %2067 = vmatprep.mubr.f32.mxu0 0.0
    %2068 = vmatmul.mubr.f32.gmra.mrb[0].mxu0 %v856
    %v2069 = vpop.f32.mrb[0].mxu0
    %v2070 = vadd.f32 %v282, %v2069
    %v2071 = vpop.f32.mrb[0].mxu0
    %2072 = vmatprep.mubr.f32.mxu0 0.0
    %2073 = vmatmul.mubr.f32.gmra.mrb[0].mxu0 %v859
    %v2074 = vpop.f32.mrb[0].mxu0
    %v2075 = vadd.f32 %v282, %v2074
    %v2076 = vpop.f32.mrb[0].mxu0
    %2077 = vmatprep.mubr.f32.mxu0 0.0
    %2078 = vmatmul.mubr.f32.gmra.mrb[0].mxu0 %v862
    %v2079 = vpop.f32.mrb[0].mxu0
    %v2080 = vadd.f32 %v282, %v2079
    %v2081 = vpop.f32.mrb[0].mxu0
    %2082 = vmatprep.mubr.f32.mxu0 0.0
    %2083 = vmatmul.mubr.f32.gmra.mrb[0].mxu0 %v865
    %v2084 = vpop.f32.mrb[0].mxu0
    %v2085 = vadd.f32 %v282, %v2084
    %v2086 = vpop.f32.mrb[0].mxu0
    %2087 = vmatprep.mubr.f32.mxu0 0.0
    %2088 = vmatmul.mubr.f32.gmra.mrb[0].mxu0 %v868
    %v2089 = vpop.f32.mrb[0].mxu0
    %v2090 = vadd.f32 %v282, %v2089
    %v2091 = vpop.f32.mrb[0].mxu0
    %2092 = vmatprep.mubr.f32.mxu0 0.0
    %2093 = vmatmul.mubr.f32.gmra.mrb[0].mxu0 %v871
    %v2094 = vpop.f32.mrb[0].mxu0
    %v2095 = vadd.f32 %v282, %v2094
    %v2096 = vpop.f32.mrb[0].mxu0
    %2097 = vmatprep.mubr.f32.mxu0 0.0
    %2098 = vmatmul.mubr.f32.gmra.mrb[0].mxu0 %v874
    %v2099 = vpop.f32.mrb[0].mxu0
    %v2100 = vadd.f32 %v282, %v2099
    %v2101 = vpop.f32.mrb[0].mxu0
    %2102 = vmatprep.mubr.f32.mxu0 0.0
    %2103 = vmatmul.mubr.f32.gmra.mrb[0].mxu0 %v877
    %v2104 = vpop.f32.mrb[0].mxu0
    %v2105 = vadd.f32 %v282, %v2104
    %v2106 = vpop.f32.mrb[0].mxu0
    %2107 = vmatprep.mubr.f32.mxu0 0.0
    %2108 = vmatmul.mubr.f32.gmra.mrb[0].mxu0 %v880
    %v2109 = vpop.f32.mrb[0].mxu0
    %v2110 = vadd.f32 %v282, %v2109
    %v2111 = vpop.f32.mrb[0].mxu0
    %2112 = vmatprep.mubr.f32.mxu0 0.0
    %2113 = vmatmul.mubr.f32.gmra.mrb[0].mxu0 %v883
    %v2114 = vpop.f32.mrb[0].mxu0
    %v2115 = vadd.f32 %v282, %v2114
    %v2116 = vpop.f32.mrb[0].mxu0
    %2117 = vmatprep.mubr.f32.mxu0 0.0
    %2118 = vmatmul.mubr.f32.gmra.mrb[0].mxu0 %v886
    %v2119 = vpop.f32.mrb[0].mxu0
    %v2120 = vadd.f32 %v282, %v2119
    %v2121 = vpop.f32.mrb[0].mxu0
    %2122 = vmatprep.mubr.f32.mxu0 0.0
    %2123 = vmatmul.mubr.f32.gmra.mrb[0].mxu0 %v889
    %v2124 = vpop.f32.mrb[0].mxu0
    %v2125 = vadd.f32 %v282, %v2124
    %v2126 = vpop.f32.mrb[0].mxu0
    %2127 = vmatprep.mubr.f32.mxu0 0.0
    %2128 = vmatmul.mubr.f32.gmra.mrb[0].mxu0 %v892
    %v2129 = vpop.f32.mrb[0].mxu0
    %v2130 = vadd.f32 %v282, %v2129
    %v2131 = vpop.f32.mrb[0].mxu0
    %2132 = vmatprep.mubr.f32.mxu0 0.0
    %2133 = vmatmul.mubr.f32.gmra.mrb[0].mxu0 %v895
    %v2134 = vpop.f32.mrb[0].mxu0
    %v2135 = vadd.f32 %v282, %v2134
    %v2136 = vpop.f32.mrb[0].mxu0
    %2137 = vmatprep.mubr.f32.mxu0 0.0
    %2138 = vmatmul.mubr.f32.gmra.mrb[0].mxu0 %v898
    %v2139 = vpop.f32.mrb[0].mxu0
    %v2140 = vadd.f32 %v282, %v2139
    %v2141 = vpop.f32.mrb[0].mxu0
    %2142 = vmatprep.mubr.f32.mxu0 0.0
    %2143 = vmatmul.mubr.f32.gmra.mrb[0].mxu0 %v901
    %v2144 = vpop.f32.mrb[0].mxu0
    %v2145 = vadd.f32 %v282, %v2144
    %v2146 = vpop.f32.mrb[0].mxu0
    %2147 = vmatprep.mubr.f32.mxu0 0.0
    %2148 = vmatmul.mubr.f32.gmra.mrb[0].mxu0 %v904
    %v2149 = vpop.f32.mrb[0].mxu0
    %v2150 = vadd.f32 %v282, %v2149
    %v2151 = vpop.f32.mrb[0].mxu0
    %2152 = vmatprep.mubr.f32.mxu0 0.0
    %2153 = vmatmul.mubr.f32.gmra.mrb[0].mxu0 %v907
    %v2154 = vpop.f32.mrb[0].mxu0
    %v2155 = vadd.f32 %v282, %v2154
    %v2156 = vpop.f32.mrb[0].mxu0
    %2157 = vmatprep.mubr.f32.mxu0 0.0
    %2158 = vmatmul.mubr.f32.gmra.mrb[0].mxu0 %v910
    %v2159 = vpop.f32.mrb[0].mxu0
    %v2160 = vadd.f32 %v282, %v2159
    %v2161 = vpop.f32.mrb[0].mxu0
    %2162 = vmatprep.mubr.f32.mxu0 0.0
    %2163 = vmatmul.mubr.f32.gmra.mrb[0].mxu0 %v913
    %v2164 = vpop.f32.mrb[0].mxu0
    %v2165 = vadd.f32 %v282, %v2164
    %v2166 = vpop.f32.mrb[0].mxu0
    %2167 = vmatprep.mubr.f32.mxu0 0.0
    %2168 = vmatmul.mubr.f32.gmra.mrb[0].mxu0 %v916
    %v2169 = vpop.f32.mrb[0].mxu0
    %v2170 = vadd.f32 %v282, %v2169
    %v2171 = vpop.f32.mrb[0].mxu0
    %2172 = vmatprep.mubr.f32.mxu0 0.0
    %2173 = vmatmul.mubr.f32.gmra.mrb[0].mxu0 %v919
    %v2174 = vpop.f32.mrb[0].mxu0
    %v2175 = vadd.f32 %v282, %v2174
    %v2176 = vpop.f32.mrb[0].mxu0
    %2177 = vmatprep.mubr.f32.mxu0 0.0
    %2178 = vmatmul.mubr.f32.gmra.mrb[0].mxu0 %v922
    %v2179 = vpop.f32.mrb[0].mxu0
    %v2180 = vadd.f32 %v282, %v2179
    %v2181 = vpop.f32.mrb[0].mxu0
    %2182 = vmatprep.mubr.f32.mxu0 0.0
    %2183 = vmatmul.mubr.f32.gmra.mrb[0].mxu0 %v925
    %v2184 = vpop.f32.mrb[0].mxu0
    %v2185 = vadd.f32 %v282, %v2184
    %v2186 = vpop.f32.mrb[0].mxu0
    %2187 = vmatprep.mubr.f32.mxu0 0.0
    %2188 = vmatmul.mubr.f32.gmra.mrb[0].mxu0 %v928
    %v2189 = vpop.f32.mrb[0].mxu0
    %v2190 = vadd.f32 %v282, %v2189
    %v2191 = vpop.f32.mrb[0].mxu0
    %2192 = vmatprep.mubr.f32.mxu0 0.0
    %2193 = vmatmul.mubr.f32.gmra.mrb[0].mxu0 %v931
    %v2194 = vpop.f32.mrb[0].mxu0
    %v2195 = vadd.f32 %v282, %v2194
    %v2196 = vpop.f32.mrb[0].mxu0
    %2197 = vmatprep.mubr.f32.mxu0 0.0
    %2198 = vmatmul.mubr.f32.gmra.mrb[0].mxu0 %v934
    %v2199 = vpop.f32.mrb[0].mxu0
    %v2200 = vadd.f32 %v282, %v2199
    %v2201 = vpop.f32.mrb[0].mxu0
    %2202 = vmatprep.mubr.f32.mxu0 0.0
    %2203 = vmatmul.mubr.f32.gmra.mrb[0].mxu0 %v937
    %v2204 = vpop.f32.mrb[0].mxu0
    %v2205 = vadd.f32 %v282, %v2204
    %v2206 = vpop.f32.mrb[0].mxu0
    %2207 = vmatprep.mubr.f32.mxu0 0.0
    %2208 = vmatmul.mubr.f32.gmra.mrb[0].mxu0 %v940
    %v2209 = vpop.f32.mrb[0].mxu0
    %v2210 = vadd.f32 %v282, %v2209
    %v2211 = vpop.f32.mrb[0].mxu0
    %2212 = vmatprep.mubr.f32.mxu0 0.0
    %2213 = vmatmul.mubr.f32.gmra.mrb[0].mxu0 %v943
    %v2214 = vpop.f32.mrb[0].mxu0
    %v2215 = vadd.f32 %v282, %v2214
    %v2216 = vpop.f32.mrb[0].mxu0
    %2217 = vmatprep.mubr.f32.mxu0 0.0
    %2218 = vmatmul.mubr.f32.gmra.mrb[0].mxu0 %v946
    %v2219 = vpop.f32.mrb[0].mxu0
    %v2220 = vadd.f32 %v282, %v2219
    %v2221 = vpop.f32.mrb[0].mxu0
    %2222 = vmatprep.mubr.f32.mxu0 0.0
    %2223 = vmatmul.mubr.f32.gmra.mrb[0].mxu0 %v949
    %v2224 = vpop.f32.mrb[0].mxu0
    %v2225 = vadd.f32 %v282, %v2224
    %v2226 = vpop.f32.mrb[0].mxu0
    %2227 = vmatprep.mubr.f32.mxu0 0.0
    %2228 = vmatmul.mubr.f32.gmra.mrb[0].mxu0 %v952
    %v2229 = vpop.f32.mrb[0].mxu0
    %v2230 = vadd.f32 %v282, %v2229
    %v2231 = vpop.f32.mrb[0].mxu0
    %2232 = vmatprep.mubr.f32.mxu0 0.0
    %2233 = vmatmul.mubr.f32.gmra.mrb[0].mxu0 %v955
    %v2234 = vpop.f32.mrb[0].mxu0
    %v2235 = vadd.f32 %v282, %v2234
    %v2236 = vpop.f32.mrb[0].mxu0
    %2237 = vmatprep.mubr.f32.mxu0 0.0
    %2238 = vmatmul.mubr.f32.gmra.mrb[0].mxu0 %v958
    %v2239 = vpop.f32.mrb[0].mxu0
    %v2240 = vadd.f32 %v282, %v2239
    %v2241 = vpop.f32.mrb[0].mxu0
    %2242 = vmatprep.mubr.f32.mxu0 0.0
    %2243 = vmatmul.mubr.f32.gmra.mrb[0].mxu0 %v961
    %v2244 = vpop.f32.mrb[0].mxu0
    %v2245 = vadd.f32 %v282, %v2244
    %v2246 = vpop.f32.mrb[0].mxu0
    %2247 = vmatprep.mubr.f32.mxu0 0.0
    %2248 = vmatmul.mubr.f32.gmra.mrb[0].mxu0 %v964
    %v2249 = vpop.f32.mrb[0].mxu0
    %v2250 = vadd.f32 %v282, %v2249
    %v2251 = vpop.f32.mrb[0].mxu0
    %2252 = vmatprep.mubr.f32.mxu0 0.0
    %2253 = vmatmul.mubr.f32.gmra.mrb[0].mxu0 %v967
    %v2254 = vpop.f32.mrb[0].mxu0
    %v2255 = vadd.f32 %v282, %v2254
    %v2256 = vpop.f32.mrb[0].mxu0
    %2257 = vmatprep.mubr.f32.mxu0 0.0
    %2258 = vmatmul.mubr.f32.gmra.mrb[0].mxu0 %v970
    %v2259 = vpop.f32.mrb[0].mxu0
    %v2260 = vadd.f32 %v282, %v2259
    %v2261 = vpop.f32.mrb[0].mxu0
    %2262 = vmatprep.mubr.f32.mxu0 0.0
    %2263 = vmatmul.mubr.f32.gmra.mrb[0].mxu0 %v973
    %v2264 = vpop.f32.mrb[0].mxu0
    %v2265 = vadd.f32 %v282, %v2264
    %v2266 = vpop.f32.mrb[0].mxu0
    %2267 = vmatprep.mubr.f32.mxu0 0.0
    %2268 = vmatmul.mubr.f32.gmra.mrb[0].mxu0 %v976
    %v2269 = vpop.f32.mrb[0].mxu0
    %v2270 = vadd.f32 %v282, %v2269
    %v2271 = vpop.f32.mrb[0].mxu0
    %2272 = vmatprep.mubr.f32.mxu0 0.0
    %2273 = vmatmul.mubr.f32.gmra.mrb[0].mxu0 %v979
    %v2274 = vpop.f32.mrb[0].mxu0
    %v2275 = vadd.f32 %v282, %v2274
    %v2276 = vpop.f32.mrb[0].mxu0
    %2277 = vmatprep.mubr.f32.mxu0 0.0
    %2278 = vmatmul.mubr.f32.gmra.mrb[0].mxu0 %v982
    %v2279 = vpop.f32.mrb[0].mxu0
    %v2280 = vadd.f32 %v282, %v2279
    %v2281 = vpop.f32.mrb[0].mxu0
    %2282 = vmatprep.mubr.f32.mxu0 0.0
    %2283 = vmatmul.mubr.f32.gmra.mrb[0].mxu0 %v985
    %v2284 = vpop.f32.mrb[0].mxu0
    %v2285 = vadd.f32 %v282, %v2284
    %v2286 = vpop.f32.mrb[0].mxu0
    %2287 = vmatprep.mubr.f32.mxu0 0.0
    %2288 = vmatmul.mubr.f32.gmra.mrb[0].mxu0 %v988
    %v2289 = vpop.f32.mrb[0].mxu0
    %v2290 = vadd.f32 %v282, %v2289
    %v2291 = vpop.f32.mrb[0].mxu0
    %2292 = vmatprep.mubr.f32.mxu0 0.0
    %2293 = vmatmul.mubr.f32.gmra.mrb[0].mxu0 %v991
    %v2294 = vpop.f32.mrb[0].mxu0
    %v2295 = vadd.f32 %v282, %v2294
    %v2296 = vpop.f32.mrb[0].mxu0
    %2297 = vmatprep.mubr.f32.mxu0 0.0
    %2298 = vmatmul.mubr.f32.gmra.mrb[0].mxu0 %v994
    %v2299 = vpop.f32.mrb[0].mxu0
    %v2300 = vadd.f32 %v282, %v2299
    %v2301 = vpop.f32.mrb[0].mxu0
    %2302 = vmatprep.mubr.f32.mxu0 0.0
    %2303 = vmatmul.mubr.f32.gmra.mrb[0].mxu0 %v997
    %v2304 = vpop.f32.mrb[0].mxu0
    %v2305 = vadd.f32 %v282, %v2304
    %v2306 = vpop.f32.mrb[0].mxu0
    %2307 = vmatprep.mubr.f32.mxu0 0.0
    %2308 = vmatmul.mubr.f32.gmra.mrb[0].mxu0 %v1000
    %v2309 = vpop.f32.mrb[0].mxu0
    %v2310 = vadd.f32 %v282, %v2309
    %v2311 = vpop.f32.mrb[0].mxu0
    %2312 = vmatprep.mubr.f32.mxu0 0.0
    %2313 = vmatmul.mubr.f32.gmra.mrb[0].mxu0 %v1003
    %v2314 = vpop.f32.mrb[0].mxu0
    %v2315 = vadd.f32 %v282, %v2314
    %v2316 = vpop.f32.mrb[0].mxu0
    %2317 = vmatprep.mubr.f32.mxu0 0.0
    %2318 = vmatmul.mubr.f32.gmra.mrb[0].mxu0 %v1006
    %v2319 = vpop.f32.mrb[0].mxu0
    %v2320 = vadd.f32 %v282, %v2319
    %v2321 = vpop.f32.mrb[0].mxu0
    %2322 = vmatprep.mubr.f32.mxu0 0.0
    %2323 = vmatmul.mubr.f32.gmra.mrb[0].mxu0 %v1009
    %v2324 = vpop.f32.mrb[0].mxu0
    %v2325 = vadd.f32 %v282, %v2324
    %v2326 = vpop.f32.mrb[0].mxu0
    %2327 = vmatprep.mubr.f32.mxu0 0.0
    %2328 = vmatmul.mubr.f32.gmra.mrb[0].mxu0 %v1012
    %v2329 = vpop.f32.mrb[0].mxu0
    %v2330 = vadd.f32 %v282, %v2329
    %v2331 = vpop.f32.mrb[0].mxu0
    %2332 = vmatprep.mubr.f32.mxu0 0.0
    %2333 = vmatmul.mubr.f32.gmra.mrb[0].mxu0 %v1015
    %v2334 = vpop.f32.mrb[0].mxu0
    %v2335 = vadd.f32 %v282, %v2334
    %v2336 = vpop.f32.mrb[0].mxu0
    %2337 = vmatprep.mubr.f32.mxu0 0.0
    %2338 = vmatmul.mubr.f32.gmra.mrb[0].mxu0 %v1018
    %v2339 = vpop.f32.mrb[0].mxu0
    %v2340 = vadd.f32 %v282, %v2339
    %v2341 = vpop.f32.mrb[0].mxu0
    %2342 = vmatprep.mubr.f32.mxu0 0.0
    %2343 = vmatmul.mubr.f32.gmra.mrb[0].mxu0 %v1021
    %v2344 = vpop.f32.mrb[0].mxu0
    %v2345 = vadd.f32 %v282, %v2344
    %v2346 = vpop.f32.mrb[0].mxu0
    %2347 = vmatprep.mubr.f32.mxu0 0.0
    %2348 = vmatmul.mubr.f32.gmra.mrb[0].mxu0 %v1024
    %v2349 = vpop.f32.mrb[0].mxu0
    %v2350 = vadd.f32 %v282, %v2349
    %v2351 = vpop.f32.mrb[0].mxu0
    %2352 = vmatprep.mubr.f32.mxu0 0.0
    %2353 = vmatmul.mubr.f32.gmra.mrb[0].mxu0 %v1027
    %v2354 = vpop.f32.mrb[0].mxu0
    %v2355 = vadd.f32 %v282, %v2354
    %v2356 = vpop.f32.mrb[0].mxu0
    %2357 = vmatprep.mubr.f32.mxu0 0.0
    %2358 = vmatmul.mubr.f32.gmra.mrb[0].mxu0 %v1030
    %v2359 = vpop.f32.mrb[0].mxu0
    %v2360 = vadd.f32 %v282, %v2359
    %v2361 = vpop.f32.mrb[0].mxu0
    %2362 = vmatprep.mubr.f32.mxu0 0.0
    %2363 = vmatmul.mubr.f32.gmra.mrb[0].mxu0 %v1033
    %v2364 = vpop.f32.mrb[0].mxu0
    %v2365 = vadd.f32 %v282, %v2364
    %v2366 = vpop.f32.mrb[0].mxu0
    %2367 = vmatprep.mubr.f32.mxu0 0.0
    %2368 = vmatmul.mubr.f32.gmra.mrb[0].mxu0 %v1036
    %v2369 = vpop.f32.mrb[0].mxu0
    %v2370 = vadd.f32 %v282, %v2369
    %v2371 = vpop.f32.mrb[0].mxu0
    %2372 = vmatprep.mubr.f32.mxu0 0.0
    %2373 = vmatmul.mubr.f32.gmra.mrb[0].mxu0 %v1039
    %v2374 = vpop.f32.mrb[0].mxu0
    %v2375 = vadd.f32 %v282, %v2374
    %v2376 = vpop.f32.mrb[0].mxu0
    %2377 = vmatprep.mubr.f32.mxu0 0.0
    %2378 = vmatmul.mubr.f32.gmra.mrb[0].mxu0 %v1042
    %v2379 = vpop.f32.mrb[0].mxu0
    %v2380 = vadd.f32 %v282, %v2379
    %v2381 = vpop.f32.mrb[0].mxu0
    %2382 = vmatprep.mubr.f32.mxu0 0.0
    %2383 = vmatmul.mubr.f32.gmra.mrb[0].mxu0 %v1045
    %v2384 = vpop.f32.mrb[0].mxu0
    %v2385 = vadd.f32 %v282, %v2384
    %v2386 = vpop.f32.mrb[0].mxu0
    %2387 = vmatprep.mubr.f32.mxu0 0.0
    %2388 = vmatmul.mubr.f32.gmra.mrb[0].mxu0 %v1048
    %v2389 = vpop.f32.mrb[0].mxu0
    %v2390 = vadd.f32 %v282, %v2389
    %v2391 = vpop.f32.mrb[0].mxu0
    %2392 = vmatprep.mubr.f32.mxu0 0.0
    %2393 = vmatmul.mubr.f32.gmra.mrb[0].mxu0 %v1051
    %v2394 = vpop.f32.mrb[0].mxu0
    %v2395 = vadd.f32 %v282, %v2394
    %v2396 = vpop.f32.mrb[0].mxu0
    %2397 = vdwg.mxu0
    %s2398 = smul.u32 0, 2048
    %s2399 = scalar_lea.vmem [#allocation2], %s2398
    %2400 = vst [vmem:[%s2399] sm:$0xff] %v1120
    %2401 = vst [vmem:[%s2399 + $0x8] sm:$0xff] %v1125
    %2402 = vst [vmem:[%s2399 + $0x10] sm:$0xff] %v1130
    %2403 = vst [vmem:[%s2399 + $0x18] sm:$0xff] %v1135
    %2404 = vst [vmem:[%s2399 + $0x20] sm:$0xff] %v1140
    %2405 = vst [vmem:[%s2399 + $0x28] sm:$0xff] %v1145
    %2406 = vst [vmem:[%s2399 + $0x30] sm:$0xff] %v1150
    %2407 = vst [vmem:[%s2399 + $0x38] sm:$0xff] %v1155
    %2408 = vst [vmem:[%s2399 + $0x40] sm:$0xff] %v1160
    %2409 = vst [vmem:[%s2399 + $0x48] sm:$0xff] %v1165
    %2410 = vst [vmem:[%s2399 + $0x50] sm:$0xff] %v1170
    %2411 = vst [vmem:[%s2399 + $0x58] sm:$0xff] %v1175
    %2412 = vst [vmem:[%s2399 + $0x60] sm:$0xff] %v1180
    %2413 = vst [vmem:[%s2399 + $0x68] sm:$0xff] %v1185
    %2414 = vst [vmem:[%s2399 + $0x70] sm:$0xff] %v1190
    %2415 = vst [vmem:[%s2399 + $0x78] sm:$0xff] %v1195
    %2416 = vst [vmem:[%s2399 + $0x80] sm:$0xff] %v1200
    %2417 = vst [vmem:[%s2399 + $0x88] sm:$0xff] %v1205
    %2418 = vst [vmem:[%s2399 + $0x90] sm:$0xff] %v1210
    %2419 = vst [vmem:[%s2399 + $0x98] sm:$0xff] %v1215
    %2420 = vst [vmem:[%s2399 + $0xa0] sm:$0xff] %v1220
    %2421 = vst [vmem:[%s2399 + $0xa8] sm:$0xff] %v1225
    %2422 = vst [vmem:[%s2399 + $0xb0] sm:$0xff] %v1230
    %2423 = vst [vmem:[%s2399 + $0xb8] sm:$0xff] %v1235
    %2424 = vst [vmem:[%s2399 + $0xc0] sm:$0xff] %v1240
    %2425 = vst [vmem:[%s2399 + $0xc8] sm:$0xff] %v1245
    %2426 = vst [vmem:[%s2399 + $0xd0] sm:$0xff] %v1250
    %2427 = vst [vmem:[%s2399 + $0xd8] sm:$0xff] %v1255
    %2428 = vst [vmem:[%s2399 + $0xe0] sm:$0xff] %v1260
    %2429 = vst [vmem:[%s2399 + $0xe8] sm:$0xff] %v1265
    %2430 = vst [vmem:[%s2399 + $0xf0] sm:$0xff] %v1270
    %2431 = vst [vmem:[%s2399 + $0xf8] sm:$0xff] %v1275
    %2432 = vst [vmem:[%s2399 + $0x100] sm:$0xff] %v1280
    %2433 = vst [vmem:[%s2399 + $0x108] sm:$0xff] %v1285
    %2434 = vst [vmem:[%s2399 + $0x110] sm:$0xff] %v1290
    %2435 = vst [vmem:[%s2399 + $0x118] sm:$0xff] %v1295
    %2436 = vst [vmem:[%s2399 + $0x120] sm:$0xff] %v1300
    %2437 = vst [vmem:[%s2399 + $0x128] sm:$0xff] %v1305
    %2438 = vst [vmem:[%s2399 + $0x130] sm:$0xff] %v1310
    %2439 = vst [vmem:[%s2399 + $0x138] sm:$0xff] %v1315
    %2440 = vst [vmem:[%s2399 + $0x140] sm:$0xff] %v1320
    %2441 = vst [vmem:[%s2399 + $0x148] sm:$0xff] %v1325
    %2442 = vst [vmem:[%s2399 + $0x150] sm:$0xff] %v1330
    %2443 = vst [vmem:[%s2399 + $0x158] sm:$0xff] %v1335
    %2444 = vst [vmem:[%s2399 + $0x160] sm:$0xff] %v1340
    %2445 = vst [vmem:[%s2399 + $0x168] sm:$0xff] %v1345
    %2446 = vst [vmem:[%s2399 + $0x170] sm:$0xff] %v1350
    %2447 = vst [vmem:[%s2399 + $0x178] sm:$0xff] %v1355
    %2448 = vst [vmem:[%s2399 + $0x180] sm:$0xff] %v1360
    %2449 = vst [vmem:[%s2399 + $0x188] sm:$0xff] %v1365
    %2450 = vst [vmem:[%s2399 + $0x190] sm:$0xff] %v1370
    %2451 = vst [vmem:[%s2399 + $0x198] sm:$0xff] %v1375
    %2452 = vst [vmem:[%s2399 + $0x1a0] sm:$0xff] %v1380
    %2453 = vst [vmem:[%s2399 + $0x1a8] sm:$0xff] %v1385
    %2454 = vst [vmem:[%s2399 + $0x1b0] sm:$0xff] %v1390
    %2455 = vst [vmem:[%s2399 + $0x1b8] sm:$0xff] %v1395
    %2456 = vst [vmem:[%s2399 + $0x1c0] sm:$0xff] %v1400
    %2457 = vst [vmem:[%s2399 + $0x1c8] sm:$0xff] %v1405
    %2458 = vst [vmem:[%s2399 + $0x1d0] sm:$0xff] %v1410
    %2459 = vst [vmem:[%s2399 + $0x1d8] sm:$0xff] %v1415
    %2460 = vst [vmem:[%s2399 + $0x1e0] sm:$0xff] %v1420
    %2461 = vst [vmem:[%s2399 + $0x1e8] sm:$0xff] %v1425
    %2462 = vst [vmem:[%s2399 + $0x1f0] sm:$0xff] %v1430
    %2463 = vst [vmem:[%s2399 + $0x1f8] sm:$0xff] %v1435
    %2464 = vst [vmem:[%s2399 + $0x200] sm:$0xff] %v1440
    %2465 = vst [vmem:[%s2399 + $0x208] sm:$0xff] %v1445
    %2466 = vst [vmem:[%s2399 + $0x210] sm:$0xff] %v1450
    %2467 = vst [vmem:[%s2399 + $0x218] sm:$0xff] %v1455
    %2468 = vst [vmem:[%s2399 + $0x220] sm:$0xff] %v1460
    %2469 = vst [vmem:[%s2399 + $0x228] sm:$0xff] %v1465
    %2470 = vst [vmem:[%s2399 + $0x230] sm:$0xff] %v1470
    %2471 = vst [vmem:[%s2399 + $0x238] sm:$0xff] %v1475
    %2472 = vst [vmem:[%s2399 + $0x240] sm:$0xff] %v1480
    %2473 = vst [vmem:[%s2399 + $0x248] sm:$0xff] %v1485
    %2474 = vst [vmem:[%s2399 + $0x250] sm:$0xff] %v1490
    %2475 = vst [vmem:[%s2399 + $0x258] sm:$0xff] %v1495
    %2476 = vst [vmem:[%s2399 + $0x260] sm:$0xff] %v1500
    %2477 = vst [vmem:[%s2399 + $0x268] sm:$0xff] %v1505
    %2478 = vst [vmem:[%s2399 + $0x270] sm:$0xff] %v1510
    %2479 = vst [vmem:[%s2399 + $0x278] sm:$0xff] %v1515
    %2480 = vst [vmem:[%s2399 + $0x280] sm:$0xff] %v1520
    %2481 = vst [vmem:[%s2399 + $0x288] sm:$0xff] %v1525
    %2482 = vst [vmem:[%s2399 + $0x290] sm:$0xff] %v1530
    %2483 = vst [vmem:[%s2399 + $0x298] sm:$0xff] %v1535
    %2484 = vst [vmem:[%s2399 + $0x2a0] sm:$0xff] %v1540
    %2485 = vst [vmem:[%s2399 + $0x2a8] sm:$0xff] %v1545
    %2486 = vst [vmem:[%s2399 + $0x2b0] sm:$0xff] %v1550
    %2487 = vst [vmem:[%s2399 + $0x2b8] sm:$0xff] %v1555
    %2488 = vst [vmem:[%s2399 + $0x2c0] sm:$0xff] %v1560
    %2489 = vst [vmem:[%s2399 + $0x2c8] sm:$0xff] %v1565
    %2490 = vst [vmem:[%s2399 + $0x2d0] sm:$0xff] %v1570
    %2491 = vst [vmem:[%s2399 + $0x2d8] sm:$0xff] %v1575
    %2492 = vst [vmem:[%s2399 + $0x2e0] sm:$0xff] %v1580
    %2493 = vst [vmem:[%s2399 + $0x2e8] sm:$0xff] %v1585
    %2494 = vst [vmem:[%s2399 + $0x2f0] sm:$0xff] %v1590
    %2495 = vst [vmem:[%s2399 + $0x2f8] sm:$0xff] %v1595
    %2496 = vst [vmem:[%s2399 + $0x300] sm:$0xff] %v1600
    %2497 = vst [vmem:[%s2399 + $0x308] sm:$0xff] %v1605
    %2498 = vst [vmem:[%s2399 + $0x310] sm:$0xff] %v1610
    %2499 = vst [vmem:[%s2399 + $0x318] sm:$0xff] %v1615
    %2500 = vst [vmem:[%s2399 + $0x320] sm:$0xff] %v1620
    %2501 = vst [vmem:[%s2399 + $0x328] sm:$0xff] %v1625
    %2502 = vst [vmem:[%s2399 + $0x330] sm:$0xff] %v1630
    %2503 = vst [vmem:[%s2399 + $0x338] sm:$0xff] %v1635
    %2504 = vst [vmem:[%s2399 + $0x340] sm:$0xff] %v1640
    %2505 = vst [vmem:[%s2399 + $0x348] sm:$0xff] %v1645
    %2506 = vst [vmem:[%s2399 + $0x350] sm:$0xff] %v1650
    %2507 = vst [vmem:[%s2399 + $0x358] sm:$0xff] %v1655
    %2508 = vst [vmem:[%s2399 + $0x360] sm:$0xff] %v1660
    %2509 = vst [vmem:[%s2399 + $0x368] sm:$0xff] %v1665
    %2510 = vst [vmem:[%s2399 + $0x370] sm:$0xff] %v1670
    %2511 = vst [vmem:[%s2399 + $0x378] sm:$0xff] %v1675
    %2512 = vst [vmem:[%s2399 + $0x380] sm:$0xff] %v1680
    %2513 = vst [vmem:[%s2399 + $0x388] sm:$0xff] %v1685
    %2514 = vst [vmem:[%s2399 + $0x390] sm:$0xff] %v1690
    %2515 = vst [vmem:[%s2399 + $0x398] sm:$0xff] %v1695
    %2516 = vst [vmem:[%s2399 + $0x3a0] sm:$0xff] %v1700
    %2517 = vst [vmem:[%s2399 + $0x3a8] sm:$0xff] %v1705
    %2518 = vst [vmem:[%s2399 + $0x3b0] sm:$0xff] %v1710
    %2519 = vst [vmem:[%s2399 + $0x3b8] sm:$0xff] %v1715
    %2520 = vst [vmem:[%s2399 + $0x3c0] sm:$0xff] %v1720
    %2521 = vst [vmem:[%s2399 + $0x3c8] sm:$0xff] %v1725
    %2522 = vst [vmem:[%s2399 + $0x3d0] sm:$0xff] %v1730
    %2523 = vst [vmem:[%s2399 + $0x3d8] sm:$0xff] %v1735
    %2524 = vst [vmem:[%s2399 + $0x3e0] sm:$0xff] %v1740
    %2525 = vst [vmem:[%s2399 + $0x3e8] sm:$0xff] %v1745
    %2526 = vst [vmem:[%s2399 + $0x3f0] sm:$0xff] %v1750
    %2527 = vst [vmem:[%s2399 + $0x3f8] sm:$0xff] %v1755
    %2528 = vst [vmem:[%s2399 + $0x400] sm:$0xff] %v1760
    %2529 = vst [vmem:[%s2399 + $0x408] sm:$0xff] %v1765
    %2530 = vst [vmem:[%s2399 + $0x410] sm:$0xff] %v1770
    %2531 = vst [vmem:[%s2399 + $0x418] sm:$0xff] %v1775
    %2532 = vst [vmem:[%s2399 + $0x420] sm:$0xff] %v1780
    %2533 = vst [vmem:[%s2399 + $0x428] sm:$0xff] %v1785
    %2534 = vst [vmem:[%s2399 + $0x430] sm:$0xff] %v1790
    %2535 = vst [vmem:[%s2399 + $0x438] sm:$0xff] %v1795
    %2536 = vst [vmem:[%s2399 + $0x440] sm:$0xff] %v1800
    %2537 = vst [vmem:[%s2399 + $0x448] sm:$0xff] %v1805
    %2538 = vst [vmem:[%s2399 + $0x450] sm:$0xff] %v1810
    %2539 = vst [vmem:[%s2399 + $0x458] sm:$0xff] %v1815
    %2540 = vst [vmem:[%s2399 + $0x460] sm:$0xff] %v1820
    %2541 = vst [vmem:[%s2399 + $0x468] sm:$0xff] %v1825
    %2542 = vst [vmem:[%s2399 + $0x470] sm:$0xff] %v1830
    %2543 = vst [vmem:[%s2399 + $0x478] sm:$0xff] %v1835
    %2544 = vst [vmem:[%s2399 + $0x480] sm:$0xff] %v1840
    %2545 = vst [vmem:[%s2399 + $0x488] sm:$0xff] %v1845
    %2546 = vst [vmem:[%s2399 + $0x490] sm:$0xff] %v1850
    %2547 = vst [vmem:[%s2399 + $0x498] sm:$0xff] %v1855
    %2548 = vst [vmem:[%s2399 + $0x4a0] sm:$0xff] %v1860
    %2549 = vst [vmem:[%s2399 + $0x4a8] sm:$0xff] %v1865
    %2550 = vst [vmem:[%s2399 + $0x4b0] sm:$0xff] %v1870
    %2551 = vst [vmem:[%s2399 + $0x4b8] sm:$0xff] %v1875
    %2552 = vst [vmem:[%s2399 + $0x4c0] sm:$0xff] %v1880
    %2553 = vst [vmem:[%s2399 + $0x4c8] sm:$0xff] %v1885
    %2554 = vst [vmem:[%s2399 + $0x4d0] sm:$0xff] %v1890
    %2555 = vst [vmem:[%s2399 + $0x4d8] sm:$0xff] %v1895
    %2556 = vst [vmem:[%s2399 + $0x4e0] sm:$0xff] %v1900
    %2557 = vst [vmem:[%s2399 + $0x4e8] sm:$0xff] %v1905
    %2558 = vst [vmem:[%s2399 + $0x4f0] sm:$0xff] %v1910
    %2559 = vst [vmem:[%s2399 + $0x4f8] sm:$0xff] %v1915
    %2560 = vst [vmem:[%s2399 + $0x500] sm:$0xff] %v1920
    %2561 = vst [vmem:[%s2399 + $0x508] sm:$0xff] %v1925
    %2562 = vst [vmem:[%s2399 + $0x510] sm:$0xff] %v1930
    %2563 = vst [vmem:[%s2399 + $0x518] sm:$0xff] %v1935
    %2564 = vst [vmem:[%s2399 + $0x520] sm:$0xff] %v1940
    %2565 = vst [vmem:[%s2399 + $0x528] sm:$0xff] %v1945
    %2566 = vst [vmem:[%s2399 + $0x530] sm:$0xff] %v1950
    %2567 = vst [vmem:[%s2399 + $0x538] sm:$0xff] %v1955
    %2568 = vst [vmem:[%s2399 + $0x540] sm:$0xff] %v1960
    %2569 = vst [vmem:[%s2399 + $0x548] sm:$0xff] %v1965
    %2570 = vst [vmem:[%s2399 + $0x550] sm:$0xff] %v1970
    %2571 = vst [vmem:[%s2399 + $0x558] sm:$0xff] %v1975
    %2572 = vst [vmem:[%s2399 + $0x560] sm:$0xff] %v1980
    %2573 = vst [vmem:[%s2399 + $0x568] sm:$0xff] %v1985
    %2574 = vst [vmem:[%s2399 + $0x570] sm:$0xff] %v1990
    %2575 = vst [vmem:[%s2399 + $0x578] sm:$0xff] %v1995
    %2576 = vst [vmem:[%s2399 + $0x580] sm:$0xff] %v2000
    %2577 = vst [vmem:[%s2399 + $0x588] sm:$0xff] %v2005
    %2578 = vst [vmem:[%s2399 + $0x590] sm:$0xff] %v2010
    %2579 = vst [vmem:[%s2399 + $0x598] sm:$0xff] %v2015
    %2580 = vst [vmem:[%s2399 + $0x5a0] sm:$0xff] %v2020
    %2581 = vst [vmem:[%s2399 + $0x5a8] sm:$0xff] %v2025
    %2582 = vst [vmem:[%s2399 + $0x5b0] sm:$0xff] %v2030
    %2583 = vst [vmem:[%s2399 + $0x5b8] sm:$0xff] %v2035
    %2584 = vst [vmem:[%s2399 + $0x5c0] sm:$0xff] %v2040
    %2585 = vst [vmem:[%s2399 + $0x5c8] sm:$0xff] %v2045
    %2586 = vst [vmem:[%s2399 + $0x5d0] sm:$0xff] %v2050
    %2587 = vst [vmem:[%s2399 + $0x5d8] sm:$0xff] %v2055
    %2588 = vst [vmem:[%s2399 + $0x5e0] sm:$0xff] %v2060
    %2589 = vst [vmem:[%s2399 + $0x5e8] sm:$0xff] %v2065
    %2590 = vst [vmem:[%s2399 + $0x5f0] sm:$0xff] %v2070
    %2591 = vst [vmem:[%s2399 + $0x5f8] sm:$0xff] %v2075
    %2592 = vst [vmem:[%s2399 + $0x600] sm:$0xff] %v2080
    %2593 = vst [vmem:[%s2399 + $0x608] sm:$0xff] %v2085
    %2594 = vst [vmem:[%s2399 + $0x610] sm:$0xff] %v2090
    %2595 = vst [vmem:[%s2399 + $0x618] sm:$0xff] %v2095
    %2596 = vst [vmem:[%s2399 + $0x620] sm:$0xff] %v2100
    %2597 = vst [vmem:[%s2399 + $0x628] sm:$0xff] %v2105
    %2598 = vst [vmem:[%s2399 + $0x630] sm:$0xff] %v2110
    %2599 = vst [vmem:[%s2399 + $0x638] sm:$0xff] %v2115
    %2600 = vst [vmem:[%s2399 + $0x640] sm:$0xff] %v2120
    %2601 = vst [vmem:[%s2399 + $0x648] sm:$0xff] %v2125
    %2602 = vst [vmem:[%s2399 + $0x650] sm:$0xff] %v2130
    %2603 = vst [vmem:[%s2399 + $0x658] sm:$0xff] %v2135
    %2604 = vst [vmem:[%s2399 + $0x660] sm:$0xff] %v2140
    %2605 = vst [vmem:[%s2399 + $0x668] sm:$0xff] %v2145
    %2606 = vst [vmem:[%s2399 + $0x670] sm:$0xff] %v2150
    %2607 = vst [vmem:[%s2399 + $0x678] sm:$0xff] %v2155
    %2608 = vst [vmem:[%s2399 + $0x680] sm:$0xff] %v2160
    %2609 = vst [vmem:[%s2399 + $0x688] sm:$0xff] %v2165
    %2610 = vst [vmem:[%s2399 + $0x690] sm:$0xff] %v2170
    %2611 = vst [vmem:[%s2399 + $0x698] sm:$0xff] %v2175
    %2612 = vst [vmem:[%s2399 + $0x6a0] sm:$0xff] %v2180
    %2613 = vst [vmem:[%s2399 + $0x6a8] sm:$0xff] %v2185
    %2614 = vst [vmem:[%s2399 + $0x6b0] sm:$0xff] %v2190
    %2615 = vst [vmem:[%s2399 + $0x6b8] sm:$0xff] %v2195
    %2616 = vst [vmem:[%s2399 + $0x6c0] sm:$0xff] %v2200
    %2617 = vst [vmem:[%s2399 + $0x6c8] sm:$0xff] %v2205
    %2618 = vst [vmem:[%s2399 + $0x6d0] sm:$0xff] %v2210
    %2619 = vst [vmem:[%s2399 + $0x6d8] sm:$0xff] %v2215
    %2620 = vst [vmem:[%s2399 + $0x6e0] sm:$0xff] %v2220
    %2621 = vst [vmem:[%s2399 + $0x6e8] sm:$0xff] %v2225
    %2622 = vst [vmem:[%s2399 + $0x6f0] sm:$0xff] %v2230
    %2623 = vst [vmem:[%s2399 + $0x6f8] sm:$0xff] %v2235
    %2624 = vst [vmem:[%s2399 + $0x700] sm:$0xff] %v2240
    %2625 = vst [vmem:[%s2399 + $0x708] sm:$0xff] %v2245
    %2626 = vst [vmem:[%s2399 + $0x710] sm:$0xff] %v2250
    %2627 = vst [vmem:[%s2399 + $0x718] sm:$0xff] %v2255
    %2628 = vst [vmem:[%s2399 + $0x720] sm:$0xff] %v2260
    %2629 = vst [vmem:[%s2399 + $0x728] sm:$0xff] %v2265
    %2630 = vst [vmem:[%s2399 + $0x730] sm:$0xff] %v2270
    %2631 = vst [vmem:[%s2399 + $0x738] sm:$0xff] %v2275
    %2632 = vst [vmem:[%s2399 + $0x740] sm:$0xff] %v2280
    %2633 = vst [vmem:[%s2399 + $0x748] sm:$0xff] %v2285
    %2634 = vst [vmem:[%s2399 + $0x750] sm:$0xff] %v2290
    %2635 = vst [vmem:[%s2399 + $0x758] sm:$0xff] %v2295
    %2636 = vst [vmem:[%s2399 + $0x760] sm:$0xff] %v2300
    %2637 = vst [vmem:[%s2399 + $0x768] sm:$0xff] %v2305
    %2638 = vst [vmem:[%s2399 + $0x770] sm:$0xff] %v2310
    %2639 = vst [vmem:[%s2399 + $0x778] sm:$0xff] %v2315
    %2640 = vst [vmem:[%s2399 + $0x780] sm:$0xff] %v2320
    %2641 = vst [vmem:[%s2399 + $0x788] sm:$0xff] %v2325
    %2642 = vst [vmem:[%s2399 + $0x790] sm:$0xff] %v2330
    %2643 = vst [vmem:[%s2399 + $0x798] sm:$0xff] %v2335
    %2644 = vst [vmem:[%s2399 + $0x7a0] sm:$0xff] %v2340
    %2645 = vst [vmem:[%s2399 + $0x7a8] sm:$0xff] %v2345
    %2646 = vst [vmem:[%s2399 + $0x7b0] sm:$0xff] %v2350
    %2647 = vst [vmem:[%s2399 + $0x7b8] sm:$0xff] %v2355
    %2648 = vst [vmem:[%s2399 + $0x7c0] sm:$0xff] %v2360
    %2649 = vst [vmem:[%s2399 + $0x7c8] sm:$0xff] %v2365
    %2650 = vst [vmem:[%s2399 + $0x7d0] sm:$0xff] %v2370
    %2651 = vst [vmem:[%s2399 + $0x7d8] sm:$0xff] %v2375
    %2652 = vst [vmem:[%s2399 + $0x7e0] sm:$0xff] %v2380
    %2653 = vst [vmem:[%s2399 + $0x7e8] sm:$0xff] %v2385
    %2654 = vst [vmem:[%s2399 + $0x7f0] sm:$0xff] %v2390
    %2655 = vst [vmem:[%s2399 + $0x7f8] sm:$0xff] %v2395
    %p2656 = scmp.eq.s32.totalorder 0, 0
    // Predicated region
    $region14: #{tpu_custom_call.1} parent=1 // pred_check
      %p2657 = pneg %p2656
    $region15: #{tpu_custom_call.1} parent=1 // pred_check_branch
      %2659 = sbr.rel (%p2657) target = $region17
    $region16: #{tpu_custom_call.1} parent=1 // pred_region
      %v2660 = vld [vmem:[#allocation2] sm:$0xff]
      %v2661 = vld [vmem:[#allocation2 + $0x8] sm:$0xff]
      %v2662 = vld [vmem:[#allocation2 + $0x10] sm:$0xff]
      %v2663 = vld [vmem:[#allocation2 + $0x18] sm:$0xff]
      %v2664 = vld [vmem:[#allocation2 + $0x20] sm:$0xff]
      %v2665 = vld [vmem:[#allocation2 + $0x28] sm:$0xff]
      %v2666 = vld [vmem:[#allocation2 + $0x30] sm:$0xff]
      %v2667 = vld [vmem:[#allocation2 + $0x38] sm:$0xff]
      %v2668 = vld [vmem:[#allocation2 + $0x40] sm:$0xff]
      %v2669 = vld [vmem:[#allocation2 + $0x48] sm:$0xff]
      %v2670 = vld [vmem:[#allocation2 + $0x50] sm:$0xff]
      %v2671 = vld [vmem:[#allocation2 + $0x58] sm:$0xff]
      %v2672 = vld [vmem:[#allocation2 + $0x60] sm:$0xff]
      %v2673 = vld [vmem:[#allocation2 + $0x68] sm:$0xff]
      %v2674 = vld [vmem:[#allocation2 + $0x70] sm:$0xff]
      %v2675 = vld [vmem:[#allocation2 + $0x78] sm:$0xff]
      %v2676 = vld [vmem:[#allocation2 + $0x80] sm:$0xff]
      %v2677 = vld [vmem:[#allocation2 + $0x88] sm:$0xff]
      %v2678 = vld [vmem:[#allocation2 + $0x90] sm:$0xff]
      %v2679 = vld [vmem:[#allocation2 + $0x98] sm:$0xff]
      %v2680 = vld [vmem:[#allocation2 + $0xa0] sm:$0xff]
      %v2681 = vld [vmem:[#allocation2 + $0xa8] sm:$0xff]
      %v2682 = vld [vmem:[#allocation2 + $0xb0] sm:$0xff]
      %v2683 = vld [vmem:[#allocation2 + $0xb8] sm:$0xff]
      %v2684 = vld [vmem:[#allocation2 + $0xc0] sm:$0xff]
      %v2685 = vld [vmem:[#allocation2 + $0xc8] sm:$0xff]
      %v2686 = vld [vmem:[#allocation2 + $0xd0] sm:$0xff]
      %v2687 = vld [vmem:[#allocation2 + $0xd8] sm:$0xff]
      %v2688 = vld [vmem:[#allocation2 + $0xe0] sm:$0xff]
      %v2689 = vld [vmem:[#allocation2 + $0xe8] sm:$0xff]
      %v2690 = vld [vmem:[#allocation2 + $0xf0] sm:$0xff]
      %v2691 = vld [vmem:[#allocation2 + $0xf8] sm:$0xff]
      %v2692 = vld [vmem:[#allocation2 + $0x100] sm:$0xff]
      %v2693 = vld [vmem:[#allocation2 + $0x108] sm:$0xff]
      %v2694 = vld [vmem:[#allocation2 + $0x110] sm:$0xff]
      %v2695 = vld [vmem:[#allocation2 + $0x118] sm:$0xff]
      %v2696 = vld [vmem:[#allocation2 + $0x120] sm:$0xff]
      %v2697 = vld [vmem:[#allocation2 + $0x128] sm:$0xff]
      %v2698 = vld [vmem:[#allocation2 + $0x130] sm:$0xff]
      %v2699 = vld [vmem:[#allocation2 + $0x138] sm:$0xff]
      %v2700 = vld [vmem:[#allocation2 + $0x140] sm:$0xff]
      %v2701 = vld [vmem:[#allocation2 + $0x148] sm:$0xff]
      %v2702 = vld [vmem:[#allocation2 + $0x150] sm:$0xff]
      %v2703 = vld [vmem:[#allocation2 + $0x158] sm:$0xff]
      %v2704 = vld [vmem:[#allocation2 + $0x160] sm:$0xff]
      %v2705 = vld [vmem:[#allocation2 + $0x168] sm:$0xff]
      %v2706 = vld [vmem:[#allocation2 + $0x170] sm:$0xff]
      %v2707 = vld [vmem:[#allocation2 + $0x178] sm:$0xff]
      %v2708 = vld [vmem:[#allocation2 + $0x180] sm:$0xff]
      %v2709 = vld [vmem:[#allocation2 + $0x188] sm:$0xff]
      %v2710 = vld [vmem:[#allocation2 + $0x190] sm:$0xff]
      %v2711 = vld [vmem:[#allocation2 + $0x198] sm:$0xff]
      %v2712 = vld [vmem:[#allocation2 + $0x1a0] sm:$0xff]
      %v2713 = vld [vmem:[#allocation2 + $0x1a8] sm:$0xff]
      %v2714 = vld [vmem:[#allocation2 + $0x1b0] sm:$0xff]
      %v2715 = vld [vmem:[#allocation2 + $0x1b8] sm:$0xff]
      %v2716 = vld [vmem:[#allocation2 + $0x1c0] sm:$0xff]
      %v2717 = vld [vmem:[#allocation2 + $0x1c8] sm:$0xff]
      %v2718 = vld [vmem:[#allocation2 + $0x1d0] sm:$0xff]
      %v2719 = vld [vmem:[#allocation2 + $0x1d8] sm:$0xff]
      %v2720 = vld [vmem:[#allocation2 + $0x1e0] sm:$0xff]
      %v2721 = vld [vmem:[#allocation2 + $0x1e8] sm:$0xff]
      %v2722 = vld [vmem:[#allocation2 + $0x1f0] sm:$0xff]
      %v2723 = vld [vmem:[#allocation2 + $0x1f8] sm:$0xff]
      %v2724 = vld [vmem:[#allocation2 + $0x200] sm:$0xff]
      %v2725 = vld [vmem:[#allocation2 + $0x208] sm:$0xff]
      %v2726 = vld [vmem:[#allocation2 + $0x210] sm:$0xff]
      %v2727 = vld [vmem:[#allocation2 + $0x218] sm:$0xff]
      %v2728 = vld [vmem:[#allocation2 + $0x220] sm:$0xff]
      %v2729 = vld [vmem:[#allocation2 + $0x228] sm:$0xff]
      %v2730 = vld [vmem:[#allocation2 + $0x230] sm:$0xff]
      %v2731 = vld [vmem:[#allocation2 + $0x238] sm:$0xff]
      %v2732 = vld [vmem:[#allocation2 + $0x240] sm:$0xff]
      %v2733 = vld [vmem:[#allocation2 + $0x248] sm:$0xff]
      %v2734 = vld [vmem:[#allocation2 + $0x250] sm:$0xff]
      %v2735 = vld [vmem:[#allocation2 + $0x258] sm:$0xff]
      %v2736 = vld [vmem:[#allocation2 + $0x260] sm:$0xff]
      %v2737 = vld [vmem:[#allocation2 + $0x268] sm:$0xff]
      %v2738 = vld [vmem:[#allocation2 + $0x270] sm:$0xff]
      %v2739 = vld [vmem:[#allocation2 + $0x278] sm:$0xff]
      %v2740 = vld [vmem:[#allocation2 + $0x280] sm:$0xff]
      %v2741 = vld [vmem:[#allocation2 + $0x288] sm:$0xff]
      %v2742 = vld [vmem:[#allocation2 + $0x290] sm:$0xff]
      %v2743 = vld [vmem:[#allocation2 + $0x298] sm:$0xff]
      %v2744 = vld [vmem:[#allocation2 + $0x2a0] sm:$0xff]
      %v2745 = vld [vmem:[#allocation2 + $0x2a8] sm:$0xff]
      %v2746 = vld [vmem:[#allocation2 + $0x2b0] sm:$0xff]
      %v2747 = vld [vmem:[#allocation2 + $0x2b8] sm:$0xff]
      %v2748 = vld [vmem:[#allocation2 + $0x2c0] sm:$0xff]
      %v2749 = vld [vmem:[#allocation2 + $0x2c8] sm:$0xff]
      %v2750 = vld [vmem:[#allocation2 + $0x2d0] sm:$0xff]
      %v2751 = vld [vmem:[#allocation2 + $0x2d8] sm:$0xff]
      %v2752 = vld [vmem:[#allocation2 + $0x2e0] sm:$0xff]
      %v2753 = vld [vmem:[#allocation2 + $0x2e8] sm:$0xff]
      %v2754 = vld [vmem:[#allocation2 + $0x2f0] sm:$0xff]
      %v2755 = vld [vmem:[#allocation2 + $0x2f8] sm:$0xff]
      %v2756 = vld [vmem:[#allocation2 + $0x300] sm:$0xff]
      %v2757 = vld [vmem:[#allocation2 + $0x308] sm:$0xff]
      %v2758 = vld [vmem:[#allocation2 + $0x310] sm:$0xff]
      %v2759 = vld [vmem:[#allocation2 + $0x318] sm:$0xff]
      %v2760 = vld [vmem:[#allocation2 + $0x320] sm:$0xff]
      %v2761 = vld [vmem:[#allocation2 + $0x328] sm:$0xff]
      %v2762 = vld [vmem:[#allocation2 + $0x330] sm:$0xff]
      %v2763 = vld [vmem:[#allocation2 + $0x338] sm:$0xff]
      %v2764 = vld [vmem:[#allocation2 + $0x340] sm:$0xff]
      %v2765 = vld [vmem:[#allocation2 + $0x348] sm:$0xff]
      %v2766 = vld [vmem:[#allocation2 + $0x350] sm:$0xff]
      %v2767 = vld [vmem:[#allocation2 + $0x358] sm:$0xff]
      %v2768 = vld [vmem:[#allocation2 + $0x360] sm:$0xff]
      %v2769 = vld [vmem:[#allocation2 + $0x368] sm:$0xff]
      %v2770 = vld [vmem:[#allocation2 + $0x370] sm:$0xff]
      %v2771 = vld [vmem:[#allocation2 + $0x378] sm:$0xff]
      %v2772 = vld [vmem:[#allocation2 + $0x380] sm:$0xff]
      %v2773 = vld [vmem:[#allocation2 + $0x388] sm:$0xff]
      %v2774 = vld [vmem:[#allocation2 + $0x390] sm:$0xff]
      %v2775 = vld [vmem:[#allocation2 + $0x398] sm:$0xff]
      %v2776 = vld [vmem:[#allocation2 + $0x3a0] sm:$0xff]
      %v2777 = vld [vmem:[#allocation2 + $0x3a8] sm:$0xff]
      %v2778 = vld [vmem:[#allocation2 + $0x3b0] sm:$0xff]
      %v2779 = vld [vmem:[#allocation2 + $0x3b8] sm:$0xff]
      %v2780 = vld [vmem:[#allocation2 + $0x3c0] sm:$0xff]
      %v2781 = vld [vmem:[#allocation2 + $0x3c8] sm:$0xff]
      %v2782 = vld [vmem:[#allocation2 + $0x3d0] sm:$0xff]
      %v2783 = vld [vmem:[#allocation2 + $0x3d8] sm:$0xff]
      %v2784 = vld [vmem:[#allocation2 + $0x3e0] sm:$0xff]
      %v2785 = vld [vmem:[#allocation2 + $0x3e8] sm:$0xff]
      %v2786 = vld [vmem:[#allocation2 + $0x3f0] sm:$0xff]
      %v2787 = vld [vmem:[#allocation2 + $0x3f8] sm:$0xff]
      %v2788 = vld [vmem:[#allocation2 + $0x400] sm:$0xff]
      %v2789 = vld [vmem:[#allocation2 + $0x408] sm:$0xff]
      %v2790 = vld [vmem:[#allocation2 + $0x410] sm:$0xff]
      %v2791 = vld [vmem:[#allocation2 + $0x418] sm:$0xff]
      %v2792 = vld [vmem:[#allocation2 + $0x420] sm:$0xff]
      %v2793 = vld [vmem:[#allocation2 + $0x428] sm:$0xff]
      %v2794 = vld [vmem:[#allocation2 + $0x430] sm:$0xff]
      %v2795 = vld [vmem:[#allocation2 + $0x438] sm:$0xff]
      %v2796 = vld [vmem:[#allocation2 + $0x440] sm:$0xff]
      %v2797 = vld [vmem:[#allocation2 + $0x448] sm:$0xff]
      %v2798 = vld [vmem:[#allocation2 + $0x450] sm:$0xff]
      %v2799 = vld [vmem:[#allocation2 + $0x458] sm:$0xff]
      %v2800 = vld [vmem:[#allocation2 + $0x460] sm:$0xff]
      %v2801 = vld [vmem:[#allocation2 + $0x468] sm:$0xff]
      %v2802 = vld [vmem:[#allocation2 + $0x470] sm:$0xff]
      %v2803 = vld [vmem:[#allocation2 + $0x478] sm:$0xff]
      %v2804 = vld [vmem:[#allocation2 + $0x480] sm:$0xff]
      %v2805 = vld [vmem:[#allocation2 + $0x488] sm:$0xff]
      %v2806 = vld [vmem:[#allocation2 + $0x490] sm:$0xff]
      %v2807 = vld [vmem:[#allocation2 + $0x498] sm:$0xff]
      %v2808 = vld [vmem:[#allocation2 + $0x4a0] sm:$0xff]
      %v2809 = vld [vmem:[#allocation2 + $0x4a8] sm:$0xff]
      %v2810 = vld [vmem:[#allocation2 + $0x4b0] sm:$0xff]
      %v2811 = vld [vmem:[#allocation2 + $0x4b8] sm:$0xff]
      %v2812 = vld [vmem:[#allocation2 + $0x4c0] sm:$0xff]
      %v2813 = vld [vmem:[#allocation2 + $0x4c8] sm:$0xff]
      %v2814 = vld [vmem:[#allocation2 + $0x4d0] sm:$0xff]
      %v2815 = vld [vmem:[#allocation2 + $0x4d8] sm:$0xff]
      %v2816 = vld [vmem:[#allocation2 + $0x4e0] sm:$0xff]
      %v2817 = vld [vmem:[#allocation2 + $0x4e8] sm:$0xff]
      %v2818 = vld [vmem:[#allocation2 + $0x4f0] sm:$0xff]
      %v2819 = vld [vmem:[#allocation2 + $0x4f8] sm:$0xff]
      %v2820 = vld [vmem:[#allocation2 + $0x500] sm:$0xff]
      %v2821 = vld [vmem:[#allocation2 + $0x508] sm:$0xff]
      %v2822 = vld [vmem:[#allocation2 + $0x510] sm:$0xff]
      %v2823 = vld [vmem:[#allocation2 + $0x518] sm:$0xff]
      %v2824 = vld [vmem:[#allocation2 + $0x520] sm:$0xff]
      %v2825 = vld [vmem:[#allocation2 + $0x528] sm:$0xff]
      %v2826 = vld [vmem:[#allocation2 + $0x530] sm:$0xff]
      %v2827 = vld [vmem:[#allocation2 + $0x538] sm:$0xff]
      %v2828 = vld [vmem:[#allocation2 + $0x540] sm:$0xff]
      %v2829 = vld [vmem:[#allocation2 + $0x548] sm:$0xff]
      %v2830 = vld [vmem:[#allocation2 + $0x550] sm:$0xff]
      %v2831 = vld [vmem:[#allocation2 + $0x558] sm:$0xff]
      %v2832 = vld [vmem:[#allocation2 + $0x560] sm:$0xff]
      %v2833 = vld [vmem:[#allocation2 + $0x568] sm:$0xff]
      %v2834 = vld [vmem:[#allocation2 + $0x570] sm:$0xff]
      %v2835 = vld [vmem:[#allocation2 + $0x578] sm:$0xff]
      %v2836 = vld [vmem:[#allocation2 + $0x580] sm:$0xff]
      %v2837 = vld [vmem:[#allocation2 + $0x588] sm:$0xff]
      %v2838 = vld [vmem:[#allocation2 + $0x590] sm:$0xff]
      %v2839 = vld [vmem:[#allocation2 + $0x598] sm:$0xff]
      %v2840 = vld [vmem:[#allocation2 + $0x5a0] sm:$0xff]
      %v2841 = vld [vmem:[#allocation2 + $0x5a8] sm:$0xff]
      %v2842 = vld [vmem:[#allocation2 + $0x5b0] sm:$0xff]
      %v2843 = vld [vmem:[#allocation2 + $0x5b8] sm:$0xff]
      %v2844 = vld [vmem:[#allocation2 + $0x5c0] sm:$0xff]
      %v2845 = vld [vmem:[#allocation2 + $0x5c8] sm:$0xff]
      %v2846 = vld [vmem:[#allocation2 + $0x5d0] sm:$0xff]
      %v2847 = vld [vmem:[#allocation2 + $0x5d8] sm:$0xff]
      %v2848 = vld [vmem:[#allocation2 + $0x5e0] sm:$0xff]
      %v2849 = vld [vmem:[#allocation2 + $0x5e8] sm:$0xff]
      %v2850 = vld [vmem:[#allocation2 + $0x5f0] sm:$0xff]
      %v2851 = vld [vmem:[#allocation2 + $0x5f8] sm:$0xff]
      %v2852 = vld [vmem:[#allocation2 + $0x600] sm:$0xff]
      %v2853 = vld [vmem:[#allocation2 + $0x608] sm:$0xff]
      %v2854 = vld [vmem:[#allocation2 + $0x610] sm:$0xff]
      %v2855 = vld [vmem:[#allocation2 + $0x618] sm:$0xff]
      %v2856 = vld [vmem:[#allocation2 + $0x620] sm:$0xff]
      %v2857 = vld [vmem:[#allocation2 + $0x628] sm:$0xff]
      %v2858 = vld [vmem:[#allocation2 + $0x630] sm:$0xff]
      %v2859 = vld [vmem:[#allocation2 + $0x638] sm:$0xff]
      %v2860 = vld [vmem:[#allocation2 + $0x640] sm:$0xff]
      %v2861 = vld [vmem:[#allocation2 + $0x648] sm:$0xff]
      %v2862 = vld [vmem:[#allocation2 + $0x650] sm:$0xff]
      %v2863 = vld [vmem:[#allocation2 + $0x658] sm:$0xff]
      %v2864 = vld [vmem:[#allocation2 + $0x660] sm:$0xff]
      %v2865 = vld [vmem:[#allocation2 + $0x668] sm:$0xff]
      %v2866 = vld [vmem:[#allocation2 + $0x670] sm:$0xff]
      %v2867 = vld [vmem:[#allocation2 + $0x678] sm:$0xff]
      %v2868 = vld [vmem:[#allocation2 + $0x680] sm:$0xff]
      %v2869 = vld [vmem:[#allocation2 + $0x688] sm:$0xff]
      %v2870 = vld [vmem:[#allocation2 + $0x690] sm:$0xff]
      %v2871 = vld [vmem:[#allocation2 + $0x698] sm:$0xff]
      %v2872 = vld [vmem:[#allocation2 + $0x6a0] sm:$0xff]
      %v2873 = vld [vmem:[#allocation2 + $0x6a8] sm:$0xff]
      %v2874 = vld [vmem:[#allocation2 + $0x6b0] sm:$0xff]
      %v2875 = vld [vmem:[#allocation2 + $0x6b8] sm:$0xff]
      %v2876 = vld [vmem:[#allocation2 + $0x6c0] sm:$0xff]
      %v2877 = vld [vmem:[#allocation2 + $0x6c8] sm:$0xff]
      %v2878 = vld [vmem:[#allocation2 + $0x6d0] sm:$0xff]
      %v2879 = vld [vmem:[#allocation2 + $0x6d8] sm:$0xff]
      %v2880 = vld [vmem:[#allocation2 + $0x6e0] sm:$0xff]
      %v2881 = vld [vmem:[#allocation2 + $0x6e8] sm:$0xff]
      %v2882 = vld [vmem:[#allocation2 + $0x6f0] sm:$0xff]
      %v2883 = vld [vmem:[#allocation2 + $0x6f8] sm:$0xff]
      %v2884 = vld [vmem:[#allocation2 + $0x700] sm:$0xff]
      %v2885 = vld [vmem:[#allocation2 + $0x708] sm:$0xff]
      %v2886 = vld [vmem:[#allocation2 + $0x710] sm:$0xff]
      %v2887 = vld [vmem:[#allocation2 + $0x718] sm:$0xff]
      %v2888 = vld [vmem:[#allocation2 + $0x720] sm:$0xff]
      %v2889 = vld [vmem:[#allocation2 + $0x728] sm:$0xff]
      %v2890 = vld [vmem:[#allocation2 + $0x730] sm:$0xff]
      %v2891 = vld [vmem:[#allocation2 + $0x738] sm:$0xff]
      %v2892 = vld [vmem:[#allocation2 + $0x740] sm:$0xff]
      %v2893 = vld [vmem:[#allocation2 + $0x748] sm:$0xff]
      %v2894 = vld [vmem:[#allocation2 + $0x750] sm:$0xff]
      %v2895 = vld [vmem:[#allocation2 + $0x758] sm:$0xff]
      %v2896 = vld [vmem:[#allocation2 + $0x760] sm:$0xff]
      %v2897 = vld [vmem:[#allocation2 + $0x768] sm:$0xff]
      %v2898 = vld [vmem:[#allocation2 + $0x770] sm:$0xff]
      %v2899 = vld [vmem:[#allocation2 + $0x778] sm:$0xff]
      %v2900 = vld [vmem:[#allocation2 + $0x780] sm:$0xff]
      %v2901 = vld [vmem:[#allocation2 + $0x788] sm:$0xff]
      %v2902 = vld [vmem:[#allocation2 + $0x790] sm:$0xff]
      %v2903 = vld [vmem:[#allocation2 + $0x798] sm:$0xff]
      %v2904 = vld [vmem:[#allocation2 + $0x7a0] sm:$0xff]
      %v2905 = vld [vmem:[#allocation2 + $0x7a8] sm:$0xff]
      %v2906 = vld [vmem:[#allocation2 + $0x7b0] sm:$0xff]
      %v2907 = vld [vmem:[#allocation2 + $0x7b8] sm:$0xff]
      %v2908 = vld [vmem:[#allocation2 + $0x7c0] sm:$0xff]
      %v2909 = vld [vmem:[#allocation2 + $0x7c8] sm:$0xff]
      %v2910 = vld [vmem:[#allocation2 + $0x7d0] sm:$0xff]
      %v2911 = vld [vmem:[#allocation2 + $0x7d8] sm:$0xff]
      %v2912 = vld [vmem:[#allocation2 + $0x7e0] sm:$0xff]
      %v2913 = vld [vmem:[#allocation2 + $0x7e8] sm:$0xff]
      %v2914 = vld [vmem:[#allocation2 + $0x7f0] sm:$0xff]
      %v2915 = vld [vmem:[#allocation2 + $0x7f8] sm:$0xff]
      %v2916 = vadd.f32 %v2660, %v2661
      %v2917 = vadd.f32 %v2916, %v2662
      %v2918 = vadd.f32 %v2917, %v2663
      %v2919 = vadd.f32 %v2918, %v2664
      %v2920 = vadd.f32 %v2919, %v2665
      %v2921 = vadd.f32 %v2920, %v2666
      %v2922 = vadd.f32 %v2921, %v2667
      %v2923 = vadd.f32 %v2922, %v2668
      %v2924 = vadd.f32 %v2923, %v2669
      %v2925 = vadd.f32 %v2924, %v2670
      %v2926 = vadd.f32 %v2925, %v2671
      %v2927 = vadd.f32 %v2926, %v2672
      %v2928 = vadd.f32 %v2927, %v2673
      %v2929 = vadd.f32 %v2928, %v2674
      %v2930 = vadd.f32 %v2929, %v2675
      %v2931 = vadd.f32 %v2930, %v2676
      %v2932 = vadd.f32 %v2931, %v2677
      %v2933 = vadd.f32 %v2932, %v2678
      %v2934 = vadd.f32 %v2933, %v2679
      %v2935 = vadd.f32 %v2934, %v2680
      %v2936 = vadd.f32 %v2935, %v2681
      %v2937 = vadd.f32 %v2936, %v2682
      %v2938 = vadd.f32 %v2937, %v2683
      %v2939 = vadd.f32 %v2938, %v2684
      %v2940 = vadd.f32 %v2939, %v2685
      %v2941 = vadd.f32 %v2940, %v2686
      %v2942 = vadd.f32 %v2941, %v2687
      %v2943 = vadd.f32 %v2942, %v2688
      %v2944 = vadd.f32 %v2943, %v2689
      %v2945 = vadd.f32 %v2944, %v2690
      %v2946 = vadd.f32 %v2945, %v2691
      %v2947 = vadd.f32 %v2946, %v2692
      %v2948 = vadd.f32 %v2947, %v2693
      %v2949 = vadd.f32 %v2948, %v2694
      %v2950 = vadd.f32 %v2949, %v2695
      %v2951 = vadd.f32 %v2950, %v2696
      %v2952 = vadd.f32 %v2951, %v2697
      %v2953 = vadd.f32 %v2952, %v2698
      %v2954 = vadd.f32 %v2953, %v2699
      %v2955 = vadd.f32 %v2954, %v2700
      %v2956 = vadd.f32 %v2955, %v2701
      %v2957 = vadd.f32 %v2956, %v2702
      %v2958 = vadd.f32 %v2957, %v2703
      %v2959 = vadd.f32 %v2958, %v2704
      %v2960 = vadd.f32 %v2959, %v2705
      %v2961 = vadd.f32 %v2960, %v2706
      %v2962 = vadd.f32 %v2961, %v2707
      %v2963 = vadd.f32 %v2962, %v2708
      %v2964 = vadd.f32 %v2963, %v2709
      %v2965 = vadd.f32 %v2964, %v2710
      %v2966 = vadd.f32 %v2965, %v2711
      %v2967 = vadd.f32 %v2966, %v2712
      %v2968 = vadd.f32 %v2967, %v2713
      %v2969 = vadd.f32 %v2968, %v2714
      %v2970 = vadd.f32 %v2969, %v2715
      %v2971 = vadd.f32 %v2970, %v2716
      %v2972 = vadd.f32 %v2971, %v2717
      %v2973 = vadd.f32 %v2972, %v2718
      %v2974 = vadd.f32 %v2973, %v2719
      %v2975 = vadd.f32 %v2974, %v2720
      %v2976 = vadd.f32 %v2975, %v2721
      %v2977 = vadd.f32 %v2976, %v2722
      %v2978 = vadd.f32 %v2977, %v2723
      %v2979 = vadd.f32 %v2978, %v2724
      %v2980 = vadd.f32 %v2979, %v2725
      %v2981 = vadd.f32 %v2980, %v2726
      %v2982 = vadd.f32 %v2981, %v2727
      %v2983 = vadd.f32 %v2982, %v2728
      %v2984 = vadd.f32 %v2983, %v2729
      %v2985 = vadd.f32 %v2984, %v2730
      %v2986 = vadd.f32 %v2985, %v2731
      %v2987 = vadd.f32 %v2986, %v2732
      %v2988 = vadd.f32 %v2987, %v2733
      %v2989 = vadd.f32 %v2988, %v2734
      %v2990 = vadd.f32 %v2989, %v2735
      %v2991 = vadd.f32 %v2990, %v2736
      %v2992 = vadd.f32 %v2991, %v2737
      %v2993 = vadd.f32 %v2992, %v2738
      %v2994 = vadd.f32 %v2993, %v2739
      %v2995 = vadd.f32 %v2994, %v2740
      %v2996 = vadd.f32 %v2995, %v2741
      %v2997 = vadd.f32 %v2996, %v2742
      %v2998 = vadd.f32 %v2997, %v2743
      %v2999 = vadd.f32 %v2998, %v2744
      %v3000 = vadd.f32 %v2999, %v2745
      %v3001 = vadd.f32 %v3000, %v2746
      %v3002 = vadd.f32 %v3001, %v2747
      %v3003 = vadd.f32 %v3002, %v2748
      %v3004 = vadd.f32 %v3003, %v2749
      %v3005 = vadd.f32 %v3004, %v2750
      %v3006 = vadd.f32 %v3005, %v2751
      %v3007 = vadd.f32 %v3006, %v2752
      %v3008 = vadd.f32 %v3007, %v2753
      %v3009 = vadd.f32 %v3008, %v2754
      %v3010 = vadd.f32 %v3009, %v2755
      %v3011 = vadd.f32 %v3010, %v2756
      %v3012 = vadd.f32 %v3011, %v2757
      %v3013 = vadd.f32 %v3012, %v2758
      %v3014 = vadd.f32 %v3013, %v2759
      %v3015 = vadd.f32 %v3014, %v2760
      %v3016 = vadd.f32 %v3015, %v2761
      %v3017 = vadd.f32 %v3016, %v2762
      %v3018 = vadd.f32 %v3017, %v2763
      %v3019 = vadd.f32 %v3018, %v2764
      %v3020 = vadd.f32 %v3019, %v2765
      %v3021 = vadd.f32 %v3020, %v2766
      %v3022 = vadd.f32 %v3021, %v2767
      %v3023 = vadd.f32 %v3022, %v2768
      %v3024 = vadd.f32 %v3023, %v2769
      %v3025 = vadd.f32 %v3024, %v2770
      %v3026 = vadd.f32 %v3025, %v2771
      %v3027 = vadd.f32 %v3026, %v2772
      %v3028 = vadd.f32 %v3027, %v2773
      %v3029 = vadd.f32 %v3028, %v2774
      %v3030 = vadd.f32 %v3029, %v2775
      %v3031 = vadd.f32 %v3030, %v2776
      %v3032 = vadd.f32 %v3031, %v2777
      %v3033 = vadd.f32 %v3032, %v2778
      %v3034 = vadd.f32 %v3033, %v2779
      %v3035 = vadd.f32 %v3034, %v2780
      %v3036 = vadd.f32 %v3035, %v2781
      %v3037 = vadd.f32 %v3036, %v2782
      %v3038 = vadd.f32 %v3037, %v2783
      %v3039 = vadd.f32 %v3038, %v2784
      %v3040 = vadd.f32 %v3039, %v2785
      %v3041 = vadd.f32 %v3040, %v2786
      %v3042 = vadd.f32 %v3041, %v2787
      %v3043 = vadd.f32 %v3042, %v2788
      %v3044 = vadd.f32 %v3043, %v2789
      %v3045 = vadd.f32 %v3044, %v2790
      %v3046 = vadd.f32 %v3045, %v2791
      %v3047 = vadd.f32 %v3046, %v2792
      %v3048 = vadd.f32 %v3047, %v2793
      %v3049 = vadd.f32 %v3048, %v2794
      %v3050 = vadd.f32 %v3049, %v2795
      %v3051 = vadd.f32 %v3050, %v2796
      %v3052 = vadd.f32 %v3051, %v2797
      %v3053 = vadd.f32 %v3052, %v2798
      %v3054 = vadd.f32 %v3053, %v2799
      %v3055 = vadd.f32 %v3054, %v2800
      %v3056 = vadd.f32 %v3055, %v2801
      %v3057 = vadd.f32 %v3056, %v2802
      %v3058 = vadd.f32 %v3057, %v2803
      %v3059 = vadd.f32 %v3058, %v2804
      %v3060 = vadd.f32 %v3059, %v2805
      %v3061 = vadd.f32 %v3060, %v2806
      %v3062 = vadd.f32 %v3061, %v2807
      %v3063 = vadd.f32 %v3062, %v2808
      %v3064 = vadd.f32 %v3063, %v2809
      %v3065 = vadd.f32 %v3064, %v2810
      %v3066 = vadd.f32 %v3065, %v2811
      %v3067 = vadd.f32 %v3066, %v2812
      %v3068 = vadd.f32 %v3067, %v2813
      %v3069 = vadd.f32 %v3068, %v2814
      %v3070 = vadd.f32 %v3069, %v2815
      %v3071 = vadd.f32 %v3070, %v2816
      %v3072 = vadd.f32 %v3071, %v2817
      %v3073 = vadd.f32 %v3072, %v2818
      %v3074 = vadd.f32 %v3073, %v2819
      %v3075 = vadd.f32 %v3074, %v2820
      %v3076 = vadd.f32 %v3075, %v2821
      %v3077 = vadd.f32 %v3076, %v2822
      %v3078 = vadd.f32 %v3077, %v2823
      %v3079 = vadd.f32 %v3078, %v2824
      %v3080 = vadd.f32 %v3079, %v2825
      %v3081 = vadd.f32 %v3080, %v2826
      %v3082 = vadd.f32 %v3081, %v2827
      %v3083 = vadd.f32 %v3082, %v2828
      %v3084 = vadd.f32 %v3083, %v2829
      %v3085 = vadd.f32 %v3084, %v2830
      %v3086 = vadd.f32 %v3085, %v2831
      %v3087 = vadd.f32 %v3086, %v2832
      %v3088 = vadd.f32 %v3087, %v2833
      %v3089 = vadd.f32 %v3088, %v2834
      %v3090 = vadd.f32 %v3089, %v2835
      %v3091 = vadd.f32 %v3090, %v2836
      %v3092 = vadd.f32 %v3091, %v2837
      %v3093 = vadd.f32 %v3092, %v2838
      %v3094 = vadd.f32 %v3093, %v2839
      %v3095 = vadd.f32 %v3094, %v2840
      %v3096 = vadd.f32 %v3095, %v2841
      %v3097 = vadd.f32 %v3096, %v2842
      %v3098 = vadd.f32 %v3097, %v2843
      %v3099 = vadd.f32 %v3098, %v2844
      %v3100 = vadd.f32 %v3099, %v2845
      %v3101 = vadd.f32 %v3100, %v2846
      %v3102 = vadd.f32 %v3101, %v2847
      %v3103 = vadd.f32 %v3102, %v2848
      %v3104 = vadd.f32 %v3103, %v2849
      %v3105 = vadd.f32 %v3104, %v2850
      %v3106 = vadd.f32 %v3105, %v2851
      %v3107 = vadd.f32 %v3106, %v2852
      %v3108 = vadd.f32 %v3107, %v2853
      %v3109 = vadd.f32 %v3108, %v2854
      %v3110 = vadd.f32 %v3109, %v2855
      %v3111 = vadd.f32 %v3110, %v2856
      %v3112 = vadd.f32 %v3111, %v2857
      %v3113 = vadd.f32 %v3112, %v2858
      %v3114 = vadd.f32 %v3113, %v2859
      %v3115 = vadd.f32 %v3114, %v2860
      %v3116 = vadd.f32 %v3115, %v2861
      %v3117 = vadd.f32 %v3116, %v2862
      %v3118 = vadd.f32 %v3117, %v2863
      %v3119 = vadd.f32 %v3118, %v2864
      %v3120 = vadd.f32 %v3119, %v2865
      %v3121 = vadd.f32 %v3120, %v2866
      %v3122 = vadd.f32 %v3121, %v2867
      %v3123 = vadd.f32 %v3122, %v2868
      %v3124 = vadd.f32 %v3123, %v2869
      %v3125 = vadd.f32 %v3124, %v2870
      %v3126 = vadd.f32 %v3125, %v2871
      %v3127 = vadd.f32 %v3126, %v2872
      %v3128 = vadd.f32 %v3127, %v2873
      %v3129 = vadd.f32 %v3128, %v2874
      %v3130 = vadd.f32 %v3129, %v2875
      %v3131 = vadd.f32 %v3130, %v2876
      %v3132 = vadd.f32 %v3131, %v2877
      %v3133 = vadd.f32 %v3132, %v2878
      %v3134 = vadd.f32 %v3133, %v2879
      %v3135 = vadd.f32 %v3134, %v2880
      %v3136 = vadd.f32 %v3135, %v2881
      %v3137 = vadd.f32 %v3136, %v2882
      %v3138 = vadd.f32 %v3137, %v2883
      %v3139 = vadd.f32 %v3138, %v2884
      %v3140 = vadd.f32 %v3139, %v2885
      %v3141 = vadd.f32 %v3140, %v2886
      %v3142 = vadd.f32 %v3141, %v2887
      %v3143 = vadd.f32 %v3142, %v2888
      %v3144 = vadd.f32 %v3143, %v2889
      %v3145 = vadd.f32 %v3144, %v2890
      %v3146 = vadd.f32 %v3145, %v2891
      %v3147 = vadd.f32 %v3146, %v2892
      %v3148 = vadd.f32 %v3147, %v2893
      %v3149 = vadd.f32 %v3148, %v2894
      %v3150 = vadd.f32 %v3149, %v2895
      %v3151 = vadd.f32 %v3150, %v2896
      %v3152 = vadd.f32 %v3151, %v2897
      %v3153 = vadd.f32 %v3152, %v2898
      %v3154 = vadd.f32 %v3153, %v2899
      %v3155 = vadd.f32 %v3154, %v2900
      %v3156 = vadd.f32 %v3155, %v2901
      %v3157 = vadd.f32 %v3156, %v2902
      %v3158 = vadd.f32 %v3157, %v2903
      %v3159 = vadd.f32 %v3158, %v2904
      %v3160 = vadd.f32 %v3159, %v2905
      %v3161 = vadd.f32 %v3160, %v2906
      %v3162 = vadd.f32 %v3161, %v2907
      %v3163 = vadd.f32 %v3162, %v2908
      %v3164 = vadd.f32 %v3163, %v2909
      %v3165 = vadd.f32 %v3164, %v2910
      %v3166 = vadd.f32 %v3165, %v2911
      %v3167 = vadd.f32 %v3166, %v2912
      %v3168 = vadd.f32 %v3167, %v2913
      %v3169 = vadd.f32 %v3168, %v2914
      %v3170 = vadd.f32 %v3169, %v2915
      %v3171 = vrot.slane %v3170, 4
      %v3172 = vadd.f32 %v3170, %v3171
      %v3173 = vrot.slane %v3172, 2
      %v3174 = vadd.f32 %v3172, %v3173
      %v3175 = vrot.slane %v3174, 1
      %v3176 = vadd.f32 %v3174, %v3175
      %v3177 = vmul.f32 %v3176, 0.00048828125
      %v3178 = vsub.f32 %v2660, %v3177
      %v3179 = vsub.f32 %v2661, %v3177
      %v3180 = vsub.f32 %v2662, %v3177
      %v3181 = vsub.f32 %v2663, %v3177
      %v3182 = vsub.f32 %v2664, %v3177
      %v3183 = vsub.f32 %v2665, %v3177
      %v3184 = vsub.f32 %v2666, %v3177
      %v3185 = vsub.f32 %v2667, %v3177
      %v3186 = vsub.f32 %v2668, %v3177
      %v3187 = vsub.f32 %v2669, %v3177
      %v3188 = vsub.f32 %v2670, %v3177
      %v3189 = vsub.f32 %v2671, %v3177
      %v3190 = vsub.f32 %v2672, %v3177
      %v3191 = vsub.f32 %v2673, %v3177
      %v3192 = vsub.f32 %v2674, %v3177
      %v3193 = vsub.f32 %v2675, %v3177
      %v3194 = vsub.f32 %v2676, %v3177
      %v3195 = vsub.f32 %v2677, %v3177
      %v3196 = vsub.f32 %v2678, %v3177
      %v3197 = vsub.f32 %v2679, %v3177
      %v3198 = vsub.f32 %v2680, %v3177
      %v3199 = vsub.f32 %v2681, %v3177
      %v3200 = vsub.f32 %v2682, %v3177
      %v3201 = vsub.f32 %v2683, %v3177
      %v3202 = vsub.f32 %v2684, %v3177
      %v3203 = vsub.f32 %v2685, %v3177
      %v3204 = vsub.f32 %v2686, %v3177
      %v3205 = vsub.f32 %v2687, %v3177
      %v3206 = vsub.f32 %v2688, %v3177
      %v3207 = vsub.f32 %v2689, %v3177
      %v3208 = vsub.f32 %v2690, %v3177
      %v3209 = vsub.f32 %v2691, %v3177
      %v3210 = vsub.f32 %v2692, %v3177
      %v3211 = vsub.f32 %v2693, %v3177
      %v3212 = vsub.f32 %v2694, %v3177
      %v3213 = vsub.f32 %v2695, %v3177
      %v3214 = vsub.f32 %v2696, %v3177
      %v3215 = vsub.f32 %v2697, %v3177
      %v3216 = vsub.f32 %v2698, %v3177
      %v3217 = vsub.f32 %v2699, %v3177
      %v3218 = vsub.f32 %v2700, %v3177
      %v3219 = vsub.f32 %v2701, %v3177
      %v3220 = vsub.f32 %v2702, %v3177
      %v3221 = vsub.f32 %v2703, %v3177
      %v3222 = vsub.f32 %v2704, %v3177
      %v3223 = vsub.f32 %v2705, %v3177
      %v3224 = vsub.f32 %v2706, %v3177
      %v3225 = vsub.f32 %v2707, %v3177
      %v3226 = vsub.f32 %v2708, %v3177
      %v3227 = vsub.f32 %v2709, %v3177
      %v3228 = vsub.f32 %v2710, %v3177
      %v3229 = vsub.f32 %v2711, %v3177
      %v3230 = vsub.f32 %v2712, %v3177
      %v3231 = vsub.f32 %v2713, %v3177
      %v3232 = vsub.f32 %v2714, %v3177
      %v3233 = vsub.f32 %v2715, %v3177
      %v3234 = vsub.f32 %v2716, %v3177
      %v3235 = vsub.f32 %v2717, %v3177
      %v3236 = vsub.f32 %v2718, %v3177
      %v3237 = vsub.f32 %v2719, %v3177
      %v3238 = vsub.f32 %v2720, %v3177
      %v3239 = vsub.f32 %v2721, %v3177
      %v3240 = vsub.f32 %v2722, %v3177
      %v3241 = vsub.f32 %v2723, %v3177
      %v3242 = vsub.f32 %v2724, %v3177
      %v3243 = vsub.f32 %v2725, %v3177
      %v3244 = vsub.f32 %v2726, %v3177
      %v3245 = vsub.f32 %v2727, %v3177
      %v3246 = vsub.f32 %v2728, %v3177
      %v3247 = vsub.f32 %v2729, %v3177
      %v3248 = vsub.f32 %v2730, %v3177
      %v3249 = vsub.f32 %v2731, %v3177
      %v3250 = vsub.f32 %v2732, %v3177
      %v3251 = vsub.f32 %v2733, %v3177
      %v3252 = vsub.f32 %v2734, %v3177
      %v3253 = vsub.f32 %v2735, %v3177
      %v3254 = vsub.f32 %v2736, %v3177
      %v3255 = vsub.f32 %v2737, %v3177
      %v3256 = vsub.f32 %v2738, %v3177
      %v3257 = vsub.f32 %v2739, %v3177
      %v3258 = vsub.f32 %v2740, %v3177
      %v3259 = vsub.f32 %v2741, %v3177
      %v3260 = vsub.f32 %v2742, %v3177
      %v3261 = vsub.f32 %v2743, %v3177
      %v3262 = vsub.f32 %v2744, %v3177
      %v3263 = vsub.f32 %v2745, %v3177
      %v3264 = vsub.f32 %v2746, %v3177
      %v3265 = vsub.f32 %v2747, %v3177
      %v3266 = vsub.f32 %v2748, %v3177
      %v3267 = vsub.f32 %v2749, %v3177
      %v3268 = vsub.f32 %v2750, %v3177
      %v3269 = vsub.f32 %v2751, %v3177
      %v3270 = vsub.f32 %v2752, %v3177
      %v3271 = vsub.f32 %v2753, %v3177
      %v3272 = vsub.f32 %v2754, %v3177
      %v3273 = vsub.f32 %v2755, %v3177
      %v3274 = vsub.f32 %v2756, %v3177
      %v3275 = vsub.f32 %v2757, %v3177
      %v3276 = vsub.f32 %v2758, %v3177
      %v3277 = vsub.f32 %v2759, %v3177
      %v3278 = vsub.f32 %v2760, %v3177
      %v3279 = vsub.f32 %v2761, %v3177
      %v3280 = vsub.f32 %v2762, %v3177
      %v3281 = vsub.f32 %v2763, %v3177
      %v3282 = vsub.f32 %v2764, %v3177
      %v3283 = vsub.f32 %v2765, %v3177
      %v3284 = vsub.f32 %v2766, %v3177
      %v3285 = vsub.f32 %v2767, %v3177
      %v3286 = vsub.f32 %v2768, %v3177
      %v3287 = vsub.f32 %v2769, %v3177
      %v3288 = vsub.f32 %v2770, %v3177
      %v3289 = vsub.f32 %v2771, %v3177
      %v3290 = vsub.f32 %v2772, %v3177
      %v3291 = vsub.f32 %v2773, %v3177
      %v3292 = vsub.f32 %v2774, %v3177
      %v3293 = vsub.f32 %v2775, %v3177
      %v3294 = vsub.f32 %v2776, %v3177
      %v3295 = vsub.f32 %v2777, %v3177
      %v3296 = vsub.f32 %v2778, %v3177
      %v3297 = vsub.f32 %v2779, %v3177
      %v3298 = vsub.f32 %v2780, %v3177
      %v3299 = vsub.f32 %v2781, %v3177
      %v3300 = vsub.f32 %v2782, %v3177
      %v3301 = vsub.f32 %v2783, %v3177
      %v3302 = vsub.f32 %v2784, %v3177
      %v3303 = vsub.f32 %v2785, %v3177
      %v3304 = vsub.f32 %v2786, %v3177
      %v3305 = vsub.f32 %v2787, %v3177
      %v3306 = vsub.f32 %v2788, %v3177
      %v3307 = vsub.f32 %v2789, %v3177
      %v3308 = vsub.f32 %v2790, %v3177
      %v3309 = vsub.f32 %v2791, %v3177
      %v3310 = vsub.f32 %v2792, %v3177
      %v3311 = vsub.f32 %v2793, %v3177
      %v3312 = vsub.f32 %v2794, %v3177
      %v3313 = vsub.f32 %v2795, %v3177
      %v3314 = vsub.f32 %v2796, %v3177
      %v3315 = vsub.f32 %v2797, %v3177
      %v3316 = vsub.f32 %v2798, %v3177
      %v3317 = vsub.f32 %v2799, %v3177
      %v3318 = vsub.f32 %v2800, %v3177
      %v3319 = vsub.f32 %v2801, %v3177
      %v3320 = vsub.f32 %v2802, %v3177
      %v3321 = vsub.f32 %v2803, %v3177
      %v3322 = vsub.f32 %v2804, %v3177
      %v3323 = vsub.f32 %v2805, %v3177
      %v3324 = vsub.f32 %v2806, %v3177
      %v3325 = vsub.f32 %v2807, %v3177
      %v3326 = vsub.f32 %v2808, %v3177
      %v3327 = vsub.f32 %v2809, %v3177
      %v3328 = vsub.f32 %v2810, %v3177
      %v3329 = vsub.f32 %v2811, %v3177
      %v3330 = vsub.f32 %v2812, %v3177
      %v3331 = vsub.f32 %v2813, %v3177
      %v3332 = vsub.f32 %v2814, %v3177
      %v3333 = vsub.f32 %v2815, %v3177
      %v3334 = vsub.f32 %v2816, %v3177
      %v3335 = vsub.f32 %v2817, %v3177
      %v3336 = vsub.f32 %v2818, %v3177
      %v3337 = vsub.f32 %v2819, %v3177
      %v3338 = vsub.f32 %v2820, %v3177
      %v3339 = vsub.f32 %v2821, %v3177
      %v3340 = vsub.f32 %v2822, %v3177
      %v3341 = vsub.f32 %v2823, %v3177
      %v3342 = vsub.f32 %v2824, %v3177
      %v3343 = vsub.f32 %v2825, %v3177
      %v3344 = vsub.f32 %v2826, %v3177
      %v3345 = vsub.f32 %v2827, %v3177
      %v3346 = vsub.f32 %v2828, %v3177
      %v3347 = vsub.f32 %v2829, %v3177
      %v3348 = vsub.f32 %v2830, %v3177
      %v3349 = vsub.f32 %v2831, %v3177
      %v3350 = vsub.f32 %v2832, %v3177
      %v3351 = vsub.f32 %v2833, %v3177
      %v3352 = vsub.f32 %v2834, %v3177
      %v3353 = vsub.f32 %v2835, %v3177
      %v3354 = vsub.f32 %v2836, %v3177
      %v3355 = vsub.f32 %v2837, %v3177
      %v3356 = vsub.f32 %v2838, %v3177
      %v3357 = vsub.f32 %v2839, %v3177
      %v3358 = vsub.f32 %v2840, %v3177
      %v3359 = vsub.f32 %v2841, %v3177
      %v3360 = vsub.f32 %v2842, %v3177
      %v3361 = vsub.f32 %v2843, %v3177
      %v3362 = vsub.f32 %v2844, %v3177
      %v3363 = vsub.f32 %v2845, %v3177
      %v3364 = vsub.f32 %v2846, %v3177
      %v3365 = vsub.f32 %v2847, %v3177
      %v3366 = vsub.f32 %v2848, %v3177
      %v3367 = vsub.f32 %v2849, %v3177
      %v3368 = vsub.f32 %v2850, %v3177
      %v3369 = vsub.f32 %v2851, %v3177
      %v3370 = vsub.f32 %v2852, %v3177
      %v3371 = vsub.f32 %v2853, %v3177
      %v3372 = vsub.f32 %v2854, %v3177
      %v3373 = vsub.f32 %v2855, %v3177
      %v3374 = vsub.f32 %v2856, %v3177
      %v3375 = vsub.f32 %v2857, %v3177
      %v3376 = vsub.f32 %v2858, %v3177
      %v3377 = vsub.f32 %v2859, %v3177
      %v3378 = vsub.f32 %v2860, %v3177
      %v3379 = vsub.f32 %v2861, %v3177
      %v3380 = vsub.f32 %v2862, %v3177
      %v3381 = vsub.f32 %v2863, %v3177
      %v3382 = vsub.f32 %v2864, %v3177
      %v3383 = vsub.f32 %v2865, %v3177
      %v3384 = vsub.f32 %v2866, %v3177
      %v3385 = vsub.f32 %v2867, %v3177
      %v3386 = vsub.f32 %v2868, %v3177
      %v3387 = vsub.f32 %v2869, %v3177
      %v3388 = vsub.f32 %v2870, %v3177
      %v3389 = vsub.f32 %v2871, %v3177
      %v3390 = vsub.f32 %v2872, %v3177
      %v3391 = vsub.f32 %v2873, %v3177
      %v3392 = vsub.f32 %v2874, %v3177
      %v3393 = vsub.f32 %v2875, %v3177
      %v3394 = vsub.f32 %v2876, %v3177
      %v3395 = vsub.f32 %v2877, %v3177
      %v3396 = vsub.f32 %v2878, %v3177
      %v3397 = vsub.f32 %v2879, %v3177
      %v3398 = vsub.f32 %v2880, %v3177
      %v3399 = vsub.f32 %v2881, %v3177
      %v3400 = vsub.f32 %v2882, %v3177
      %v3401 = vsub.f32 %v2883, %v3177
      %v3402 = vsub.f32 %v2884, %v3177
      %v3403 = vsub.f32 %v2885, %v3177
      %v3404 = vsub.f32 %v2886, %v3177
      %v3405 = vsub.f32 %v2887, %v3177
      %v3406 = vsub.f32 %v2888, %v3177
      %v3407 = vsub.f32 %v2889, %v3177
      %v3408 = vsub.f32 %v2890, %v3177
      %v3409 = vsub.f32 %v2891, %v3177
      %v3410 = vsub.f32 %v2892, %v3177
      %v3411 = vsub.f32 %v2893, %v3177
      %v3412 = vsub.f32 %v2894, %v3177
      %v3413 = vsub.f32 %v2895, %v3177
      %v3414 = vsub.f32 %v2896, %v3177
      %v3415 = vsub.f32 %v2897, %v3177
      %v3416 = vsub.f32 %v2898, %v3177
      %v3417 = vsub.f32 %v2899, %v3177
      %v3418 = vsub.f32 %v2900, %v3177
      %v3419 = vsub.f32 %v2901, %v3177
      %v3420 = vsub.f32 %v2902, %v3177
      %v3421 = vsub.f32 %v2903, %v3177
      %v3422 = vsub.f32 %v2904, %v3177
      %v3423 = vsub.f32 %v2905, %v3177
      %v3424 = vsub.f32 %v2906, %v3177
      %v3425 = vsub.f32 %v2907, %v3177
      %v3426 = vsub.f32 %v2908, %v3177
      %v3427 = vsub.f32 %v2909, %v3177
      %v3428 = vsub.f32 %v2910, %v3177
      %v3429 = vsub.f32 %v2911, %v3177
      %v3430 = vsub.f32 %v2912, %v3177
      %v3431 = vsub.f32 %v2913, %v3177
      %v3432 = vsub.f32 %v2914, %v3177
      %v3433 = vsub.f32 %v2915, %v3177
      %v3434 = vmul.f32 %v3178, %v3178
      %v3435 = vmul.f32 %v3179, %v3179
      %v3436 = vmul.f32 %v3180, %v3180
      %v3437 = vmul.f32 %v3181, %v3181
      %v3438 = vmul.f32 %v3182, %v3182
      %v3439 = vmul.f32 %v3183, %v3183
      %v3440 = vmul.f32 %v3184, %v3184
      %v3441 = vmul.f32 %v3185, %v3185
      %v3442 = vmul.f32 %v3186, %v3186
      %v3443 = vmul.f32 %v3187, %v3187
      %v3444 = vmul.f32 %v3188, %v3188
      %v3445 = vmul.f32 %v3189, %v3189
      %v3446 = vmul.f32 %v3190, %v3190
      %v3447 = vmul.f32 %v3191, %v3191
      %v3448 = vmul.f32 %v3192, %v3192
      %v3449 = vmul.f32 %v3193, %v3193
      %v3450 = vmul.f32 %v3194, %v3194
      %v3451 = vmul.f32 %v3195, %v3195
      %v3452 = vmul.f32 %v3196, %v3196
      %v3453 = vmul.f32 %v3197, %v3197
      %v3454 = vmul.f32 %v3198, %v3198
      %v3455 = vmul.f32 %v3199, %v3199
      %v3456 = vmul.f32 %v3200, %v3200
      %v3457 = vmul.f32 %v3201, %v3201
      %v3458 = vmul.f32 %v3202, %v3202
      %v3459 = vmul.f32 %v3203, %v3203
      %v3460 = vmul.f32 %v3204, %v3204
      %v3461 = vmul.f32 %v3205, %v3205
      %v3462 = vmul.f32 %v3206, %v3206
      %v3463 = vmul.f32 %v3207, %v3207
      %v3464 = vmul.f32 %v3208, %v3208
      %v3465 = vmul.f32 %v3209, %v3209
      %v3466 = vmul.f32 %v3210, %v3210
      %v3467 = vmul.f32 %v3211, %v3211
      %v3468 = vmul.f32 %v3212, %v3212
      %v3469 = vmul.f32 %v3213, %v3213
      %v3470 = vmul.f32 %v3214, %v3214
      %v3471 = vmul.f32 %v3215, %v3215
      %v3472 = vmul.f32 %v3216, %v3216
      %v3473 = vmul.f32 %v3217, %v3217
      %v3474 = vmul.f32 %v3218, %v3218
      %v3475 = vmul.f32 %v3219, %v3219
      %v3476 = vmul.f32 %v3220, %v3220
      %v3477 = vmul.f32 %v3221, %v3221
      %v3478 = vmul.f32 %v3222, %v3222
      %v3479 = vmul.f32 %v3223, %v3223
      %v3480 = vmul.f32 %v3224, %v3224
      %v3481 = vmul.f32 %v3225, %v3225
      %v3482 = vmul.f32 %v3226, %v3226
      %v3483 = vmul.f32 %v3227, %v3227
      %v3484 = vmul.f32 %v3228, %v3228
      %v3485 = vmul.f32 %v3229, %v3229
      %v3486 = vmul.f32 %v3230, %v3230
      %v3487 = vmul.f32 %v3231, %v3231
      %v3488 = vmul.f32 %v3232, %v3232
      %v3489 = vmul.f32 %v3233, %v3233
      %v3490 = vmul.f32 %v3234, %v3234
      %v3491 = vmul.f32 %v3235, %v3235
      %v3492 = vmul.f32 %v3236, %v3236
      %v3493 = vmul.f32 %v3237, %v3237
      %v3494 = vmul.f32 %v3238, %v3238
      %v3495 = vmul.f32 %v3239, %v3239
      %v3496 = vmul.f32 %v3240, %v3240
      %v3497 = vmul.f32 %v3241, %v3241
      %v3498 = vmul.f32 %v3242, %v3242
      %v3499 = vmul.f32 %v3243, %v3243
      %v3500 = vmul.f32 %v3244, %v3244
      %v3501 = vmul.f32 %v3245, %v3245
      %v3502 = vmul.f32 %v3246, %v3246
      %v3503 = vmul.f32 %v3247, %v3247
      %v3504 = vmul.f32 %v3248, %v3248
      %v3505 = vmul.f32 %v3249, %v3249
      %v3506 = vmul.f32 %v3250, %v3250
      %v3507 = vmul.f32 %v3251, %v3251
      %v3508 = vmul.f32 %v3252, %v3252
      %v3509 = vmul.f32 %v3253, %v3253
      %v3510 = vmul.f32 %v3254, %v3254
      %v3511 = vmul.f32 %v3255, %v3255
      %v3512 = vmul.f32 %v3256, %v3256
      %v3513 = vmul.f32 %v3257, %v3257
      %v3514 = vmul.f32 %v3258, %v3258
      %v3515 = vmul.f32 %v3259, %v3259
      %v3516 = vmul.f32 %v3260, %v3260
      %v3517 = vmul.f32 %v3261, %v3261
      %v3518 = vmul.f32 %v3262, %v3262
      %v3519 = vmul.f32 %v3263, %v3263
      %v3520 = vmul.f32 %v3264, %v3264
      %v3521 = vmul.f32 %v3265, %v3265
      %v3522 = vmul.f32 %v3266, %v3266
      %v3523 = vmul.f32 %v3267, %v3267
      %v3524 = vmul.f32 %v3268, %v3268
      %v3525 = vmul.f32 %v3269, %v3269
      %v3526 = vmul.f32 %v3270, %v3270
      %v3527 = vmul.f32 %v3271, %v3271
      %v3528 = vmul.f32 %v3272, %v3272
      %v3529 = vmul.f32 %v3273, %v3273
      %v3530 = vmul.f32 %v3274, %v3274
      %v3531 = vmul.f32 %v3275, %v3275
      %v3532 = vmul.f32 %v3276, %v3276
      %v3533 = vmul.f32 %v3277, %v3277
      %v3534 = vmul.f32 %v3278, %v3278
      %v3535 = vmul.f32 %v3279, %v3279
      %v3536 = vmul.f32 %v3280, %v3280
      %v3537 = vmul.f32 %v3281, %v3281
      %v3538 = vmul.f32 %v3282, %v3282
      %v3539 = vmul.f32 %v3283, %v3283
      %v3540 = vmul.f32 %v3284, %v3284
      %v3541 = vmul.f32 %v3285, %v3285
      %v3542 = vmul.f32 %v3286, %v3286
      %v3543 = vmul.f32 %v3287, %v3287
      %v3544 = vmul.f32 %v3288, %v3288
      %v3545 = vmul.f32 %v3289, %v3289
      %v3546 = vmul.f32 %v3290, %v3290
      %v3547 = vmul.f32 %v3291, %v3291
      %v3548 = vmul.f32 %v3292, %v3292
      %v3549 = vmul.f32 %v3293, %v3293
      %v3550 = vmul.f32 %v3294, %v3294
      %v3551 = vmul.f32 %v3295, %v3295
      %v3552 = vmul.f32 %v3296, %v3296
      %v3553 = vmul.f32 %v3297, %v3297
      %v3554 = vmul.f32 %v3298, %v3298
      %v3555 = vmul.f32 %v3299, %v3299
      %v3556 = vmul.f32 %v3300, %v3300
      %v3557 = vmul.f32 %v3301, %v3301
      %v3558 = vmul.f32 %v3302, %v3302
      %v3559 = vmul.f32 %v3303, %v3303
      %v3560 = vmul.f32 %v3304, %v3304
      %v3561 = vmul.f32 %v3305, %v3305
      %v3562 = vmul.f32 %v3306, %v3306
      %v3563 = vmul.f32 %v3307, %v3307
      %v3564 = vmul.f32 %v3308, %v3308
      %v3565 = vmul.f32 %v3309, %v3309
      %v3566 = vmul.f32 %v3310, %v3310
      %v3567 = vmul.f32 %v3311, %v3311
      %v3568 = vmul.f32 %v3312, %v3312
      %v3569 = vmul.f32 %v3313, %v3313
      %v3570 = vmul.f32 %v3314, %v3314
      %v3571 = vmul.f32 %v3315, %v3315
      %v3572 = vmul.f32 %v3316, %v3316
      %v3573 = vmul.f32 %v3317, %v3317
      %v3574 = vmul.f32 %v3318, %v3318
      %v3575 = vmul.f32 %v3319, %v3319
      %v3576 = vmul.f32 %v3320, %v3320
      %v3577 = vmul.f32 %v3321, %v3321
      %v3578 = vmul.f32 %v3322, %v3322
      %v3579 = vmul.f32 %v3323, %v3323
      %v3580 = vmul.f32 %v3324, %v3324
      %v3581 = vmul.f32 %v3325, %v3325
      %v3582 = vmul.f32 %v3326, %v3326
      %v3583 = vmul.f32 %v3327, %v3327
      %v3584 = vmul.f32 %v3328, %v3328
      %v3585 = vmul.f32 %v3329, %v3329
      %v3586 = vmul.f32 %v3330, %v3330
      %v3587 = vmul.f32 %v3331, %v3331
      %v3588 = vmul.f32 %v3332, %v3332
      %v3589 = vmul.f32 %v3333, %v3333
      %v3590 = vmul.f32 %v3334, %v3334
      %v3591 = vmul.f32 %v3335, %v3335
      %v3592 = vmul.f32 %v3336, %v3336
      %v3593 = vmul.f32 %v3337, %v3337
      %v3594 = vmul.f32 %v3338, %v3338
      %v3595 = vmul.f32 %v3339, %v3339
      %v3596 = vmul.f32 %v3340, %v3340
      %v3597 = vmul.f32 %v3341, %v3341
      %v3598 = vmul.f32 %v3342, %v3342
      %v3599 = vmul.f32 %v3343, %v3343
      %v3600 = vmul.f32 %v3344, %v3344
      %v3601 = vmul.f32 %v3345, %v3345
      %v3602 = vmul.f32 %v3346, %v3346
      %v3603 = vmul.f32 %v3347, %v3347
      %v3604 = vmul.f32 %v3348, %v3348
      %v3605 = vmul.f32 %v3349, %v3349
      %v3606 = vmul.f32 %v3350, %v3350
      %v3607 = vmul.f32 %v3351, %v3351
      %v3608 = vmul.f32 %v3352, %v3352
      %v3609 = vmul.f32 %v3353, %v3353
      %v3610 = vmul.f32 %v3354, %v3354
      %v3611 = vmul.f32 %v3355, %v3355
      %v3612 = vmul.f32 %v3356, %v3356
      %v3613 = vmul.f32 %v3357, %v3357
      %v3614 = vmul.f32 %v3358, %v3358
      %v3615 = vmul.f32 %v3359, %v3359
      %v3616 = vmul.f32 %v3360, %v3360
      %v3617 = vmul.f32 %v3361, %v3361
      %v3618 = vmul.f32 %v3362, %v3362
      %v3619 = vmul.f32 %v3363, %v3363
      %v3620 = vmul.f32 %v3364, %v3364
      %v3621 = vmul.f32 %v3365, %v3365
      %v3622 = vmul.f32 %v3366, %v3366
      %v3623 = vmul.f32 %v3367, %v3367
      %v3624 = vmul.f32 %v3368, %v3368
      %v3625 = vmul.f32 %v3369, %v3369
      %v3626 = vmul.f32 %v3370, %v3370
      %v3627 = vmul.f32 %v3371, %v3371
      %v3628 = vmul.f32 %v3372, %v3372
      %v3629 = vmul.f32 %v3373, %v3373
      %v3630 = vmul.f32 %v3374, %v3374
      %v3631 = vmul.f32 %v3375, %v3375
      %v3632 = vmul.f32 %v3376, %v3376
      %v3633 = vmul.f32 %v3377, %v3377
      %v3634 = vmul.f32 %v3378, %v3378
      %v3635 = vmul.f32 %v3379, %v3379
      %v3636 = vmul.f32 %v3380, %v3380
      %v3637 = vmul.f32 %v3381, %v3381
      %v3638 = vmul.f32 %v3382, %v3382
      %v3639 = vmul.f32 %v3383, %v3383
      %v3640 = vmul.f32 %v3384, %v3384
      %v3641 = vmul.f32 %v3385, %v3385
      %v3642 = vmul.f32 %v3386, %v3386
      %v3643 = vmul.f32 %v3387, %v3387
      %v3644 = vmul.f32 %v3388, %v3388
      %v3645 = vmul.f32 %v3389, %v3389
      %v3646 = vmul.f32 %v3390, %v3390
      %v3647 = vmul.f32 %v3391, %v3391
      %v3648 = vmul.f32 %v3392, %v3392
      %v3649 = vmul.f32 %v3393, %v3393
      %v3650 = vmul.f32 %v3394, %v3394
      %v3651 = vmul.f32 %v3395, %v3395
      %v3652 = vmul.f32 %v3396, %v3396
      %v3653 = vmul.f32 %v3397, %v3397
      %v3654 = vmul.f32 %v3398, %v3398
      %v3655 = vmul.f32 %v3399, %v3399
      %v3656 = vmul.f32 %v3400, %v3400
      %v3657 = vmul.f32 %v3401, %v3401
      %v3658 = vmul.f32 %v3402, %v3402
      %v3659 = vmul.f32 %v3403, %v3403
      %v3660 = vmul.f32 %v3404, %v3404
      %v3661 = vmul.f32 %v3405, %v3405
      %v3662 = vmul.f32 %v3406, %v3406
      %v3663 = vmul.f32 %v3407, %v3407
      %v3664 = vmul.f32 %v3408, %v3408
      %v3665 = vmul.f32 %v3409, %v3409
      %v3666 = vmul.f32 %v3410, %v3410
      %v3667 = vmul.f32 %v3411, %v3411
      %v3668 = vmul.f32 %v3412, %v3412
      %v3669 = vmul.f32 %v3413, %v3413
      %v3670 = vmul.f32 %v3414, %v3414
      %v3671 = vmul.f32 %v3415, %v3415
      %v3672 = vmul.f32 %v3416, %v3416
      %v3673 = vmul.f32 %v3417, %v3417
      %v3674 = vmul.f32 %v3418, %v3418
      %v3675 = vmul.f32 %v3419, %v3419
      %v3676 = vmul.f32 %v3420, %v3420
      %v3677 = vmul.f32 %v3421, %v3421
      %v3678 = vmul.f32 %v3422, %v3422
      %v3679 = vmul.f32 %v3423, %v3423
      %v3680 = vmul.f32 %v3424, %v3424
      %v3681 = vmul.f32 %v3425, %v3425
      %v3682 = vmul.f32 %v3426, %v3426
      %v3683 = vmul.f32 %v3427, %v3427
      %v3684 = vmul.f32 %v3428, %v3428
      %v3685 = vmul.f32 %v3429, %v3429
      %v3686 = vmul.f32 %v3430, %v3430
      %v3687 = vmul.f32 %v3431, %v3431
      %v3688 = vmul.f32 %v3432, %v3432
      %v3689 = vmul.f32 %v3433, %v3433
      %v3690 = vadd.f32 %v3434, %v3435
      %v3691 = vadd.f32 %v3690, %v3436
      %v3692 = vadd.f32 %v3691, %v3437
      %v3693 = vadd.f32 %v3692, %v3438
      %v3694 = vadd.f32 %v3693, %v3439
      %v3695 = vadd.f32 %v3694, %v3440
      %v3696 = vadd.f32 %v3695, %v3441
      %v3697 = vadd.f32 %v3696, %v3442
      %v3698 = vadd.f32 %v3697, %v3443
      %v3699 = vadd.f32 %v3698, %v3444
      %v3700 = vadd.f32 %v3699, %v3445
      %v3701 = vadd.f32 %v3700, %v3446
      %v3702 = vadd.f32 %v3701, %v3447
      %v3703 = vadd.f32 %v3702, %v3448
      %v3704 = vadd.f32 %v3703, %v3449
      %v3705 = vadd.f32 %v3704, %v3450
      %v3706 = vadd.f32 %v3705, %v3451
      %v3707 = vadd.f32 %v3706, %v3452
      %v3708 = vadd.f32 %v3707, %v3453
      %v3709 = vadd.f32 %v3708, %v3454
      %v3710 = vadd.f32 %v3709, %v3455
      %v3711 = vadd.f32 %v3710, %v3456
      %v3712 = vadd.f32 %v3711, %v3457
      %v3713 = vadd.f32 %v3712, %v3458
      %v3714 = vadd.f32 %v3713, %v3459
      %v3715 = vadd.f32 %v3714, %v3460
      %v3716 = vadd.f32 %v3715, %v3461
      %v3717 = vadd.f32 %v3716, %v3462
      %v3718 = vadd.f32 %v3717, %v3463
      %v3719 = vadd.f32 %v3718, %v3464
      %v3720 = vadd.f32 %v3719, %v3465
      %v3721 = vadd.f32 %v3720, %v3466
      %v3722 = vadd.f32 %v3721, %v3467
      %v3723 = vadd.f32 %v3722, %v3468
      %v3724 = vadd.f32 %v3723, %v3469
      %v3725 = vadd.f32 %v3724, %v3470
      %v3726 = vadd.f32 %v3725, %v3471
      %v3727 = vadd.f32 %v3726, %v3472
      %v3728 = vadd.f32 %v3727, %v3473
      %v3729 = vadd.f32 %v3728, %v3474
      %v3730 = vadd.f32 %v3729, %v3475
      %v3731 = vadd.f32 %v3730, %v3476
      %v3732 = vadd.f32 %v3731, %v3477
      %v3733 = vadd.f32 %v3732, %v3478
      %v3734 = vadd.f32 %v3733, %v3479
      %v3735 = vadd.f32 %v3734, %v3480
      %v3736 = vadd.f32 %v3735, %v3481
      %v3737 = vadd.f32 %v3736, %v3482
      %v3738 = vadd.f32 %v3737, %v3483
      %v3739 = vadd.f32 %v3738, %v3484
      %v3740 = vadd.f32 %v3739, %v3485
      %v3741 = vadd.f32 %v3740, %v3486
      %v3742 = vadd.f32 %v3741, %v3487
      %v3743 = vadd.f32 %v3742, %v3488
      %v3744 = vadd.f32 %v3743, %v3489
      %v3745 = vadd.f32 %v3744, %v3490
      %v3746 = vadd.f32 %v3745, %v3491
      %v3747 = vadd.f32 %v3746, %v3492
      %v3748 = vadd.f32 %v3747, %v3493
      %v3749 = vadd.f32 %v3748, %v3494
      %v3750 = vadd.f32 %v3749, %v3495
      %v3751 = vadd.f32 %v3750, %v3496
      %v3752 = vadd.f32 %v3751, %v3497
      %v3753 = vadd.f32 %v3752, %v3498
      %v3754 = vadd.f32 %v3753, %v3499
      %v3755 = vadd.f32 %v3754, %v3500
      %v3756 = vadd.f32 %v3755, %v3501
      %v3757 = vadd.f32 %v3756, %v3502
      %v3758 = vadd.f32 %v3757, %v3503
      %v3759 = vadd.f32 %v3758, %v3504
      %v3760 = vadd.f32 %v3759, %v3505
      %v3761 = vadd.f32 %v3760, %v3506
      %v3762 = vadd.f32 %v3761, %v3507
      %v3763 = vadd.f32 %v3762, %v3508
      %v3764 = vadd.f32 %v3763, %v3509
      %v3765 = vadd.f32 %v3764, %v3510
      %v3766 = vadd.f32 %v3765, %v3511
      %v3767 = vadd.f32 %v3766, %v3512
      %v3768 = vadd.f32 %v3767, %v3513
      %v3769 = vadd.f32 %v3768, %v3514
      %v3770 = vadd.f32 %v3769, %v3515
      %v3771 = vadd.f32 %v3770, %v3516
      %v3772 = vadd.f32 %v3771, %v3517
      %v3773 = vadd.f32 %v3772, %v3518
      %v3774 = vadd.f32 %v3773, %v3519
      %v3775 = vadd.f32 %v3774, %v3520
      %v3776 = vadd.f32 %v3775, %v3521
      %v3777 = vadd.f32 %v3776, %v3522
      %v3778 = vadd.f32 %v3777, %v3523
      %v3779 = vadd.f32 %v3778, %v3524
      %v3780 = vadd.f32 %v3779, %v3525
      %v3781 = vadd.f32 %v3780, %v3526
      %v3782 = vadd.f32 %v3781, %v3527
      %v3783 = vadd.f32 %v3782, %v3528
      %v3784 = vadd.f32 %v3783, %v3529
      %v3785 = vadd.f32 %v3784, %v3530
      %v3786 = vadd.f32 %v3785, %v3531
      %v3787 = vadd.f32 %v3786, %v3532
      %v3788 = vadd.f32 %v3787, %v3533
      %v3789 = vadd.f32 %v3788, %v3534
      %v3790 = vadd.f32 %v3789, %v3535
      %v3791 = vadd.f32 %v3790, %v3536
      %v3792 = vadd.f32 %v3791, %v3537
      %v3793 = vadd.f32 %v3792, %v3538
      %v3794 = vadd.f32 %v3793, %v3539
      %v3795 = vadd.f32 %v3794, %v3540
      %v3796 = vadd.f32 %v3795, %v3541
      %v3797 = vadd.f32 %v3796, %v3542
      %v3798 = vadd.f32 %v3797, %v3543
      %v3799 = vadd.f32 %v3798, %v3544
      %v3800 = vadd.f32 %v3799, %v3545
      %v3801 = vadd.f32 %v3800, %v3546
      %v3802 = vadd.f32 %v3801, %v3547
      %v3803 = vadd.f32 %v3802, %v3548
      %v3804 = vadd.f32 %v3803, %v3549
      %v3805 = vadd.f32 %v3804, %v3550
      %v3806 = vadd.f32 %v3805, %v3551
      %v3807 = vadd.f32 %v3806, %v3552
      %v3808 = vadd.f32 %v3807, %v3553
      %v3809 = vadd.f32 %v3808, %v3554
      %v3810 = vadd.f32 %v3809, %v3555
      %v3811 = vadd.f32 %v3810, %v3556
      %v3812 = vadd.f32 %v3811, %v3557
      %v3813 = vadd.f32 %v3812, %v3558
      %v3814 = vadd.f32 %v3813, %v3559
      %v3815 = vadd.f32 %v3814, %v3560
      %v3816 = vadd.f32 %v3815, %v3561
      %v3817 = vadd.f32 %v3816, %v3562
      %v3818 = vadd.f32 %v3817, %v3563
      %v3819 = vadd.f32 %v3818, %v3564
      %v3820 = vadd.f32 %v3819, %v3565
      %v3821 = vadd.f32 %v3820, %v3566
      %v3822 = vadd.f32 %v3821, %v3567
      %v3823 = vadd.f32 %v3822, %v3568
      %v3824 = vadd.f32 %v3823, %v3569
      %v3825 = vadd.f32 %v3824, %v3570
      %v3826 = vadd.f32 %v3825, %v3571
      %v3827 = vadd.f32 %v3826, %v3572
      %v3828 = vadd.f32 %v3827, %v3573
      %v3829 = vadd.f32 %v3828, %v3574
      %v3830 = vadd.f32 %v3829, %v3575
      %v3831 = vadd.f32 %v3830, %v3576
      %v3832 = vadd.f32 %v3831, %v3577
      %v3833 = vadd.f32 %v3832, %v3578
      %v3834 = vadd.f32 %v3833, %v3579
      %v3835 = vadd.f32 %v3834, %v3580
      %v3836 = vadd.f32 %v3835, %v3581
      %v3837 = vadd.f32 %v3836, %v3582
      %v3838 = vadd.f32 %v3837, %v3583
      %v3839 = vadd.f32 %v3838, %v3584
      %v3840 = vadd.f32 %v3839, %v3585
      %v3841 = vadd.f32 %v3840, %v3586
      %v3842 = vadd.f32 %v3841, %v3587
      %v3843 = vadd.f32 %v3842, %v3588
      %v3844 = vadd.f32 %v3843, %v3589
      %v3845 = vadd.f32 %v3844, %v3590
      %v3846 = vadd.f32 %v3845, %v3591
      %v3847 = vadd.f32 %v3846, %v3592
      %v3848 = vadd.f32 %v3847, %v3593
      %v3849 = vadd.f32 %v3848, %v3594
      %v3850 = vadd.f32 %v3849, %v3595
      %v3851 = vadd.f32 %v3850, %v3596
      %v3852 = vadd.f32 %v3851, %v3597
      %v3853 = vadd.f32 %v3852, %v3598
      %v3854 = vadd.f32 %v3853, %v3599
      %v3855 = vadd.f32 %v3854, %v3600
      %v3856 = vadd.f32 %v3855, %v3601
      %v3857 = vadd.f32 %v3856, %v3602
      %v3858 = vadd.f32 %v3857, %v3603
      %v3859 = vadd.f32 %v3858, %v3604
      %v3860 = vadd.f32 %v3859, %v3605
      %v3861 = vadd.f32 %v3860, %v3606
      %v3862 = vadd.f32 %v3861, %v3607
      %v3863 = vadd.f32 %v3862, %v3608
      %v3864 = vadd.f32 %v3863, %v3609
      %v3865 = vadd.f32 %v3864, %v3610
      %v3866 = vadd.f32 %v3865, %v3611
      %v3867 = vadd.f32 %v3866, %v3612
      %v3868 = vadd.f32 %v3867, %v3613
      %v3869 = vadd.f32 %v3868, %v3614
      %v3870 = vadd.f32 %v3869, %v3615
      %v3871 = vadd.f32 %v3870, %v3616
      %v3872 = vadd.f32 %v3871, %v3617
      %v3873 = vadd.f32 %v3872, %v3618
      %v3874 = vadd.f32 %v3873, %v3619
      %v3875 = vadd.f32 %v3874, %v3620
      %v3876 = vadd.f32 %v3875, %v3621
      %v3877 = vadd.f32 %v3876, %v3622
      %v3878 = vadd.f32 %v3877, %v3623
      %v3879 = vadd.f32 %v3878, %v3624
      %v3880 = vadd.f32 %v3879, %v3625
      %v3881 = vadd.f32 %v3880, %v3626
      %v3882 = vadd.f32 %v3881, %v3627
      %v3883 = vadd.f32 %v3882, %v3628
      %v3884 = vadd.f32 %v3883, %v3629
      %v3885 = vadd.f32 %v3884, %v3630
      %v3886 = vadd.f32 %v3885, %v3631
      %v3887 = vadd.f32 %v3886, %v3632
      %v3888 = vadd.f32 %v3887, %v3633
      %v3889 = vadd.f32 %v3888, %v3634
      %v3890 = vadd.f32 %v3889, %v3635
      %v3891 = vadd.f32 %v3890, %v3636
      %v3892 = vadd.f32 %v3891, %v3637
      %v3893 = vadd.f32 %v3892, %v3638
      %v3894 = vadd.f32 %v3893, %v3639
      %v3895 = vadd.f32 %v3894, %v3640
      %v3896 = vadd.f32 %v3895, %v3641
      %v3897 = vadd.f32 %v3896, %v3642
      %v3898 = vadd.f32 %v3897, %v3643
      %v3899 = vadd.f32 %v3898, %v3644
      %v3900 = vadd.f32 %v3899, %v3645
      %v3901 = vadd.f32 %v3900, %v3646
      %v3902 = vadd.f32 %v3901, %v3647
      %v3903 = vadd.f32 %v3902, %v3648
      %v3904 = vadd.f32 %v3903, %v3649
      %v3905 = vadd.f32 %v3904, %v3650
      %v3906 = vadd.f32 %v3905, %v3651
      %v3907 = vadd.f32 %v3906, %v3652
      %v3908 = vadd.f32 %v3907, %v3653
      %v3909 = vadd.f32 %v3908, %v3654
      %v3910 = vadd.f32 %v3909, %v3655
      %v3911 = vadd.f32 %v3910, %v3656
      %v3912 = vadd.f32 %v3911, %v3657
      %v3913 = vadd.f32 %v3912, %v3658
      %v3914 = vadd.f32 %v3913, %v3659
      %v3915 = vadd.f32 %v3914, %v3660
      %v3916 = vadd.f32 %v3915, %v3661
      %v3917 = vadd.f32 %v3916, %v3662
      %v3918 = vadd.f32 %v3917, %v3663
      %v3919 = vadd.f32 %v3918, %v3664
      %v3920 = vadd.f32 %v3919, %v3665
      %v3921 = vadd.f32 %v3920, %v3666
      %v3922 = vadd.f32 %v3921, %v3667
      %v3923 = vadd.f32 %v3922, %v3668
      %v3924 = vadd.f32 %v3923, %v3669
      %v3925 = vadd.f32 %v3924, %v3670
      %v3926 = vadd.f32 %v3925, %v3671
      %v3927 = vadd.f32 %v3926, %v3672
      %v3928 = vadd.f32 %v3927, %v3673
      %v3929 = vadd.f32 %v3928, %v3674
      %v3930 = vadd.f32 %v3929, %v3675
      %v3931 = vadd.f32 %v3930, %v3676
      %v3932 = vadd.f32 %v3931, %v3677
      %v3933 = vadd.f32 %v3932, %v3678
      %v3934 = vadd.f32 %v3933, %v3679
      %v3935 = vadd.f32 %v3934, %v3680
      %v3936 = vadd.f32 %v3935, %v3681
      %v3937 = vadd.f32 %v3936, %v3682
      %v3938 = vadd.f32 %v3937, %v3683
      %v3939 = vadd.f32 %v3938, %v3684
      %v3940 = vadd.f32 %v3939, %v3685
      %v3941 = vadd.f32 %v3940, %v3686
      %v3942 = vadd.f32 %v3941, %v3687
      %v3943 = vadd.f32 %v3942, %v3688
      %v3944 = vadd.f32 %v3943, %v3689
      %v3945 = vrot.slane %v3944, 4
      %v3946 = vadd.f32 %v3944, %v3945
      %v3947 = vrot.slane %v3946, 2
      %v3948 = vadd.f32 %v3946, %v3947
      %v3949 = vrot.slane %v3948, 1
      %v3950 = vadd.f32 %v3948, %v3949
      %v3951 = vmul.f32 %v3950, 0.00048828125
      %v3952 = vadd.f32 %v3951, 1e-05
      %v3953 = vrsqrt.pop %v3952
      %v3954 = vmul.f32 %v3178, %v3953
      %v3955 = vmul.f32 %v3179, %v3953
      %v3956 = vmul.f32 %v3180, %v3953
      %v3957 = vmul.f32 %v3181, %v3953
      %v3958 = vmul.f32 %v3182, %v3953
      %v3959 = vmul.f32 %v3183, %v3953
      %v3960 = vmul.f32 %v3184, %v3953
      %v3961 = vmul.f32 %v3185, %v3953
      %v3962 = vmul.f32 %v3186, %v3953
      %v3963 = vmul.f32 %v3187, %v3953
      %v3964 = vmul.f32 %v3188, %v3953
      %v3965 = vmul.f32 %v3189, %v3953
      %v3966 = vmul.f32 %v3190, %v3953
      %v3967 = vmul.f32 %v3191, %v3953
      %v3968 = vmul.f32 %v3192, %v3953
      %v3969 = vmul.f32 %v3193, %v3953
      %v3970 = vmul.f32 %v3194, %v3953
      %v3971 = vmul.f32 %v3195, %v3953
      %v3972 = vmul.f32 %v3196, %v3953
      %v3973 = vmul.f32 %v3197, %v3953
      %v3974 = vmul.f32 %v3198, %v3953
      %v3975 = vmul.f32 %v3199, %v3953
      %v3976 = vmul.f32 %v3200, %v3953
      %v3977 = vmul.f32 %v3201, %v3953
      %v3978 = vmul.f32 %v3202, %v3953
      %v3979 = vmul.f32 %v3203, %v3953
      %v3980 = vmul.f32 %v3204, %v3953
      %v3981 = vmul.f32 %v3205, %v3953
      %v3982 = vmul.f32 %v3206, %v3953
      %v3983 = vmul.f32 %v3207, %v3953
      %v3984 = vmul.f32 %v3208, %v3953
      %v3985 = vmul.f32 %v3209, %v3953
      %v3986 = vmul.f32 %v3210, %v3953
      %v3987 = vmul.f32 %v3211, %v3953
      %v3988 = vmul.f32 %v3212, %v3953
      %v3989 = vmul.f32 %v3213, %v3953
      %v3990 = vmul.f32 %v3214, %v3953
      %v3991 = vmul.f32 %v3215, %v3953
      %v3992 = vmul.f32 %v3216, %v3953
      %v3993 = vmul.f32 %v3217, %v3953
      %v3994 = vmul.f32 %v3218, %v3953
      %v3995 = vmul.f32 %v3219, %v3953
      %v3996 = vmul.f32 %v3220, %v3953
      %v3997 = vmul.f32 %v3221, %v3953
      %v3998 = vmul.f32 %v3222, %v3953
      %v3999 = vmul.f32 %v3223, %v3953
      %v4000 = vmul.f32 %v3224, %v3953
      %v4001 = vmul.f32 %v3225, %v3953
      %v4002 = vmul.f32 %v3226, %v3953
      %v4003 = vmul.f32 %v3227, %v3953
      %v4004 = vmul.f32 %v3228, %v3953
      %v4005 = vmul.f32 %v3229, %v3953
      %v4006 = vmul.f32 %v3230, %v3953
      %v4007 = vmul.f32 %v3231, %v3953
      %v4008 = vmul.f32 %v3232, %v3953
      %v4009 = vmul.f32 %v3233, %v3953
      %v4010 = vmul.f32 %v3234, %v3953
      %v4011 = vmul.f32 %v3235, %v3953
      %v4012 = vmul.f32 %v3236, %v3953
      %v4013 = vmul.f32 %v3237, %v3953
      %v4014 = vmul.f32 %v3238, %v3953
      %v4015 = vmul.f32 %v3239, %v3953
      %v4016 = vmul.f32 %v3240, %v3953
      %v4017 = vmul.f32 %v3241, %v3953
      %v4018 = vmul.f32 %v3242, %v3953
      %v4019 = vmul.f32 %v3243, %v3953
      %v4020 = vmul.f32 %v3244, %v3953
      %v4021 = vmul.f32 %v3245, %v3953
      %v4022 = vmul.f32 %v3246, %v3953
      %v4023 = vmul.f32 %v3247, %v3953
      %v4024 = vmul.f32 %v3248, %v3953
      %v4025 = vmul.f32 %v3249, %v3953
      %v4026 = vmul.f32 %v3250, %v3953
      %v4027 = vmul.f32 %v3251, %v3953
      %v4028 = vmul.f32 %v3252, %v3953
      %v4029 = vmul.f32 %v3253, %v3953
      %v4030 = vmul.f32 %v3254, %v3953
      %v4031 = vmul.f32 %v3255, %v3953
      %v4032 = vmul.f32 %v3256, %v3953
      %v4033 = vmul.f32 %v3257, %v3953
      %v4034 = vmul.f32 %v3258, %v3953
      %v4035 = vmul.f32 %v3259, %v3953
      %v4036 = vmul.f32 %v3260, %v3953
      %v4037 = vmul.f32 %v3261, %v3953
      %v4038 = vmul.f32 %v3262, %v3953
      %v4039 = vmul.f32 %v3263, %v3953
      %v4040 = vmul.f32 %v3264, %v3953
      %v4041 = vmul.f32 %v3265, %v3953
      %v4042 = vmul.f32 %v3266, %v3953
      %v4043 = vmul.f32 %v3267, %v3953
      %v4044 = vmul.f32 %v3268, %v3953
      %v4045 = vmul.f32 %v3269, %v3953
      %v4046 = vmul.f32 %v3270, %v3953
      %v4047 = vmul.f32 %v3271, %v3953
      %v4048 = vmul.f32 %v3272, %v3953
      %v4049 = vmul.f32 %v3273, %v3953
      %v4050 = vmul.f32 %v3274, %v3953
      %v4051 = vmul.f32 %v3275, %v3953
      %v4052 = vmul.f32 %v3276, %v3953
      %v4053 = vmul.f32 %v3277, %v3953
      %v4054 = vmul.f32 %v3278, %v3953
      %v4055 = vmul.f32 %v3279, %v3953
      %v4056 = vmul.f32 %v3280, %v3953
      %v4057 = vmul.f32 %v3281, %v3953
      %v4058 = vmul.f32 %v3282, %v3953
      %v4059 = vmul.f32 %v3283, %v3953
      %v4060 = vmul.f32 %v3284, %v3953
      %v4061 = vmul.f32 %v3285, %v3953
      %v4062 = vmul.f32 %v3286, %v3953
      %v4063 = vmul.f32 %v3287, %v3953
      %v4064 = vmul.f32 %v3288, %v3953
      %v4065 = vmul.f32 %v3289, %v3953
      %v4066 = vmul.f32 %v3290, %v3953
      %v4067 = vmul.f32 %v3291, %v3953
      %v4068 = vmul.f32 %v3292, %v3953
      %v4069 = vmul.f32 %v3293, %v3953
      %v4070 = vmul.f32 %v3294, %v3953
      %v4071 = vmul.f32 %v3295, %v3953
      %v4072 = vmul.f32 %v3296, %v3953
      %v4073 = vmul.f32 %v3297, %v3953
      %v4074 = vmul.f32 %v3298, %v3953
      %v4075 = vmul.f32 %v3299, %v3953
      %v4076 = vmul.f32 %v3300, %v3953
      %v4077 = vmul.f32 %v3301, %v3953
      %v4078 = vmul.f32 %v3302, %v3953
      %v4079 = vmul.f32 %v3303, %v3953
      %v4080 = vmul.f32 %v3304, %v3953
      %v4081 = vmul.f32 %v3305, %v3953
      %v4082 = vmul.f32 %v3306, %v3953
      %v4083 = vmul.f32 %v3307, %v3953
      %v4084 = vmul.f32 %v3308, %v3953
      %v4085 = vmul.f32 %v3309, %v3953
      %v4086 = vmul.f32 %v3310, %v3953
      %v4087 = vmul.f32 %v3311, %v3953
      %v4088 = vmul.f32 %v3312, %v3953
      %v4089 = vmul.f32 %v3313, %v3953
      %v4090 = vmul.f32 %v3314, %v3953
      %v4091 = vmul.f32 %v3315, %v3953
      %v4092 = vmul.f32 %v3316, %v3953
      %v4093 = vmul.f32 %v3317, %v3953
      %v4094 = vmul.f32 %v3318, %v3953
      %v4095 = vmul.f32 %v3319, %v3953
      %v4096 = vmul.f32 %v3320, %v3953
      %v4097 = vmul.f32 %v3321, %v3953
      %v4098 = vmul.f32 %v3322, %v3953
      %v4099 = vmul.f32 %v3323, %v3953
      %v4100 = vmul.f32 %v3324, %v3953
      %v4101 = vmul.f32 %v3325, %v3953
      %v4102 = vmul.f32 %v3326, %v3953
      %v4103 = vmul.f32 %v3327, %v3953
      %v4104 = vmul.f32 %v3328, %v3953
      %v4105 = vmul.f32 %v3329, %v3953
      %v4106 = vmul.f32 %v3330, %v3953
      %v4107 = vmul.f32 %v3331, %v3953
      %v4108 = vmul.f32 %v3332, %v3953
      %v4109 = vmul.f32 %v3333, %v3953
      %v4110 = vmul.f32 %v3334, %v3953
      %v4111 = vmul.f32 %v3335, %v3953
      %v4112 = vmul.f32 %v3336, %v3953
      %v4113 = vmul.f32 %v3337, %v3953
      %v4114 = vmul.f32 %v3338, %v3953
      %v4115 = vmul.f32 %v3339, %v3953
      %v4116 = vmul.f32 %v3340, %v3953
      %v4117 = vmul.f32 %v3341, %v3953
      %v4118 = vmul.f32 %v3342, %v3953
      %v4119 = vmul.f32 %v3343, %v3953
      %v4120 = vmul.f32 %v3344, %v3953
      %v4121 = vmul.f32 %v3345, %v3953
      %v4122 = vmul.f32 %v3346, %v3953
      %v4123 = vmul.f32 %v3347, %v3953
      %v4124 = vmul.f32 %v3348, %v3953
      %v4125 = vmul.f32 %v3349, %v3953
      %v4126 = vmul.f32 %v3350, %v3953
      %v4127 = vmul.f32 %v3351, %v3953
      %v4128 = vmul.f32 %v3352, %v3953
      %v4129 = vmul.f32 %v3353, %v3953
      %v4130 = vmul.f32 %v3354, %v3953
      %v4131 = vmul.f32 %v3355, %v3953
      %v4132 = vmul.f32 %v3356, %v3953
      %v4133 = vmul.f32 %v3357, %v3953
      %v4134 = vmul.f32 %v3358, %v3953
      %v4135 = vmul.f32 %v3359, %v3953
      %v4136 = vmul.f32 %v3360, %v3953
      %v4137 = vmul.f32 %v3361, %v3953
      %v4138 = vmul.f32 %v3362, %v3953
      %v4139 = vmul.f32 %v3363, %v3953
      %v4140 = vmul.f32 %v3364, %v3953
      %v4141 = vmul.f32 %v3365, %v3953
      %v4142 = vmul.f32 %v3366, %v3953
      %v4143 = vmul.f32 %v3367, %v3953
      %v4144 = vmul.f32 %v3368, %v3953
      %v4145 = vmul.f32 %v3369, %v3953
      %v4146 = vmul.f32 %v3370, %v3953
      %v4147 = vmul.f32 %v3371, %v3953
      %v4148 = vmul.f32 %v3372, %v3953
      %v4149 = vmul.f32 %v3373, %v3953
      %v4150 = vmul.f32 %v3374, %v3953
      %v4151 = vmul.f32 %v3375, %v3953
      %v4152 = vmul.f32 %v3376, %v3953
      %v4153 = vmul.f32 %v3377, %v3953
      %v4154 = vmul.f32 %v3378, %v3953
      %v4155 = vmul.f32 %v3379, %v3953
      %v4156 = vmul.f32 %v3380, %v3953
      %v4157 = vmul.f32 %v3381, %v3953
      %v4158 = vmul.f32 %v3382, %v3953
      %v4159 = vmul.f32 %v3383, %v3953
      %v4160 = vmul.f32 %v3384, %v3953
      %v4161 = vmul.f32 %v3385, %v3953
      %v4162 = vmul.f32 %v3386, %v3953
      %v4163 = vmul.f32 %v3387, %v3953
      %v4164 = vmul.f32 %v3388, %v3953
      %v4165 = vmul.f32 %v3389, %v3953
      %v4166 = vmul.f32 %v3390, %v3953
      %v4167 = vmul.f32 %v3391, %v3953
      %v4168 = vmul.f32 %v3392, %v3953
      %v4169 = vmul.f32 %v3393, %v3953
      %v4170 = vmul.f32 %v3394, %v3953
      %v4171 = vmul.f32 %v3395, %v3953
      %v4172 = vmul.f32 %v3396, %v3953
      %v4173 = vmul.f32 %v3397, %v3953
      %v4174 = vmul.f32 %v3398, %v3953
      %v4175 = vmul.f32 %v3399, %v3953
      %v4176 = vmul.f32 %v3400, %v3953
      %v4177 = vmul.f32 %v3401, %v3953
      %v4178 = vmul.f32 %v3402, %v3953
      %v4179 = vmul.f32 %v3403, %v3953
      %v4180 = vmul.f32 %v3404, %v3953
      %v4181 = vmul.f32 %v3405, %v3953
      %v4182 = vmul.f32 %v3406, %v3953
      %v4183 = vmul.f32 %v3407, %v3953
      %v4184 = vmul.f32 %v3408, %v3953
      %v4185 = vmul.f32 %v3409, %v3953
      %v4186 = vmul.f32 %v3410, %v3953
      %v4187 = vmul.f32 %v3411, %v3953
      %v4188 = vmul.f32 %v3412, %v3953
      %v4189 = vmul.f32 %v3413, %v3953
      %v4190 = vmul.f32 %v3414, %v3953
      %v4191 = vmul.f32 %v3415, %v3953
      %v4192 = vmul.f32 %v3416, %v3953
      %v4193 = vmul.f32 %v3417, %v3953
      %v4194 = vmul.f32 %v3418, %v3953
      %v4195 = vmul.f32 %v3419, %v3953
      %v4196 = vmul.f32 %v3420, %v3953
      %v4197 = vmul.f32 %v3421, %v3953
      %v4198 = vmul.f32 %v3422, %v3953
      %v4199 = vmul.f32 %v3423, %v3953
      %v4200 = vmul.f32 %v3424, %v3953
      %v4201 = vmul.f32 %v3425, %v3953
      %v4202 = vmul.f32 %v3426, %v3953
      %v4203 = vmul.f32 %v3427, %v3953
      %v4204 = vmul.f32 %v3428, %v3953
      %v4205 = vmul.f32 %v3429, %v3953
      %v4206 = vmul.f32 %v3430, %v3953
      %v4207 = vmul.f32 %v3431, %v3953
      %v4208 = vmul.f32 %v3432, %v3953
      %v4209 = vmul.f32 %v3433, %v3953
      %vm4210 = vcmp.ge.f32.partialorder %v3954, 0.0
      %vm4211 = vcmp.ge.f32.partialorder %v3955, 0.0
      %vm4212 = vcmp.ge.f32.partialorder %v3956, 0.0
      %vm4213 = vcmp.ge.f32.partialorder %v3957, 0.0
      %vm4214 = vcmp.ge.f32.partialorder %v3958, 0.0
      %vm4215 = vcmp.ge.f32.partialorder %v3959, 0.0
      %vm4216 = vcmp.ge.f32.partialorder %v3960, 0.0
      %vm4217 = vcmp.ge.f32.partialorder %v3961, 0.0
      %vm4218 = vcmp.ge.f32.partialorder %v3962, 0.0
      %vm4219 = vcmp.ge.f32.partialorder %v3963, 0.0
      %vm4220 = vcmp.ge.f32.partialorder %v3964, 0.0
      %vm4221 = vcmp.ge.f32.partialorder %v3965, 0.0
      %vm4222 = vcmp.ge.f32.partialorder %v3966, 0.0
      %vm4223 = vcmp.ge.f32.partialorder %v3967, 0.0
      %vm4224 = vcmp.ge.f32.partialorder %v3968, 0.0
      %vm4225 = vcmp.ge.f32.partialorder %v3969, 0.0
      %vm4226 = vcmp.ge.f32.partialorder %v3970, 0.0
      %vm4227 = vcmp.ge.f32.partialorder %v3971, 0.0
      %vm4228 = vcmp.ge.f32.partialorder %v3972, 0.0
      %vm4229 = vcmp.ge.f32.partialorder %v3973, 0.0
      %vm4230 = vcmp.ge.f32.partialorder %v3974, 0.0
      %vm4231 = vcmp.ge.f32.partialorder %v3975, 0.0
      %vm4232 = vcmp.ge.f32.partialorder %v3976, 0.0
      %vm4233 = vcmp.ge.f32.partialorder %v3977, 0.0
      %vm4234 = vcmp.ge.f32.partialorder %v3978, 0.0
      %vm4235 = vcmp.ge.f32.partialorder %v3979, 0.0
      %vm4236 = vcmp.ge.f32.partialorder %v3980, 0.0
      %vm4237 = vcmp.ge.f32.partialorder %v3981, 0.0
      %vm4238 = vcmp.ge.f32.partialorder %v3982, 0.0
      %vm4239 = vcmp.ge.f32.partialorder %v3983, 0.0
      %vm4240 = vcmp.ge.f32.partialorder %v3984, 0.0
      %vm4241 = vcmp.ge.f32.partialorder %v3985, 0.0
      %vm4242 = vcmp.ge.f32.partialorder %v3986, 0.0
      %vm4243 = vcmp.ge.f32.partialorder %v3987, 0.0
      %vm4244 = vcmp.ge.f32.partialorder %v3988, 0.0
      %vm4245 = vcmp.ge.f32.partialorder %v3989, 0.0
      %vm4246 = vcmp.ge.f32.partialorder %v3990, 0.0
      %vm4247 = vcmp.ge.f32.partialorder %v3991, 0.0
      %vm4248 = vcmp.ge.f32.partialorder %v3992, 0.0
      %vm4249 = vcmp.ge.f32.partialorder %v3993, 0.0
      %vm4250 = vcmp.ge.f32.partialorder %v3994, 0.0
      %vm4251 = vcmp.ge.f32.partialorder %v3995, 0.0
      %vm4252 = vcmp.ge.f32.partialorder %v3996, 0.0
      %vm4253 = vcmp.ge.f32.partialorder %v3997, 0.0
      %vm4254 = vcmp.ge.f32.partialorder %v3998, 0.0
      %vm4255 = vcmp.ge.f32.partialorder %v3999, 0.0
      %vm4256 = vcmp.ge.f32.partialorder %v4000, 0.0
      %vm4257 = vcmp.ge.f32.partialorder %v4001, 0.0
      %vm4258 = vcmp.ge.f32.partialorder %v4002, 0.0
      %vm4259 = vcmp.ge.f32.partialorder %v4003, 0.0
      %vm4260 = vcmp.ge.f32.partialorder %v4004, 0.0
      %vm4261 = vcmp.ge.f32.partialorder %v4005, 0.0
      %vm4262 = vcmp.ge.f32.partialorder %v4006, 0.0
      %vm4263 = vcmp.ge.f32.partialorder %v4007, 0.0
      %vm4264 = vcmp.ge.f32.partialorder %v4008, 0.0
      %vm4265 = vcmp.ge.f32.partialorder %v4009, 0.0
      %vm4266 = vcmp.ge.f32.partialorder %v4010, 0.0
      %vm4267 = vcmp.ge.f32.partialorder %v4011, 0.0
      %vm4268 = vcmp.ge.f32.partialorder %v4012, 0.0
      %vm4269 = vcmp.ge.f32.partialorder %v4013, 0.0
      %vm4270 = vcmp.ge.f32.partialorder %v4014, 0.0
      %vm4271 = vcmp.ge.f32.partialorder %v4015, 0.0
      %vm4272 = vcmp.ge.f32.partialorder %v4016, 0.0
      %vm4273 = vcmp.ge.f32.partialorder %v4017, 0.0
      %vm4274 = vcmp.ge.f32.partialorder %v4018, 0.0
      %vm4275 = vcmp.ge.f32.partialorder %v4019, 0.0
      %vm4276 = vcmp.ge.f32.partialorder %v4020, 0.0
      %vm4277 = vcmp.ge.f32.partialorder %v4021, 0.0
      %vm4278 = vcmp.ge.f32.partialorder %v4022, 0.0
      %vm4279 = vcmp.ge.f32.partialorder %v4023, 0.0
      %vm4280 = vcmp.ge.f32.partialorder %v4024, 0.0
      %vm4281 = vcmp.ge.f32.partialorder %v4025, 0.0
      %vm4282 = vcmp.ge.f32.partialorder %v4026, 0.0
      %vm4283 = vcmp.ge.f32.partialorder %v4027, 0.0
      %vm4284 = vcmp.ge.f32.partialorder %v4028, 0.0
      %vm4285 = vcmp.ge.f32.partialorder %v4029, 0.0
      %vm4286 = vcmp.ge.f32.partialorder %v4030, 0.0
      %vm4287 = vcmp.ge.f32.partialorder %v4031, 0.0
      %vm4288 = vcmp.ge.f32.partialorder %v4032, 0.0
      %vm4289 = vcmp.ge.f32.partialorder %v4033, 0.0
      %vm4290 = vcmp.ge.f32.partialorder %v4034, 0.0
      %vm4291 = vcmp.ge.f32.partialorder %v4035, 0.0
      %vm4292 = vcmp.ge.f32.partialorder %v4036, 0.0
      %vm4293 = vcmp.ge.f32.partialorder %v4037, 0.0
      %vm4294 = vcmp.ge.f32.partialorder %v4038, 0.0
      %vm4295 = vcmp.ge.f32.partialorder %v4039, 0.0
      %vm4296 = vcmp.ge.f32.partialorder %v4040, 0.0
      %vm4297 = vcmp.ge.f32.partialorder %v4041, 0.0
      %vm4298 = vcmp.ge.f32.partialorder %v4042, 0.0
      %vm4299 = vcmp.ge.f32.partialorder %v4043, 0.0
      %vm4300 = vcmp.ge.f32.partialorder %v4044, 0.0
      %vm4301 = vcmp.ge.f32.partialorder %v4045, 0.0
      %vm4302 = vcmp.ge.f32.partialorder %v4046, 0.0
      %vm4303 = vcmp.ge.f32.partialorder %v4047, 0.0
      %vm4304 = vcmp.ge.f32.partialorder %v4048, 0.0
      %vm4305 = vcmp.ge.f32.partialorder %v4049, 0.0
      %vm4306 = vcmp.ge.f32.partialorder %v4050, 0.0
      %vm4307 = vcmp.ge.f32.partialorder %v4051, 0.0
      %vm4308 = vcmp.ge.f32.partialorder %v4052, 0.0
      %vm4309 = vcmp.ge.f32.partialorder %v4053, 0.0
      %vm4310 = vcmp.ge.f32.partialorder %v4054, 0.0
      %vm4311 = vcmp.ge.f32.partialorder %v4055, 0.0
      %vm4312 = vcmp.ge.f32.partialorder %v4056, 0.0
      %vm4313 = vcmp.ge.f32.partialorder %v4057, 0.0
      %vm4314 = vcmp.ge.f32.partialorder %v4058, 0.0
      %vm4315 = vcmp.ge.f32.partialorder %v4059, 0.0
      %vm4316 = vcmp.ge.f32.partialorder %v4060, 0.0
      %vm4317 = vcmp.ge.f32.partialorder %v4061, 0.0
      %vm4318 = vcmp.ge.f32.partialorder %v4062, 0.0
      %vm4319 = vcmp.ge.f32.partialorder %v4063, 0.0
      %vm4320 = vcmp.ge.f32.partialorder %v4064, 0.0
      %vm4321 = vcmp.ge.f32.partialorder %v4065, 0.0
      %vm4322 = vcmp.ge.f32.partialorder %v4066, 0.0
      %vm4323 = vcmp.ge.f32.partialorder %v4067, 0.0
      %vm4324 = vcmp.ge.f32.partialorder %v4068, 0.0
      %vm4325 = vcmp.ge.f32.partialorder %v4069, 0.0
      %vm4326 = vcmp.ge.f32.partialorder %v4070, 0.0
      %vm4327 = vcmp.ge.f32.partialorder %v4071, 0.0
      %vm4328 = vcmp.ge.f32.partialorder %v4072, 0.0
      %vm4329 = vcmp.ge.f32.partialorder %v4073, 0.0
      %vm4330 = vcmp.ge.f32.partialorder %v4074, 0.0
      %vm4331 = vcmp.ge.f32.partialorder %v4075, 0.0
      %vm4332 = vcmp.ge.f32.partialorder %v4076, 0.0
      %vm4333 = vcmp.ge.f32.partialorder %v4077, 0.0
      %vm4334 = vcmp.ge.f32.partialorder %v4078, 0.0
      %vm4335 = vcmp.ge.f32.partialorder %v4079, 0.0
      %vm4336 = vcmp.ge.f32.partialorder %v4080, 0.0
      %vm4337 = vcmp.ge.f32.partialorder %v4081, 0.0
      %vm4338 = vcmp.ge.f32.partialorder %v4082, 0.0
      %vm4339 = vcmp.ge.f32.partialorder %v4083, 0.0
      %vm4340 = vcmp.ge.f32.partialorder %v4084, 0.0
      %vm4341 = vcmp.ge.f32.partialorder %v4085, 0.0
      %vm4342 = vcmp.ge.f32.partialorder %v4086, 0.0
      %vm4343 = vcmp.ge.f32.partialorder %v4087, 0.0
      %vm4344 = vcmp.ge.f32.partialorder %v4088, 0.0
      %vm4345 = vcmp.ge.f32.partialorder %v4089, 0.0
      %vm4346 = vcmp.ge.f32.partialorder %v4090, 0.0
      %vm4347 = vcmp.ge.f32.partialorder %v4091, 0.0
      %vm4348 = vcmp.ge.f32.partialorder %v4092, 0.0
      %vm4349 = vcmp.ge.f32.partialorder %v4093, 0.0
      %vm4350 = vcmp.ge.f32.partialorder %v4094, 0.0
      %vm4351 = vcmp.ge.f32.partialorder %v4095, 0.0
      %vm4352 = vcmp.ge.f32.partialorder %v4096, 0.0
      %vm4353 = vcmp.ge.f32.partialorder %v4097, 0.0
      %vm4354 = vcmp.ge.f32.partialorder %v4098, 0.0
      %vm4355 = vcmp.ge.f32.partialorder %v4099, 0.0
      %vm4356 = vcmp.ge.f32.partialorder %v4100, 0.0
      %vm4357 = vcmp.ge.f32.partialorder %v4101, 0.0
      %vm4358 = vcmp.ge.f32.partialorder %v4102, 0.0
      %vm4359 = vcmp.ge.f32.partialorder %v4103, 0.0
      %vm4360 = vcmp.ge.f32.partialorder %v4104, 0.0
      %vm4361 = vcmp.ge.f32.partialorder %v4105, 0.0
      %vm4362 = vcmp.ge.f32.partialorder %v4106, 0.0
      %vm4363 = vcmp.ge.f32.partialorder %v4107, 0.0
      %vm4364 = vcmp.ge.f32.partialorder %v4108, 0.0
      %vm4365 = vcmp.ge.f32.partialorder %v4109, 0.0
      %vm4366 = vcmp.ge.f32.partialorder %v4110, 0.0
      %vm4367 = vcmp.ge.f32.partialorder %v4111, 0.0
      %vm4368 = vcmp.ge.f32.partialorder %v4112, 0.0
      %vm4369 = vcmp.ge.f32.partialorder %v4113, 0.0
      %vm4370 = vcmp.ge.f32.partialorder %v4114, 0.0
      %vm4371 = vcmp.ge.f32.partialorder %v4115, 0.0
      %vm4372 = vcmp.ge.f32.partialorder %v4116, 0.0
      %vm4373 = vcmp.ge.f32.partialorder %v4117, 0.0
      %vm4374 = vcmp.ge.f32.partialorder %v4118, 0.0
      %vm4375 = vcmp.ge.f32.partialorder %v4119, 0.0
      %vm4376 = vcmp.ge.f32.partialorder %v4120, 0.0
      %vm4377 = vcmp.ge.f32.partialorder %v4121, 0.0
      %vm4378 = vcmp.ge.f32.partialorder %v4122, 0.0
      %vm4379 = vcmp.ge.f32.partialorder %v4123, 0.0
      %vm4380 = vcmp.ge.f32.partialorder %v4124, 0.0
      %vm4381 = vcmp.ge.f32.partialorder %v4125, 0.0
      %vm4382 = vcmp.ge.f32.partialorder %v4126, 0.0
      %vm4383 = vcmp.ge.f32.partialorder %v4127, 0.0
      %vm4384 = vcmp.ge.f32.partialorder %v4128, 0.0
      %vm4385 = vcmp.ge.f32.partialorder %v4129, 0.0
      %vm4386 = vcmp.ge.f32.partialorder %v4130, 0.0
      %vm4387 = vcmp.ge.f32.partialorder %v4131, 0.0
      %vm4388 = vcmp.ge.f32.partialorder %v4132, 0.0
      %vm4389 = vcmp.ge.f32.partialorder %v4133, 0.0
      %vm4390 = vcmp.ge.f32.partialorder %v4134, 0.0
      %vm4391 = vcmp.ge.f32.partialorder %v4135, 0.0
      %vm4392 = vcmp.ge.f32.partialorder %v4136, 0.0
      %vm4393 = vcmp.ge.f32.partialorder %v4137, 0.0
      %vm4394 = vcmp.ge.f32.partialorder %v4138, 0.0
      %vm4395 = vcmp.ge.f32.partialorder %v4139, 0.0
      %vm4396 = vcmp.ge.f32.partialorder %v4140, 0.0
      %vm4397 = vcmp.ge.f32.partialorder %v4141, 0.0
      %vm4398 = vcmp.ge.f32.partialorder %v4142, 0.0
      %vm4399 = vcmp.ge.f32.partialorder %v4143, 0.0
      %vm4400 = vcmp.ge.f32.partialorder %v4144, 0.0
      %vm4401 = vcmp.ge.f32.partialorder %v4145, 0.0
      %vm4402 = vcmp.ge.f32.partialorder %v4146, 0.0
      %vm4403 = vcmp.ge.f32.partialorder %v4147, 0.0
      %vm4404 = vcmp.ge.f32.partialorder %v4148, 0.0
      %vm4405 = vcmp.ge.f32.partialorder %v4149, 0.0
      %vm4406 = vcmp.ge.f32.partialorder %v4150, 0.0
      %vm4407 = vcmp.ge.f32.partialorder %v4151, 0.0
      %vm4408 = vcmp.ge.f32.partialorder %v4152, 0.0
      %vm4409 = vcmp.ge.f32.partialorder %v4153, 0.0
      %vm4410 = vcmp.ge.f32.partialorder %v4154, 0.0
      %vm4411 = vcmp.ge.f32.partialorder %v4155, 0.0
      %vm4412 = vcmp.ge.f32.partialorder %v4156, 0.0
      %vm4413 = vcmp.ge.f32.partialorder %v4157, 0.0
      %vm4414 = vcmp.ge.f32.partialorder %v4158, 0.0
      %vm4415 = vcmp.ge.f32.partialorder %v4159, 0.0
      %vm4416 = vcmp.ge.f32.partialorder %v4160, 0.0
      %vm4417 = vcmp.ge.f32.partialorder %v4161, 0.0
      %vm4418 = vcmp.ge.f32.partialorder %v4162, 0.0
      %vm4419 = vcmp.ge.f32.partialorder %v4163, 0.0
      %vm4420 = vcmp.ge.f32.partialorder %v4164, 0.0
      %vm4421 = vcmp.ge.f32.partialorder %v4165, 0.0
      %vm4422 = vcmp.ge.f32.partialorder %v4166, 0.0
      %vm4423 = vcmp.ge.f32.partialorder %v4167, 0.0
      %vm4424 = vcmp.ge.f32.partialorder %v4168, 0.0
      %vm4425 = vcmp.ge.f32.partialorder %v4169, 0.0
      %vm4426 = vcmp.ge.f32.partialorder %v4170, 0.0
      %vm4427 = vcmp.ge.f32.partialorder %v4171, 0.0
      %vm4428 = vcmp.ge.f32.partialorder %v4172, 0.0
      %vm4429 = vcmp.ge.f32.partialorder %v4173, 0.0
      %vm4430 = vcmp.ge.f32.partialorder %v4174, 0.0
      %vm4431 = vcmp.ge.f32.partialorder %v4175, 0.0
      %vm4432 = vcmp.ge.f32.partialorder %v4176, 0.0
      %vm4433 = vcmp.ge.f32.partialorder %v4177, 0.0
      %vm4434 = vcmp.ge.f32.partialorder %v4178, 0.0
      %vm4435 = vcmp.ge.f32.partialorder %v4179, 0.0
      %vm4436 = vcmp.ge.f32.partialorder %v4180, 0.0
      %vm4437 = vcmp.ge.f32.partialorder %v4181, 0.0
      %vm4438 = vcmp.ge.f32.partialorder %v4182, 0.0
      %vm4439 = vcmp.ge.f32.partialorder %v4183, 0.0
      %vm4440 = vcmp.ge.f32.partialorder %v4184, 0.0
      %vm4441 = vcmp.ge.f32.partialorder %v4185, 0.0
      %vm4442 = vcmp.ge.f32.partialorder %v4186, 0.0
      %vm4443 = vcmp.ge.f32.partialorder %v4187, 0.0
      %vm4444 = vcmp.ge.f32.partialorder %v4188, 0.0
      %vm4445 = vcmp.ge.f32.partialorder %v4189, 0.0
      %vm4446 = vcmp.ge.f32.partialorder %v4190, 0.0
      %vm4447 = vcmp.ge.f32.partialorder %v4191, 0.0
      %vm4448 = vcmp.ge.f32.partialorder %v4192, 0.0
      %vm4449 = vcmp.ge.f32.partialorder %v4193, 0.0
      %vm4450 = vcmp.ge.f32.partialorder %v4194, 0.0
      %vm4451 = vcmp.ge.f32.partialorder %v4195, 0.0
      %vm4452 = vcmp.ge.f32.partialorder %v4196, 0.0
      %vm4453 = vcmp.ge.f32.partialorder %v4197, 0.0
      %vm4454 = vcmp.ge.f32.partialorder %v4198, 0.0
      %vm4455 = vcmp.ge.f32.partialorder %v4199, 0.0
      %vm4456 = vcmp.ge.f32.partialorder %v4200, 0.0
      %vm4457 = vcmp.ge.f32.partialorder %v4201, 0.0
      %vm4458 = vcmp.ge.f32.partialorder %v4202, 0.0
      %vm4459 = vcmp.ge.f32.partialorder %v4203, 0.0
      %vm4460 = vcmp.ge.f32.partialorder %v4204, 0.0
      %vm4461 = vcmp.ge.f32.partialorder %v4205, 0.0
      %vm4462 = vcmp.ge.f32.partialorder %v4206, 0.0
      %vm4463 = vcmp.ge.f32.partialorder %v4207, 0.0
      %vm4464 = vcmp.ge.f32.partialorder %v4208, 0.0
      %vm4465 = vcmp.ge.f32.partialorder %v4209, 0.0
      %v4466 = vmul.f32 %v3954, 0.2
      %v4467 = vmul.f32 %v3955, 0.2
      %v4468 = vmul.f32 %v3956, 0.2
      %v4469 = vmul.f32 %v3957, 0.2
      %v4470 = vmul.f32 %v3958, 0.2
      %v4471 = vmul.f32 %v3959, 0.2
      %v4472 = vmul.f32 %v3960, 0.2
      %v4473 = vmul.f32 %v3961, 0.2
      %v4474 = vmul.f32 %v3962, 0.2
      %v4475 = vmul.f32 %v3963, 0.2
      %v4476 = vmul.f32 %v3964, 0.2
      %v4477 = vmul.f32 %v3965, 0.2
      %v4478 = vmul.f32 %v3966, 0.2
      %v4479 = vmul.f32 %v3967, 0.2
      %v4480 = vmul.f32 %v3968, 0.2
      %v4481 = vmul.f32 %v3969, 0.2
      %v4482 = vmul.f32 %v3970, 0.2
      %v4483 = vmul.f32 %v3971, 0.2
      %v4484 = vmul.f32 %v3972, 0.2
      %v4485 = vmul.f32 %v3973, 0.2
      %v4486 = vmul.f32 %v3974, 0.2
      %v4487 = vmul.f32 %v3975, 0.2
      %v4488 = vmul.f32 %v3976, 0.2
      %v4489 = vmul.f32 %v3977, 0.2
      %v4490 = vmul.f32 %v3978, 0.2
      %v4491 = vmul.f32 %v3979, 0.2
      %v4492 = vmul.f32 %v3980, 0.2
      %v4493 = vmul.f32 %v3981, 0.2
      %v4494 = vmul.f32 %v3982, 0.2
      %v4495 = vmul.f32 %v3983, 0.2
      %v4496 = vmul.f32 %v3984, 0.2
      %v4497 = vmul.f32 %v3985, 0.2
      %v4498 = vmul.f32 %v3986, 0.2
      %v4499 = vmul.f32 %v3987, 0.2
      %v4500 = vmul.f32 %v3988, 0.2
      %v4501 = vmul.f32 %v3989, 0.2
      %v4502 = vmul.f32 %v3990, 0.2
      %v4503 = vmul.f32 %v3991, 0.2
      %v4504 = vmul.f32 %v3992, 0.2
      %v4505 = vmul.f32 %v3993, 0.2
      %v4506 = vmul.f32 %v3994, 0.2
      %v4507 = vmul.f32 %v3995, 0.2
      %v4508 = vmul.f32 %v3996, 0.2
      %v4509 = vmul.f32 %v3997, 0.2
      %v4510 = vmul.f32 %v3998, 0.2
      %v4511 = vmul.f32 %v3999, 0.2
      %v4512 = vmul.f32 %v4000, 0.2
      %v4513 = vmul.f32 %v4001, 0.2
      %v4514 = vmul.f32 %v4002, 0.2
      %v4515 = vmul.f32 %v4003, 0.2
      %v4516 = vmul.f32 %v4004, 0.2
      %v4517 = vmul.f32 %v4005, 0.2
      %v4518 = vmul.f32 %v4006, 0.2
      %v4519 = vmul.f32 %v4007, 0.2
      %v4520 = vmul.f32 %v4008, 0.2
      %v4521 = vmul.f32 %v4009, 0.2
      %v4522 = vmul.f32 %v4010, 0.2
      %v4523 = vmul.f32 %v4011, 0.2
      %v4524 = vmul.f32 %v4012, 0.2
      %v4525 = vmul.f32 %v4013, 0.2
      %v4526 = vmul.f32 %v4014, 0.2
      %v4527 = vmul.f32 %v4015, 0.2
      %v4528 = vmul.f32 %v4016, 0.2
      %v4529 = vmul.f32 %v4017, 0.2
      %v4530 = vmul.f32 %v4018, 0.2
      %v4531 = vmul.f32 %v4019, 0.2
      %v4532 = vmul.f32 %v4020, 0.2
      %v4533 = vmul.f32 %v4021, 0.2
      %v4534 = vmul.f32 %v4022, 0.2
      %v4535 = vmul.f32 %v4023, 0.2
      %v4536 = vmul.f32 %v4024, 0.2
      %v4537 = vmul.f32 %v4025, 0.2
      %v4538 = vmul.f32 %v4026, 0.2
      %v4539 = vmul.f32 %v4027, 0.2
      %v4540 = vmul.f32 %v4028, 0.2
      %v4541 = vmul.f32 %v4029, 0.2
      %v4542 = vmul.f32 %v4030, 0.2
      %v4543 = vmul.f32 %v4031, 0.2
      %v4544 = vmul.f32 %v4032, 0.2
      %v4545 = vmul.f32 %v4033, 0.2
      %v4546 = vmul.f32 %v4034, 0.2
      %v4547 = vmul.f32 %v4035, 0.2
      %v4548 = vmul.f32 %v4036, 0.2
      %v4549 = vmul.f32 %v4037, 0.2
      %v4550 = vmul.f32 %v4038, 0.2
      %v4551 = vmul.f32 %v4039, 0.2
      %v4552 = vmul.f32 %v4040, 0.2
      %v4553 = vmul.f32 %v4041, 0.2
      %v4554 = vmul.f32 %v4042, 0.2
      %v4555 = vmul.f32 %v4043, 0.2
      %v4556 = vmul.f32 %v4044, 0.2
      %v4557 = vmul.f32 %v4045, 0.2
      %v4558 = vmul.f32 %v4046, 0.2
      %v4559 = vmul.f32 %v4047, 0.2
      %v4560 = vmul.f32 %v4048, 0.2
      %v4561 = vmul.f32 %v4049, 0.2
      %v4562 = vmul.f32 %v4050, 0.2
      %v4563 = vmul.f32 %v4051, 0.2
      %v4564 = vmul.f32 %v4052, 0.2
      %v4565 = vmul.f32 %v4053, 0.2
      %v4566 = vmul.f32 %v4054, 0.2
      %v4567 = vmul.f32 %v4055, 0.2
      %v4568 = vmul.f32 %v4056, 0.2
      %v4569 = vmul.f32 %v4057, 0.2
      %v4570 = vmul.f32 %v4058, 0.2
      %v4571 = vmul.f32 %v4059, 0.2
      %v4572 = vmul.f32 %v4060, 0.2
      %v4573 = vmul.f32 %v4061, 0.2
      %v4574 = vmul.f32 %v4062, 0.2
      %v4575 = vmul.f32 %v4063, 0.2
      %v4576 = vmul.f32 %v4064, 0.2
      %v4577 = vmul.f32 %v4065, 0.2
      %v4578 = vmul.f32 %v4066, 0.2
      %v4579 = vmul.f32 %v4067, 0.2
      %v4580 = vmul.f32 %v4068, 0.2
      %v4581 = vmul.f32 %v4069, 0.2
      %v4582 = vmul.f32 %v4070, 0.2
      %v4583 = vmul.f32 %v4071, 0.2
      %v4584 = vmul.f32 %v4072, 0.2
      %v4585 = vmul.f32 %v4073, 0.2
      %v4586 = vmul.f32 %v4074, 0.2
      %v4587 = vmul.f32 %v4075, 0.2
      %v4588 = vmul.f32 %v4076, 0.2
      %v4589 = vmul.f32 %v4077, 0.2
      %v4590 = vmul.f32 %v4078, 0.2
      %v4591 = vmul.f32 %v4079, 0.2
      %v4592 = vmul.f32 %v4080, 0.2
      %v4593 = vmul.f32 %v4081, 0.2
      %v4594 = vmul.f32 %v4082, 0.2
      %v4595 = vmul.f32 %v4083, 0.2
      %v4596 = vmul.f32 %v4084, 0.2
      %v4597 = vmul.f32 %v4085, 0.2
      %v4598 = vmul.f32 %v4086, 0.2
      %v4599 = vmul.f32 %v4087, 0.2
      %v4600 = vmul.f32 %v4088, 0.2
      %v4601 = vmul.f32 %v4089, 0.2
      %v4602 = vmul.f32 %v4090, 0.2
      %v4603 = vmul.f32 %v4091, 0.2
      %v4604 = vmul.f32 %v4092, 0.2
      %v4605 = vmul.f32 %v4093, 0.2
      %v4606 = vmul.f32 %v4094, 0.2
      %v4607 = vmul.f32 %v4095, 0.2
      %v4608 = vmul.f32 %v4096, 0.2
      %v4609 = vmul.f32 %v4097, 0.2
      %v4610 = vmul.f32 %v4098, 0.2
      %v4611 = vmul.f32 %v4099, 0.2
      %v4612 = vmul.f32 %v4100, 0.2
      %v4613 = vmul.f32 %v4101, 0.2
      %v4614 = vmul.f32 %v4102, 0.2
      %v4615 = vmul.f32 %v4103, 0.2
      %v4616 = vmul.f32 %v4104, 0.2
      %v4617 = vmul.f32 %v4105, 0.2
      %v4618 = vmul.f32 %v4106, 0.2
      %v4619 = vmul.f32 %v4107, 0.2
      %v4620 = vmul.f32 %v4108, 0.2
      %v4621 = vmul.f32 %v4109, 0.2
      %v4622 = vmul.f32 %v4110, 0.2
      %v4623 = vmul.f32 %v4111, 0.2
      %v4624 = vmul.f32 %v4112, 0.2
      %v4625 = vmul.f32 %v4113, 0.2
      %v4626 = vmul.f32 %v4114, 0.2
      %v4627 = vmul.f32 %v4115, 0.2
      %v4628 = vmul.f32 %v4116, 0.2
      %v4629 = vmul.f32 %v4117, 0.2
      %v4630 = vmul.f32 %v4118, 0.2
      %v4631 = vmul.f32 %v4119, 0.2
      %v4632 = vmul.f32 %v4120, 0.2
      %v4633 = vmul.f32 %v4121, 0.2
      %v4634 = vmul.f32 %v4122, 0.2
      %v4635 = vmul.f32 %v4123, 0.2
      %v4636 = vmul.f32 %v4124, 0.2
      %v4637 = vmul.f32 %v4125, 0.2
      %v4638 = vmul.f32 %v4126, 0.2
      %v4639 = vmul.f32 %v4127, 0.2
      %v4640 = vmul.f32 %v4128, 0.2
      %v4641 = vmul.f32 %v4129, 0.2
      %v4642 = vmul.f32 %v4130, 0.2
      %v4643 = vmul.f32 %v4131, 0.2
      %v4644 = vmul.f32 %v4132, 0.2
      %v4645 = vmul.f32 %v4133, 0.2
      %v4646 = vmul.f32 %v4134, 0.2
      %v4647 = vmul.f32 %v4135, 0.2
      %v4648 = vmul.f32 %v4136, 0.2
      %v4649 = vmul.f32 %v4137, 0.2
      %v4650 = vmul.f32 %v4138, 0.2
      %v4651 = vmul.f32 %v4139, 0.2
      %v4652 = vmul.f32 %v4140, 0.2
      %v4653 = vmul.f32 %v4141, 0.2
      %v4654 = vmul.f32 %v4142, 0.2
      %v4655 = vmul.f32 %v4143, 0.2
      %v4656 = vmul.f32 %v4144, 0.2
      %v4657 = vmul.f32 %v4145, 0.2
      %v4658 = vmul.f32 %v4146, 0.2
      %v4659 = vmul.f32 %v4147, 0.2
      %v4660 = vmul.f32 %v4148, 0.2
      %v4661 = vmul.f32 %v4149, 0.2
      %v4662 = vmul.f32 %v4150, 0.2
      %v4663 = vmul.f32 %v4151, 0.2
      %v4664 = vmul.f32 %v4152, 0.2
      %v4665 = vmul.f32 %v4153, 0.2
      %v4666 = vmul.f32 %v4154, 0.2
      %v4667 = vmul.f32 %v4155, 0.2
      %v4668 = vmul.f32 %v4156, 0.2
      %v4669 = vmul.f32 %v4157, 0.2
      %v4670 = vmul.f32 %v4158, 0.2
      %v4671 = vmul.f32 %v4159, 0.2
      %v4672 = vmul.f32 %v4160, 0.2
      %v4673 = vmul.f32 %v4161, 0.2
      %v4674 = vmul.f32 %v4162, 0.2
      %v4675 = vmul.f32 %v4163, 0.2
      %v4676 = vmul.f32 %v4164, 0.2
      %v4677 = vmul.f32 %v4165, 0.2
      %v4678 = vmul.f32 %v4166, 0.2
      %v4679 = vmul.f32 %v4167, 0.2
      %v4680 = vmul.f32 %v4168, 0.2
      %v4681 = vmul.f32 %v4169, 0.2
      %v4682 = vmul.f32 %v4170, 0.2
      %v4683 = vmul.f32 %v4171, 0.2
      %v4684 = vmul.f32 %v4172, 0.2
      %v4685 = vmul.f32 %v4173, 0.2
      %v4686 = vmul.f32 %v4174, 0.2
      %v4687 = vmul.f32 %v4175, 0.2
      %v4688 = vmul.f32 %v4176, 0.2
      %v4689 = vmul.f32 %v4177, 0.2
      %v4690 = vmul.f32 %v4178, 0.2
      %v4691 = vmul.f32 %v4179, 0.2
      %v4692 = vmul.f32 %v4180, 0.2
      %v4693 = vmul.f32 %v4181, 0.2
      %v4694 = vmul.f32 %v4182, 0.2
      %v4695 = vmul.f32 %v4183, 0.2
      %v4696 = vmul.f32 %v4184, 0.2
      %v4697 = vmul.f32 %v4185, 0.2
      %v4698 = vmul.f32 %v4186, 0.2
      %v4699 = vmul.f32 %v4187, 0.2
      %v4700 = vmul.f32 %v4188, 0.2
      %v4701 = vmul.f32 %v4189, 0.2
      %v4702 = vmul.f32 %v4190, 0.2
      %v4703 = vmul.f32 %v4191, 0.2
      %v4704 = vmul.f32 %v4192, 0.2
      %v4705 = vmul.f32 %v4193, 0.2
      %v4706 = vmul.f32 %v4194, 0.2
      %v4707 = vmul.f32 %v4195, 0.2
      %v4708 = vmul.f32 %v4196, 0.2
      %v4709 = vmul.f32 %v4197, 0.2
      %v4710 = vmul.f32 %v4198, 0.2
      %v4711 = vmul.f32 %v4199, 0.2
      %v4712 = vmul.f32 %v4200, 0.2
      %v4713 = vmul.f32 %v4201, 0.2
      %v4714 = vmul.f32 %v4202, 0.2
      %v4715 = vmul.f32 %v4203, 0.2
      %v4716 = vmul.f32 %v4204, 0.2
      %v4717 = vmul.f32 %v4205, 0.2
      %v4718 = vmul.f32 %v4206, 0.2
      %v4719 = vmul.f32 %v4207, 0.2
      %v4720 = vmul.f32 %v4208, 0.2
      %v4721 = vmul.f32 %v4209, 0.2
      %v4722 = vsel %vm4210, %v3954, %v4466
      %v4723 = vsel %vm4211, %v3955, %v4467
      %v4724 = vsel %vm4212, %v3956, %v4468
      %v4725 = vsel %vm4213, %v3957, %v4469
      %v4726 = vsel %vm4214, %v3958, %v4470
      %v4727 = vsel %vm4215, %v3959, %v4471
      %v4728 = vsel %vm4216, %v3960, %v4472
      %v4729 = vsel %vm4217, %v3961, %v4473
      %v4730 = vsel %vm4218, %v3962, %v4474
      %v4731 = vsel %vm4219, %v3963, %v4475
      %v4732 = vsel %vm4220, %v3964, %v4476
      %v4733 = vsel %vm4221, %v3965, %v4477
      %v4734 = vsel %vm4222, %v3966, %v4478
      %v4735 = vsel %vm4223, %v3967, %v4479
      %v4736 = vsel %vm4224, %v3968, %v4480
      %v4737 = vsel %vm4225, %v3969, %v4481
      %v4738 = vsel %vm4226, %v3970, %v4482
      %v4739 = vsel %vm4227, %v3971, %v4483
      %v4740 = vsel %vm4228, %v3972, %v4484
      %v4741 = vsel %vm4229, %v3973, %v4485
      %v4742 = vsel %vm4230, %v3974, %v4486
      %v4743 = vsel %vm4231, %v3975, %v4487
      %v4744 = vsel %vm4232, %v3976, %v4488
      %v4745 = vsel %vm4233, %v3977, %v4489
      %v4746 = vsel %vm4234, %v3978, %v4490
      %v4747 = vsel %vm4235, %v3979, %v4491
      %v4748 = vsel %vm4236, %v3980, %v4492
      %v4749 = vsel %vm4237, %v3981, %v4493
      %v4750 = vsel %vm4238, %v3982, %v4494
      %v4751 = vsel %vm4239, %v3983, %v4495
      %v4752 = vsel %vm4240, %v3984, %v4496
      %v4753 = vsel %vm4241, %v3985, %v4497
      %v4754 = vsel %vm4242, %v3986, %v4498
      %v4755 = vsel %vm4243, %v3987, %v4499
      %v4756 = vsel %vm4244, %v3988, %v4500
      %v4757 = vsel %vm4245, %v3989, %v4501
      %v4758 = vsel %vm4246, %v3990, %v4502
      %v4759 = vsel %vm4247, %v3991, %v4503
      %v4760 = vsel %vm4248, %v3992, %v4504
      %v4761 = vsel %vm4249, %v3993, %v4505
      %v4762 = vsel %vm4250, %v3994, %v4506
      %v4763 = vsel %vm4251, %v3995, %v4507
      %v4764 = vsel %vm4252, %v3996, %v4508
      %v4765 = vsel %vm4253, %v3997, %v4509
      %v4766 = vsel %vm4254, %v3998, %v4510
      %v4767 = vsel %vm4255, %v3999, %v4511
      %v4768 = vsel %vm4256, %v4000, %v4512
      %v4769 = vsel %vm4257, %v4001, %v4513
      %v4770 = vsel %vm4258, %v4002, %v4514
      %v4771 = vsel %vm4259, %v4003, %v4515
      %v4772 = vsel %vm4260, %v4004, %v4516
      %v4773 = vsel %vm4261, %v4005, %v4517
      %v4774 = vsel %vm4262, %v4006, %v4518
      %v4775 = vsel %vm4263, %v4007, %v4519
      %v4776 = vsel %vm4264, %v4008, %v4520
      %v4777 = vsel %vm4265, %v4009, %v4521
      %v4778 = vsel %vm4266, %v4010, %v4522
      %v4779 = vsel %vm4267, %v4011, %v4523
      %v4780 = vsel %vm4268, %v4012, %v4524
      %v4781 = vsel %vm4269, %v4013, %v4525
      %v4782 = vsel %vm4270, %v4014, %v4526
      %v4783 = vsel %vm4271, %v4015, %v4527
      %v4784 = vsel %vm4272, %v4016, %v4528
      %v4785 = vsel %vm4273, %v4017, %v4529
      %v4786 = vsel %vm4274, %v4018, %v4530
      %v4787 = vsel %vm4275, %v4019, %v4531
      %v4788 = vsel %vm4276, %v4020, %v4532
      %v4789 = vsel %vm4277, %v4021, %v4533
      %v4790 = vsel %vm4278, %v4022, %v4534
      %v4791 = vsel %vm4279, %v4023, %v4535
      %v4792 = vsel %vm4280, %v4024, %v4536
      %v4793 = vsel %vm4281, %v4025, %v4537
      %v4794 = vsel %vm4282, %v4026, %v4538
      %v4795 = vsel %vm4283, %v4027, %v4539
      %v4796 = vsel %vm4284, %v4028, %v4540
      %v4797 = vsel %vm4285, %v4029, %v4541
      %v4798 = vsel %vm4286, %v4030, %v4542
      %v4799 = vsel %vm4287, %v4031, %v4543
      %v4800 = vsel %vm4288, %v4032, %v4544
      %v4801 = vsel %vm4289, %v4033, %v4545
      %v4802 = vsel %vm4290, %v4034, %v4546
      %v4803 = vsel %vm4291, %v4035, %v4547
      %v4804 = vsel %vm4292, %v4036, %v4548
      %v4805 = vsel %vm4293, %v4037, %v4549
      %v4806 = vsel %vm4294, %v4038, %v4550
      %v4807 = vsel %vm4295, %v4039, %v4551
      %v4808 = vsel %vm4296, %v4040, %v4552
      %v4809 = vsel %vm4297, %v4041, %v4553
      %v4810 = vsel %vm4298, %v4042, %v4554
      %v4811 = vsel %vm4299, %v4043, %v4555
      %v4812 = vsel %vm4300, %v4044, %v4556
      %v4813 = vsel %vm4301, %v4045, %v4557
      %v4814 = vsel %vm4302, %v4046, %v4558
      %v4815 = vsel %vm4303, %v4047, %v4559
      %v4816 = vsel %vm4304, %v4048, %v4560
      %v4817 = vsel %vm4305, %v4049, %v4561
      %v4818 = vsel %vm4306, %v4050, %v4562
      %v4819 = vsel %vm4307, %v4051, %v4563
      %v4820 = vsel %vm4308, %v4052, %v4564
      %v4821 = vsel %vm4309, %v4053, %v4565
      %v4822 = vsel %vm4310, %v4054, %v4566
      %v4823 = vsel %vm4311, %v4055, %v4567
      %v4824 = vsel %vm4312, %v4056, %v4568
      %v4825 = vsel %vm4313, %v4057, %v4569
      %v4826 = vsel %vm4314, %v4058, %v4570
      %v4827 = vsel %vm4315, %v4059, %v4571
      %v4828 = vsel %vm4316, %v4060, %v4572
      %v4829 = vsel %vm4317, %v4061, %v4573
      %v4830 = vsel %vm4318, %v4062, %v4574
      %v4831 = vsel %vm4319, %v4063, %v4575
      %v4832 = vsel %vm4320, %v4064, %v4576
      %v4833 = vsel %vm4321, %v4065, %v4577
      %v4834 = vsel %vm4322, %v4066, %v4578
      %v4835 = vsel %vm4323, %v4067, %v4579
      %v4836 = vsel %vm4324, %v4068, %v4580
      %v4837 = vsel %vm4325, %v4069, %v4581
      %v4838 = vsel %vm4326, %v4070, %v4582
      %v4839 = vsel %vm4327, %v4071, %v4583
      %v4840 = vsel %vm4328, %v4072, %v4584
      %v4841 = vsel %vm4329, %v4073, %v4585
      %v4842 = vsel %vm4330, %v4074, %v4586
      %v4843 = vsel %vm4331, %v4075, %v4587
      %v4844 = vsel %vm4332, %v4076, %v4588
      %v4845 = vsel %vm4333, %v4077, %v4589
      %v4846 = vsel %vm4334, %v4078, %v4590
      %v4847 = vsel %vm4335, %v4079, %v4591
      %v4848 = vsel %vm4336, %v4080, %v4592
      %v4849 = vsel %vm4337, %v4081, %v4593
      %v4850 = vsel %vm4338, %v4082, %v4594
      %v4851 = vsel %vm4339, %v4083, %v4595
      %v4852 = vsel %vm4340, %v4084, %v4596
      %v4853 = vsel %vm4341, %v4085, %v4597
      %v4854 = vsel %vm4342, %v4086, %v4598
      %v4855 = vsel %vm4343, %v4087, %v4599
      %v4856 = vsel %vm4344, %v4088, %v4600
      %v4857 = vsel %vm4345, %v4089, %v4601
      %v4858 = vsel %vm4346, %v4090, %v4602
      %v4859 = vsel %vm4347, %v4091, %v4603
      %v4860 = vsel %vm4348, %v4092, %v4604
      %v4861 = vsel %vm4349, %v4093, %v4605
      %v4862 = vsel %vm4350, %v4094, %v4606
      %v4863 = vsel %vm4351, %v4095, %v4607
      %v4864 = vsel %vm4352, %v4096, %v4608
      %v4865 = vsel %vm4353, %v4097, %v4609
      %v4866 = vsel %vm4354, %v4098, %v4610
      %v4867 = vsel %vm4355, %v4099, %v4611
      %v4868 = vsel %vm4356, %v4100, %v4612
      %v4869 = vsel %vm4357, %v4101, %v4613
      %v4870 = vsel %vm4358, %v4102, %v4614
      %v4871 = vsel %vm4359, %v4103, %v4615
      %v4872 = vsel %vm4360, %v4104, %v4616
      %v4873 = vsel %vm4361, %v4105, %v4617
      %v4874 = vsel %vm4362, %v4106, %v4618
      %v4875 = vsel %vm4363, %v4107, %v4619
      %v4876 = vsel %vm4364, %v4108, %v4620
      %v4877 = vsel %vm4365, %v4109, %v4621
      %v4878 = vsel %vm4366, %v4110, %v4622
      %v4879 = vsel %vm4367, %v4111, %v4623
      %v4880 = vsel %vm4368, %v4112, %v4624
      %v4881 = vsel %vm4369, %v4113, %v4625
      %v4882 = vsel %vm4370, %v4114, %v4626
      %v4883 = vsel %vm4371, %v4115, %v4627
      %v4884 = vsel %vm4372, %v4116, %v4628
      %v4885 = vsel %vm4373, %v4117, %v4629
      %v4886 = vsel %vm4374, %v4118, %v4630
      %v4887 = vsel %vm4375, %v4119, %v4631
      %v4888 = vsel %vm4376, %v4120, %v4632
      %v4889 = vsel %vm4377, %v4121, %v4633
      %v4890 = vsel %vm4378, %v4122, %v4634
      %v4891 = vsel %vm4379, %v4123, %v4635
      %v4892 = vsel %vm4380, %v4124, %v4636
      %v4893 = vsel %vm4381, %v4125, %v4637
      %v4894 = vsel %vm4382, %v4126, %v4638
      %v4895 = vsel %vm4383, %v4127, %v4639
      %v4896 = vsel %vm4384, %v4128, %v4640
      %v4897 = vsel %vm4385, %v4129, %v4641
      %v4898 = vsel %vm4386, %v4130, %v4642
      %v4899 = vsel %vm4387, %v4131, %v4643
      %v4900 = vsel %vm4388, %v4132, %v4644
      %v4901 = vsel %vm4389, %v4133, %v4645
      %v4902 = vsel %vm4390, %v4134, %v4646
      %v4903 = vsel %vm4391, %v4135, %v4647
      %v4904 = vsel %vm4392, %v4136, %v4648
      %v4905 = vsel %vm4393, %v4137, %v4649
      %v4906 = vsel %vm4394, %v4138, %v4650
      %v4907 = vsel %vm4395, %v4139, %v4651
      %v4908 = vsel %vm4396, %v4140, %v4652
      %v4909 = vsel %vm4397, %v4141, %v4653
      %v4910 = vsel %vm4398, %v4142, %v4654
      %v4911 = vsel %vm4399, %v4143, %v4655
      %v4912 = vsel %vm4400, %v4144, %v4656
      %v4913 = vsel %vm4401, %v4145, %v4657
      %v4914 = vsel %vm4402, %v4146, %v4658
      %v4915 = vsel %vm4403, %v4147, %v4659
      %v4916 = vsel %vm4404, %v4148, %v4660
      %v4917 = vsel %vm4405, %v4149, %v4661
      %v4918 = vsel %vm4406, %v4150, %v4662
      %v4919 = vsel %vm4407, %v4151, %v4663
      %v4920 = vsel %vm4408, %v4152, %v4664
      %v4921 = vsel %vm4409, %v4153, %v4665
      %v4922 = vsel %vm4410, %v4154, %v4666
      %v4923 = vsel %vm4411, %v4155, %v4667
      %v4924 = vsel %vm4412, %v4156, %v4668
      %v4925 = vsel %vm4413, %v4157, %v4669
      %v4926 = vsel %vm4414, %v4158, %v4670
      %v4927 = vsel %vm4415, %v4159, %v4671
      %v4928 = vsel %vm4416, %v4160, %v4672
      %v4929 = vsel %vm4417, %v4161, %v4673
      %v4930 = vsel %vm4418, %v4162, %v4674
      %v4931 = vsel %vm4419, %v4163, %v4675
      %v4932 = vsel %vm4420, %v4164, %v4676
      %v4933 = vsel %vm4421, %v4165, %v4677
      %v4934 = vsel %vm4422, %v4166, %v4678
      %v4935 = vsel %vm4423, %v4167, %v4679
      %v4936 = vsel %vm4424, %v4168, %v4680
      %v4937 = vsel %vm4425, %v4169, %v4681
      %v4938 = vsel %vm4426, %v4170, %v4682
      %v4939 = vsel %vm4427, %v4171, %v4683
      %v4940 = vsel %vm4428, %v4172, %v4684
      %v4941 = vsel %vm4429, %v4173, %v4685
      %v4942 = vsel %vm4430, %v4174, %v4686
      %v4943 = vsel %vm4431, %v4175, %v4687
      %v4944 = vsel %vm4432, %v4176, %v4688
      %v4945 = vsel %vm4433, %v4177, %v4689
      %v4946 = vsel %vm4434, %v4178, %v4690
      %v4947 = vsel %vm4435, %v4179, %v4691
      %v4948 = vsel %vm4436, %v4180, %v4692
      %v4949 = vsel %vm4437, %v4181, %v4693
      %v4950 = vsel %vm4438, %v4182, %v4694
      %v4951 = vsel %vm4439, %v4183, %v4695
      %v4952 = vsel %vm4440, %v4184, %v4696
      %v4953 = vsel %vm4441, %v4185, %v4697
      %v4954 = vsel %vm4442, %v4186, %v4698
      %v4955 = vsel %vm4443, %v4187, %v4699
      %v4956 = vsel %vm4444, %v4188, %v4700
      %v4957 = vsel %vm4445, %v4189, %v4701
      %v4958 = vsel %vm4446, %v4190, %v4702
      %v4959 = vsel %vm4447, %v4191, %v4703
      %v4960 = vsel %vm4448, %v4192, %v4704
      %v4961 = vsel %vm4449, %v4193, %v4705
      %v4962 = vsel %vm4450, %v4194, %v4706
      %v4963 = vsel %vm4451, %v4195, %v4707
      %v4964 = vsel %vm4452, %v4196, %v4708
      %v4965 = vsel %vm4453, %v4197, %v4709
      %v4966 = vsel %vm4454, %v4198, %v4710
      %v4967 = vsel %vm4455, %v4199, %v4711
      %v4968 = vsel %vm4456, %v4200, %v4712
      %v4969 = vsel %vm4457, %v4201, %v4713
      %v4970 = vsel %vm4458, %v4202, %v4714
      %v4971 = vsel %vm4459, %v4203, %v4715
      %v4972 = vsel %vm4460, %v4204, %v4716
      %v4973 = vsel %vm4461, %v4205, %v4717
      %v4974 = vsel %vm4462, %v4206, %v4718
      %v4975 = vsel %vm4463, %v4207, %v4719
      %v4976 = vsel %vm4464, %v4208, %v4720
      %v4977 = vsel %vm4465, %v4209, %v4721
      %4978 = vst [vmem:[#allocation2] sm:$0xff] %v4722
      %4979 = vst [vmem:[#allocation2 + $0x8] sm:$0xff] %v4723
      %4980 = vst [vmem:[#allocation2 + $0x10] sm:$0xff] %v4724
      %4981 = vst [vmem:[#allocation2 + $0x18] sm:$0xff] %v4725
      %4982 = vst [vmem:[#allocation2 + $0x20] sm:$0xff] %v4726
      %4983 = vst [vmem:[#allocation2 + $0x28] sm:$0xff] %v4727
      %4984 = vst [vmem:[#allocation2 + $0x30] sm:$0xff] %v4728
      %4985 = vst [vmem:[#allocation2 + $0x38] sm:$0xff] %v4729
      %4986 = vst [vmem:[#allocation2 + $0x40] sm:$0xff] %v4730
      %4987 = vst [vmem:[#allocation2 + $0x48] sm:$0xff] %v4731
      %4988 = vst [vmem:[#allocation2 + $0x50] sm:$0xff] %v4732
      %4989 = vst [vmem:[#allocation2 + $0x58] sm:$0xff] %v4733
      %4990 = vst [vmem:[#allocation2 + $0x60] sm:$0xff] %v4734
      %4991 = vst [vmem:[#allocation2 + $0x68] sm:$0xff] %v4735
      %4992 = vst [vmem:[#allocation2 + $0x70] sm:$0xff] %v4736
      %4993 = vst [vmem:[#allocation2 + $0x78] sm:$0xff] %v4737
      %4994 = vst [vmem:[#allocation2 + $0x80] sm:$0xff] %v4738
      %4995 = vst [vmem:[#allocation2 + $0x88] sm:$0xff] %v4739
      %4996 = vst [vmem:[#allocation2 + $0x90] sm:$0xff] %v4740
      %4997 = vst [vmem:[#allocation2 + $0x98] sm:$0xff] %v4741
      %4998 = vst [vmem:[#allocation2 + $0xa0] sm:$0xff] %v4742
      %4999 = vst [vmem:[#allocation2 + $0xa8] sm:$0xff] %v4743
      %5000 = vst [vmem:[#allocation2 + $0xb0] sm:$0xff] %v4744
      %5001 = vst [vmem:[#allocation2 + $0xb8] sm:$0xff] %v4745
      %5002 = vst [vmem:[#allocation2 + $0xc0] sm:$0xff] %v4746
      %5003 = vst [vmem:[#allocation2 + $0xc8] sm:$0xff] %v4747
      %5004 = vst [vmem:[#allocation2 + $0xd0] sm:$0xff] %v4748
      %5005 = vst [vmem:[#allocation2 + $0xd8] sm:$0xff] %v4749
      %5006 = vst [vmem:[#allocation2 + $0xe0] sm:$0xff] %v4750
      %5007 = vst [vmem:[#allocation2 + $0xe8] sm:$0xff] %v4751
      %5008 = vst [vmem:[#allocation2 + $0xf0] sm:$0xff] %v4752
      %5009 = vst [vmem:[#allocation2 + $0xf8] sm:$0xff] %v4753
      %5010 = vst [vmem:[#allocation2 + $0x100] sm:$0xff] %v4754
      %5011 = vst [vmem:[#allocation2 + $0x108] sm:$0xff] %v4755
      %5012 = vst [vmem:[#allocation2 + $0x110] sm:$0xff] %v4756
      %5013 = vst [vmem:[#allocation2 + $0x118] sm:$0xff] %v4757
      %5014 = vst [vmem:[#allocation2 + $0x120] sm:$0xff] %v4758
      %5015 = vst [vmem:[#allocation2 + $0x128] sm:$0xff] %v4759
      %5016 = vst [vmem:[#allocation2 + $0x130] sm:$0xff] %v4760
      %5017 = vst [vmem:[#allocation2 + $0x138] sm:$0xff] %v4761
      %5018 = vst [vmem:[#allocation2 + $0x140] sm:$0xff] %v4762
      %5019 = vst [vmem:[#allocation2 + $0x148] sm:$0xff] %v4763
      %5020 = vst [vmem:[#allocation2 + $0x150] sm:$0xff] %v4764
      %5021 = vst [vmem:[#allocation2 + $0x158] sm:$0xff] %v4765
      %5022 = vst [vmem:[#allocation2 + $0x160] sm:$0xff] %v4766
      %5023 = vst [vmem:[#allocation2 + $0x168] sm:$0xff] %v4767
      %5024 = vst [vmem:[#allocation2 + $0x170] sm:$0xff] %v4768
      %5025 = vst [vmem:[#allocation2 + $0x178] sm:$0xff] %v4769
      %5026 = vst [vmem:[#allocation2 + $0x180] sm:$0xff] %v4770
      %5027 = vst [vmem:[#allocation2 + $0x188] sm:$0xff] %v4771
      %5028 = vst [vmem:[#allocation2 + $0x190] sm:$0xff] %v4772
      %5029 = vst [vmem:[#allocation2 + $0x198] sm:$0xff] %v4773
      %5030 = vst [vmem:[#allocation2 + $0x1a0] sm:$0xff] %v4774
      %5031 = vst [vmem:[#allocation2 + $0x1a8] sm:$0xff] %v4775
      %5032 = vst [vmem:[#allocation2 + $0x1b0] sm:$0xff] %v4776
      %5033 = vst [vmem:[#allocation2 + $0x1b8] sm:$0xff] %v4777
      %5034 = vst [vmem:[#allocation2 + $0x1c0] sm:$0xff] %v4778
      %5035 = vst [vmem:[#allocation2 + $0x1c8] sm:$0xff] %v4779
      %5036 = vst [vmem:[#allocation2 + $0x1d0] sm:$0xff] %v4780
      %5037 = vst [vmem:[#allocation2 + $0x1d8] sm:$0xff] %v4781
      %5038 = vst [vmem:[#allocation2 + $0x1e0] sm:$0xff] %v4782
      %5039 = vst [vmem:[#allocation2 + $0x1e8] sm:$0xff] %v4783
      %5040 = vst [vmem:[#allocation2 + $0x1f0] sm:$0xff] %v4784
      %5041 = vst [vmem:[#allocation2 + $0x1f8] sm:$0xff] %v4785
      %5042 = vst [vmem:[#allocation2 + $0x200] sm:$0xff] %v4786
      %5043 = vst [vmem:[#allocation2 + $0x208] sm:$0xff] %v4787
      %5044 = vst [vmem:[#allocation2 + $0x210] sm:$0xff] %v4788
      %5045 = vst [vmem:[#allocation2 + $0x218] sm:$0xff] %v4789
      %5046 = vst [vmem:[#allocation2 + $0x220] sm:$0xff] %v4790
      %5047 = vst [vmem:[#allocation2 + $0x228] sm:$0xff] %v4791
      %5048 = vst [vmem:[#allocation2 + $0x230] sm:$0xff] %v4792
      %5049 = vst [vmem:[#allocation2 + $0x238] sm:$0xff] %v4793
      %5050 = vst [vmem:[#allocation2 + $0x240] sm:$0xff] %v4794
      %5051 = vst [vmem:[#allocation2 + $0x248] sm:$0xff] %v4795
      %5052 = vst [vmem:[#allocation2 + $0x250] sm:$0xff] %v4796
      %5053 = vst [vmem:[#allocation2 + $0x258] sm:$0xff] %v4797
      %5054 = vst [vmem:[#allocation2 + $0x260] sm:$0xff] %v4798
      %5055 = vst [vmem:[#allocation2 + $0x268] sm:$0xff] %v4799
      %5056 = vst [vmem:[#allocation2 + $0x270] sm:$0xff] %v4800
      %5057 = vst [vmem:[#allocation2 + $0x278] sm:$0xff] %v4801
      %5058 = vst [vmem:[#allocation2 + $0x280] sm:$0xff] %v4802
      %5059 = vst [vmem:[#allocation2 + $0x288] sm:$0xff] %v4803
      %5060 = vst [vmem:[#allocation2 + $0x290] sm:$0xff] %v4804
      %5061 = vst [vmem:[#allocation2 + $0x298] sm:$0xff] %v4805
      %5062 = vst [vmem:[#allocation2 + $0x2a0] sm:$0xff] %v4806
      %5063 = vst [vmem:[#allocation2 + $0x2a8] sm:$0xff] %v4807
      %5064 = vst [vmem:[#allocation2 + $0x2b0] sm:$0xff] %v4808
      %5065 = vst [vmem:[#allocation2 + $0x2b8] sm:$0xff] %v4809
      %5066 = vst [vmem:[#allocation2 + $0x2c0] sm:$0xff] %v4810
      %5067 = vst [vmem:[#allocation2 + $0x2c8] sm:$0xff] %v4811
      %5068 = vst [vmem:[#allocation2 + $0x2d0] sm:$0xff] %v4812
      %5069 = vst [vmem:[#allocation2 + $0x2d8] sm:$0xff] %v4813
      %5070 = vst [vmem:[#allocation2 + $0x2e0] sm:$0xff] %v4814
      %5071 = vst [vmem:[#allocation2 + $0x2e8] sm:$0xff] %v4815
      %5072 = vst [vmem:[#allocation2 + $0x2f0] sm:$0xff] %v4816
      %5073 = vst [vmem:[#allocation2 + $0x2f8] sm:$0xff] %v4817
      %5074 = vst [vmem:[#allocation2 + $0x300] sm:$0xff] %v4818
      %5075 = vst [vmem:[#allocation2 + $0x308] sm:$0xff] %v4819
      %5076 = vst [vmem:[#allocation2 + $0x310] sm:$0xff] %v4820
      %5077 = vst [vmem:[#allocation2 + $0x318] sm:$0xff] %v4821
      %5078 = vst [vmem:[#allocation2 + $0x320] sm:$0xff] %v4822
      %5079 = vst [vmem:[#allocation2 + $0x328] sm:$0xff] %v4823
      %5080 = vst [vmem:[#allocation2 + $0x330] sm:$0xff] %v4824
      %5081 = vst [vmem:[#allocation2 + $0x338] sm:$0xff] %v4825
      %5082 = vst [vmem:[#allocation2 + $0x340] sm:$0xff] %v4826
      %5083 = vst [vmem:[#allocation2 + $0x348] sm:$0xff] %v4827
      %5084 = vst [vmem:[#allocation2 + $0x350] sm:$0xff] %v4828
      %5085 = vst [vmem:[#allocation2 + $0x358] sm:$0xff] %v4829
      %5086 = vst [vmem:[#allocation2 + $0x360] sm:$0xff] %v4830
      %5087 = vst [vmem:[#allocation2 + $0x368] sm:$0xff] %v4831
      %5088 = vst [vmem:[#allocation2 + $0x370] sm:$0xff] %v4832
      %5089 = vst [vmem:[#allocation2 + $0x378] sm:$0xff] %v4833
      %5090 = vst [vmem:[#allocation2 + $0x380] sm:$0xff] %v4834
      %5091 = vst [vmem:[#allocation2 + $0x388] sm:$0xff] %v4835
      %5092 = vst [vmem:[#allocation2 + $0x390] sm:$0xff] %v4836
      %5093 = vst [vmem:[#allocation2 + $0x398] sm:$0xff] %v4837
      %5094 = vst [vmem:[#allocation2 + $0x3a0] sm:$0xff] %v4838
      %5095 = vst [vmem:[#allocation2 + $0x3a8] sm:$0xff] %v4839
      %5096 = vst [vmem:[#allocation2 + $0x3b0] sm:$0xff] %v4840
      %5097 = vst [vmem:[#allocation2 + $0x3b8] sm:$0xff] %v4841
      %5098 = vst [vmem:[#allocation2 + $0x3c0] sm:$0xff] %v4842
      %5099 = vst [vmem:[#allocation2 + $0x3c8] sm:$0xff] %v4843
      %5100 = vst [vmem:[#allocation2 + $0x3d0] sm:$0xff] %v4844
      %5101 = vst [vmem:[#allocation2 + $0x3d8] sm:$0xff] %v4845
      %5102 = vst [vmem:[#allocation2 + $0x3e0] sm:$0xff] %v4846
      %5103 = vst [vmem:[#allocation2 + $0x3e8] sm:$0xff] %v4847
      %5104 = vst [vmem:[#allocation2 + $0x3f0] sm:$0xff] %v4848
      %5105 = vst [vmem:[#allocation2 + $0x3f8] sm:$0xff] %v4849
      %5106 = vst [vmem:[#allocation2 + $0x400] sm:$0xff] %v4850
      %5107 = vst [vmem:[#allocation2 + $0x408] sm:$0xff] %v4851
      %5108 = vst [vmem:[#allocation2 + $0x410] sm:$0xff] %v4852
      %5109 = vst [vmem:[#allocation2 + $0x418] sm:$0xff] %v4853
      %5110 = vst [vmem:[#allocation2 + $0x420] sm:$0xff] %v4854
      %5111 = vst [vmem:[#allocation2 + $0x428] sm:$0xff] %v4855
      %5112 = vst [vmem:[#allocation2 + $0x430] sm:$0xff] %v4856
      %5113 = vst [vmem:[#allocation2 + $0x438] sm:$0xff] %v4857
      %5114 = vst [vmem:[#allocation2 + $0x440] sm:$0xff] %v4858
      %5115 = vst [vmem:[#allocation2 + $0x448] sm:$0xff] %v4859
      %5116 = vst [vmem:[#allocation2 + $0x450] sm:$0xff] %v4860
      %5117 = vst [vmem:[#allocation2 + $0x458] sm:$0xff] %v4861
      %5118 = vst [vmem:[#allocation2 + $0x460] sm:$0xff] %v4862
      %5119 = vst [vmem:[#allocation2 + $0x468] sm:$0xff] %v4863
      %5120 = vst [vmem:[#allocation2 + $0x470] sm:$0xff] %v4864
      %5121 = vst [vmem:[#allocation2 + $0x478] sm:$0xff] %v4865
      %5122 = vst [vmem:[#allocation2 + $0x480] sm:$0xff] %v4866
      %5123 = vst [vmem:[#allocation2 + $0x488] sm:$0xff] %v4867
      %5124 = vst [vmem:[#allocation2 + $0x490] sm:$0xff] %v4868
      %5125 = vst [vmem:[#allocation2 + $0x498] sm:$0xff] %v4869
      %5126 = vst [vmem:[#allocation2 + $0x4a0] sm:$0xff] %v4870
      %5127 = vst [vmem:[#allocation2 + $0x4a8] sm:$0xff] %v4871
      %5128 = vst [vmem:[#allocation2 + $0x4b0] sm:$0xff] %v4872
      %5129 = vst [vmem:[#allocation2 + $0x4b8] sm:$0xff] %v4873
      %5130 = vst [vmem:[#allocation2 + $0x4c0] sm:$0xff] %v4874
      %5131 = vst [vmem:[#allocation2 + $0x4c8] sm:$0xff] %v4875
      %5132 = vst [vmem:[#allocation2 + $0x4d0] sm:$0xff] %v4876
      %5133 = vst [vmem:[#allocation2 + $0x4d8] sm:$0xff] %v4877
      %5134 = vst [vmem:[#allocation2 + $0x4e0] sm:$0xff] %v4878
      %5135 = vst [vmem:[#allocation2 + $0x4e8] sm:$0xff] %v4879
      %5136 = vst [vmem:[#allocation2 + $0x4f0] sm:$0xff] %v4880
      %5137 = vst [vmem:[#allocation2 + $0x4f8] sm:$0xff] %v4881
      %5138 = vst [vmem:[#allocation2 + $0x500] sm:$0xff] %v4882
      %5139 = vst [vmem:[#allocation2 + $0x508] sm:$0xff] %v4883
      %5140 = vst [vmem:[#allocation2 + $0x510] sm:$0xff] %v4884
      %5141 = vst [vmem:[#allocation2 + $0x518] sm:$0xff] %v4885
      %5142 = vst [vmem:[#allocation2 + $0x520] sm:$0xff] %v4886
      %5143 = vst [vmem:[#allocation2 + $0x528] sm:$0xff] %v4887
      %5144 = vst [vmem:[#allocation2 + $0x530] sm:$0xff] %v4888
      %5145 = vst [vmem:[#allocation2 + $0x538] sm:$0xff] %v4889
      %5146 = vst [vmem:[#allocation2 + $0x540] sm:$0xff] %v4890
      %5147 = vst [vmem:[#allocation2 + $0x548] sm:$0xff] %v4891
      %5148 = vst [vmem:[#allocation2 + $0x550] sm:$0xff] %v4892
      %5149 = vst [vmem:[#allocation2 + $0x558] sm:$0xff] %v4893
      %5150 = vst [vmem:[#allocation2 + $0x560] sm:$0xff] %v4894
      %5151 = vst [vmem:[#allocation2 + $0x568] sm:$0xff] %v4895
      %5152 = vst [vmem:[#allocation2 + $0x570] sm:$0xff] %v4896
      %5153 = vst [vmem:[#allocation2 + $0x578] sm:$0xff] %v4897
      %5154 = vst [vmem:[#allocation2 + $0x580] sm:$0xff] %v4898
      %5155 = vst [vmem:[#allocation2 + $0x588] sm:$0xff] %v4899
      %5156 = vst [vmem:[#allocation2 + $0x590] sm:$0xff] %v4900
      %5157 = vst [vmem:[#allocation2 + $0x598] sm:$0xff] %v4901
      %5158 = vst [vmem:[#allocation2 + $0x5a0] sm:$0xff] %v4902
      %5159 = vst [vmem:[#allocation2 + $0x5a8] sm:$0xff] %v4903
      %5160 = vst [vmem:[#allocation2 + $0x5b0] sm:$0xff] %v4904
      %5161 = vst [vmem:[#allocation2 + $0x5b8] sm:$0xff] %v4905
      %5162 = vst [vmem:[#allocation2 + $0x5c0] sm:$0xff] %v4906
      %5163 = vst [vmem:[#allocation2 + $0x5c8] sm:$0xff] %v4907
      %5164 = vst [vmem:[#allocation2 + $0x5d0] sm:$0xff] %v4908
      %5165 = vst [vmem:[#allocation2 + $0x5d8] sm:$0xff] %v4909
      %5166 = vst [vmem:[#allocation2 + $0x5e0] sm:$0xff] %v4910
      %5167 = vst [vmem:[#allocation2 + $0x5e8] sm:$0xff] %v4911
      %5168 = vst [vmem:[#allocation2 + $0x5f0] sm:$0xff] %v4912
      %5169 = vst [vmem:[#allocation2 + $0x5f8] sm:$0xff] %v4913
      %5170 = vst [vmem:[#allocation2 + $0x600] sm:$0xff] %v4914
      %5171 = vst [vmem:[#allocation2 + $0x608] sm:$0xff] %v4915
      %5172 = vst [vmem:[#allocation2 + $0x610] sm:$0xff] %v4916
      %5173 = vst [vmem:[#allocation2 + $0x618] sm:$0xff] %v4917
      %5174 = vst [vmem:[#allocation2 + $0x620] sm:$0xff] %v4918
      %5175 = vst [vmem:[#allocation2 + $0x628] sm:$0xff] %v4919
      %5176 = vst [vmem:[#allocation2 + $0x630] sm:$0xff] %v4920
      %5177 = vst [vmem:[#allocation2 + $0x638] sm:$0xff] %v4921
      %5178 = vst [vmem:[#allocation2 + $0x640] sm:$0xff] %v4922
      %5179 = vst [vmem:[#allocation2 + $0x648] sm:$0xff] %v4923
      %5180 = vst [vmem:[#allocation2 + $0x650] sm:$0xff] %v4924
      %5181 = vst [vmem:[#allocation2 + $0x658] sm:$0xff] %v4925
      %5182 = vst [vmem:[#allocation2 + $0x660] sm:$0xff] %v4926
      %5183 = vst [vmem:[#allocation2 + $0x668] sm:$0xff] %v4927
      %5184 = vst [vmem:[#allocation2 + $0x670] sm:$0xff] %v4928
      %5185 = vst [vmem:[#allocation2 + $0x678] sm:$0xff] %v4929
      %5186 = vst [vmem:[#allocation2 + $0x680] sm:$0xff] %v4930
      %5187 = vst [vmem:[#allocation2 + $0x688] sm:$0xff] %v4931
      %5188 = vst [vmem:[#allocation2 + $0x690] sm:$0xff] %v4932
      %5189 = vst [vmem:[#allocation2 + $0x698] sm:$0xff] %v4933
      %5190 = vst [vmem:[#allocation2 + $0x6a0] sm:$0xff] %v4934
      %5191 = vst [vmem:[#allocation2 + $0x6a8] sm:$0xff] %v4935
      %5192 = vst [vmem:[#allocation2 + $0x6b0] sm:$0xff] %v4936
      %5193 = vst [vmem:[#allocation2 + $0x6b8] sm:$0xff] %v4937
      %5194 = vst [vmem:[#allocation2 + $0x6c0] sm:$0xff] %v4938
      %5195 = vst [vmem:[#allocation2 + $0x6c8] sm:$0xff] %v4939
      %5196 = vst [vmem:[#allocation2 + $0x6d0] sm:$0xff] %v4940
      %5197 = vst [vmem:[#allocation2 + $0x6d8] sm:$0xff] %v4941
      %5198 = vst [vmem:[#allocation2 + $0x6e0] sm:$0xff] %v4942
      %5199 = vst [vmem:[#allocation2 + $0x6e8] sm:$0xff] %v4943
      %5200 = vst [vmem:[#allocation2 + $0x6f0] sm:$0xff] %v4944
      %5201 = vst [vmem:[#allocation2 + $0x6f8] sm:$0xff] %v4945
      %5202 = vst [vmem:[#allocation2 + $0x700] sm:$0xff] %v4946
      %5203 = vst [vmem:[#allocation2 + $0x708] sm:$0xff] %v4947
      %5204 = vst [vmem:[#allocation2 + $0x710] sm:$0xff] %v4948
      %5205 = vst [vmem:[#allocation2 + $0x718] sm:$0xff] %v4949
      %5206 = vst [vmem:[#allocation2 + $0x720] sm:$0xff] %v4950
      %5207 = vst [vmem:[#allocation2 + $0x728] sm:$0xff] %v4951
      %5208 = vst [vmem:[#allocation2 + $0x730] sm:$0xff] %v4952
      %5209 = vst [vmem:[#allocation2 + $0x738] sm:$0xff] %v4953
      %5210 = vst [vmem:[#allocation2 + $0x740] sm:$0xff] %v4954
      %5211 = vst [vmem:[#allocation2 + $0x748] sm:$0xff] %v4955
      %5212 = vst [vmem:[#allocation2 + $0x750] sm:$0xff] %v4956
      %5213 = vst [vmem:[#allocation2 + $0x758] sm:$0xff] %v4957
      %5214 = vst [vmem:[#allocation2 + $0x760] sm:$0xff] %v4958
      %5215 = vst [vmem:[#allocation2 + $0x768] sm:$0xff] %v4959
      %5216 = vst [vmem:[#allocation2 + $0x770] sm:$0xff] %v4960
      %5217 = vst [vmem:[#allocation2 + $0x778] sm:$0xff] %v4961
      %5218 = vst [vmem:[#allocation2 + $0x780] sm:$0xff] %v4962
      %5219 = vst [vmem:[#allocation2 + $0x788] sm:$0xff] %v4963
      %5220 = vst [vmem:[#allocation2 + $0x790] sm:$0xff] %v4964
      %5221 = vst [vmem:[#allocation2 + $0x798] sm:$0xff] %v4965
      %5222 = vst [vmem:[#allocation2 + $0x7a0] sm:$0xff] %v4966
      %5223 = vst [vmem:[#allocation2 + $0x7a8] sm:$0xff] %v4967
      %5224 = vst [vmem:[#allocation2 + $0x7b0] sm:$0xff] %v4968
      %5225 = vst [vmem:[#allocation2 + $0x7b8] sm:$0xff] %v4969
      %5226 = vst [vmem:[#allocation2 + $0x7c0] sm:$0xff] %v4970
      %5227 = vst [vmem:[#allocation2 + $0x7c8] sm:$0xff] %v4971
      %5228 = vst [vmem:[#allocation2 + $0x7d0] sm:$0xff] %v4972
      %5229 = vst [vmem:[#allocation2 + $0x7d8] sm:$0xff] %v4973
      %5230 = vst [vmem:[#allocation2 + $0x7e0] sm:$0xff] %v4974
      %5231 = vst [vmem:[#allocation2 + $0x7e8] sm:$0xff] %v4975
      %5232 = vst [vmem:[#allocation2 + $0x7f0] sm:$0xff] %v4976
      %5233 = vst [vmem:[#allocation2 + $0x7f8] sm:$0xff] %v4977
    $region17: #{tpu_custom_call.1} parent=1 // pred_fallthru
      _
    // Predicated region
    $region18: #{tpu_custom_call.1} parent=1 // pred_check
      _
    $region19: #{tpu_custom_call.1} parent=1 // pred_check_branch
      %5235 = sbr.rel (0) target = $region21
    $region20: #{tpu_custom_call.1} parent=1 // pred_region
      %s5237 = ssub.s32 32768, 32768
      %5238 = vsyncadd [#allocation3], %s5237
      %s5239 = sshll.u32 [#allocation2], 4
      %s5240 = int_to_ptr.vmem [resolvable:$true] %s5239
      %5245 = dma.vmem_to_hbm [thread:$0]  %s5240, 32768, %s3, [#allocation3], 128, 128, 8
    $region21: #{tpu_custom_call.1} parent=1 // pred_fallthru
      _
    // Predicated region
    $region22: #{tpu_custom_call.1} parent=1 // pred_check
      _
    $region23: #{tpu_custom_call.1} parent=1 // pred_check_branch
      %5247 = sbr.rel (0) target = $region25
    $region24: #{tpu_custom_call.1} parent=1 // pred_region
      %5248 = dma.done [#allocation3], 32768
    $region25: #{tpu_custom_call.1} parent=1 // pred_fallthru
      _
    %5249 = vsyncpa [#allocation3], 1

</llo_original>
